<compile_context>
chip_gen: v6e
topology: v6e:2x2x1
jax: 0.10.0
libtpu: 0.0.40
codegen_flags: <defaults>
</compile_context>

<pallas_src>
import functools

import jax
import jax.numpy as jnp
from jax import lax
from jax.experimental import pallas as pl
from jax.experimental.pallas import tpu as pltpu


_SUBLANE_FOR_ITEMSIZE = {4: 8, 2: 16, 1: 32}


def _focal_loss_kernel(x_ref, t_ref, fw_out_ref, bce_out_ref, *, gamma, alpha):
    i = pl.program_id(1)                       # inner (reduction) grid axis

    x = x_ref[...].astype(jnp.float32)         # (TM, C) upcast in-register
    t = t_ref[...]                             # (TM, 1) int32
    tm, c = x.shape

    lane = lax.broadcasted_iota(jnp.int32, (tm, c), 1)
    is_pos = lane == t                         # bool (TM, C)

    # Focal weight on the *raw* logits (matches the PyTorch reference exactly).
    fw = jnp.where(is_pos, 1.0 - x, x)
    g_int = int(gamma)
    if float(gamma) == float(g_int):
        fw = lax.integer_pow(fw, g_int)        # pure multiplies, no EUP exp/log
    else:
        # TODO(synk): non-integer gamma on negative raw logits yields NaN, exactly
        # like torch.pow in the reference; documented rather than "fixed".
        fw = fw ** jnp.float32(gamma)
    if alpha is not None:
        fw = jnp.where(is_pos, jnp.float32(alpha), jnp.float32(1.0 - alpha)) * fw

    # Analytic log-softmax / log(1 - p):
    #   log p      = (x - m) - log(sum_e)
    #   log(1 - p) = log(sum_e - e) - log(sum_e)
    # keeping PyTorch BCE's clamp at -100.
    m = jnp.max(x, axis=1, keepdims=True)
    xs = x - m
    e = jnp.exp(xs)
    s = jnp.sum(e, axis=1, keepdims=True)
    log_s = jnp.log(s)
    log_p = jnp.maximum(xs - log_s, -100.0)
    log_1mp = jnp.maximum(jnp.log(s - e) - log_s, -100.0)
    bce_terms = jnp.where(is_pos, -log_p, -log_1mp)

    # Partial reduce only over the row-block axis (pure VPU adds, lanes kept dense);
    # the cross-lane/sublane reduce to a scalar happens once in the wrapper.
    fw_part = jnp.sum(fw.reshape(tm // 8, 8, c), axis=0)          # (8, C)
    bce_part = jnp.sum(bce_terms.reshape(tm // 8, 8, c), axis=0)  # (8, C)

    @pl.when(i == 0)
    def _():
        fw_out_ref[...] = jnp.zeros_like(fw_out_ref)
        bce_out_ref[...] = jnp.zeros_like(bce_out_ref)

    fw_out_ref[...] += fw_part
    bce_out_ref[...] += bce_part


def focal_loss(inputs, targets, *, gamma=2, alpha=None, reduction="sum",
               ignore_index=None, block_rows=None, n_outer=2,
               target_block_bytes=2 * 1024 * 1024):
    """Pallas TPU FocalLoss forward. inputs: [N, C], targets: [N] int."""
    # TODO(synk): ignore_index filtering requires data-dependent shapes; only
    # ignore_index=None is supported in-kernel.
    assert ignore_index is None, "ignore_index filtering not implemented in-kernel"
    n, c = inputs.shape
    itemsize = inputs.dtype.itemsize
    sublane = _SUBLANE_FOR_ITEMSIZE.get(itemsize, 8)
    assert n % sublane == 0, f"N={n} must be a multiple of the sublane tile {sublane}"

    # Outer 'parallel' axis so v7x can shard across its 2 TensorCores; harmless
    # (just a trivially-sized grid axis) on single-core v5e/v6e.
    if n % n_outer != 0 or (n // n_outer) % sublane != 0:
        n_outer = 1
    rows_per_core = n // n_outer

    # Pick a row tile so each native-dtype input block is ~target_block_bytes,
    # rounded to the dtype's sublane tile and dividing the per-core row count.
    if block_rows is None:
        br = (target_block_bytes // (c * itemsize)) // sublane * sublane
        block_rows = int(max(sublane, min(rows_per_core, br)))
    assert block_rows % sublane == 0
    block_rows = min(block_rows, rows_per_core)
    while rows_per_core % block_rows != 0:
        block_rows -= sublane
    inner_steps = rows_per_core // block_rows

    t2 = targets.astype(jnp.int32).reshape(n, 1)

    # VMEM budget: double-buffered native input + f32 working set + padded targets,
    # with headroom; kept below v7x's 64 MiB physical VMEM.
    x_block_native = block_rows * c * itemsize
    x_block_f32 = block_rows * c * 4
    vmem_limit = int(min(100 << 20,
                         max(32 << 20,
                             2 * x_block_native + 10 * x_block_f32
                             + 2 * block_rows * 512 + (4 << 20))))

    kernel = functools.partial(_focal_loss_kernel, gamma=gamma, alpha=alpha)

    fw_parts, bce_parts = pl.pallas_call(
        kernel,
        out_shape=(jax.ShapeDtypeStruct((8 * n_outer, c), jnp.float32),
                   jax.ShapeDtypeStruct((8 * n_outer, c), jnp.float32)),
        grid_spec=pltpu.PrefetchScalarGridSpec(
            num_scalar_prefetch=0,
            grid=(n_outer, inner_steps),
            in_specs=[
                pl.BlockSpec((block_rows, c),
                             lambda o, i: (o * inner_steps + i, 0)),
                pl.BlockSpec((block_rows, 1),
                             lambda o, i: (o * inner_steps + i, 0)),
            ],
            out_specs=[
                pl.BlockSpec((8, c), lambda o, i: (o, 0)),
                pl.BlockSpec((8, c), lambda o, i: (o, 0)),
            ],
        ),
        compiler_params=pltpu.CompilerParams(
            dimension_semantics=("parallel", "arbitrary"),
            vmem_limit_bytes=vmem_limit),
    )(inputs, t2)

    total = n * c
    fw_sum = jnp.sum(fw_parts)                             # sum(focal_weight)
    bce_mean = jnp.sum(bce_parts) / jnp.float32(total)     # scalar BCE ('mean')
    loss = bce_mean * fw_sum                               # == sum(focal_weight * bce)
    if reduction == "mean":
        loss = loss / jnp.float32(total)
    return loss


def _focal_loss_ref(x, t, *, gamma=2, alpha=None, reduction="sum"):
    """Pure-JAX reference mirroring the PyTorch module."""
    n, c = x.shape
    x = x.astype(jnp.float32)
    onehot = jax.nn.one_hot(t, c, dtype=jnp.float32)
    fw = jnp.where(onehot == 1.0, 1.0 - x, x)
    if alpha is not None:
        af = jnp.where(onehot == 1.0, alpha, 1.0 - alpha)
        fw = af * (fw ** gamma)
    else:
        fw = fw ** gamma
    p = jax.nn.softmax(x, axis=1)
    bce = jnp.mean(-(onehot * jnp.maximum(jnp.log(p), -100.0) +
                     (1.0 - onehot) * jnp.maximum(jnp.log(1.0 - p), -100.0)))
    cls_loss = fw * bce
    return cls_loss.mean() if reduction == "mean" else cls_loss.sum()


if __name__ == "__main__":
    key = jax.random.PRNGKey(0)
    N, C = 2048, 128                  # [num_vocab, classes]; C=128 keeps lanes dense
    k1, k2 = jax.random.split(key)
    x = jax.random.normal(k1, (N, C), dtype=jnp.float32)
    t = jax.random.randint(k2, (N,), 0, C, dtype=jnp.int32)

    # Default config: auto-sized tiles, reduction='sum'.
    loss = jax.block_until_ready(focal_loss(x, t, gamma=2, alpha=None, reduction="sum"))
    ref = _focal_loss_ref(x, t, gamma=2, alpha=None, reduction="sum")
    assert jnp.allclose(loss, ref, rtol=1e-4, atol=1e-4), (loss, ref)

    # Exercise the multi-step reduction axis plus the alpha / 'mean' paths.
    loss2 = jax.block_until_ready(
        focal_loss(x, t, gamma=2, alpha=0.25, reduction="mean", block_rows=256))
    ref2 = _focal_loss_ref(x, t, gamma=2, alpha=0.25, reduction="mean")
    assert jnp.allclose(loss2, ref2, rtol=1e-4, atol=1e-5), (loss2, ref2)

    print("KERNEL_OK")
</pallas_src>

<mosaic_0001>
module attributes {stable_mosaic.version = 11 : i64} {
  func.func @_focal_loss_kernel(%arg0: i32, %arg1: i32, %arg2: memref<1024x128xf32, #tpu.memory_space<vmem>>, %arg3: memref<1024x1xi32, #tpu.memory_space<vmem>>, %arg4: memref<8x128xf32, #tpu.memory_space<vmem>>, %arg5: memref<8x128xf32, #tpu.memory_space<vmem>>) attributes {dimension_semantics = [#tpu.dimension_semantics<parallel>, #tpu.dimension_semantics<arbitrary>], iteration_bounds = array<i64: 2, 1>, scalar_prefetch = 0 : i64, scratch_operands = 0 : i64, tpu.core_type = #tpu.core_type<tc>, window_params = [{transform_indices = @transform_0, window_bounds = array<i64: 1024, 128>}, {transform_indices = @transform_1, window_bounds = array<i64: 1024, 1>}, {transform_indices = @transform_2, window_bounds = array<i64: 8, 128>}, {transform_indices = @transform_3, window_bounds = array<i64: 8, 128>}]} {
    %c0 = arith.constant 0 : index
    %c0_0 = arith.constant 0 : index
    %0 = vector.load %arg2[%c0, %c0_0] : memref<1024x128xf32, #tpu.memory_space<vmem>>, vector<1024x128xf32>
    %c0_1 = arith.constant 0 : index
    %c0_2 = arith.constant 0 : index
    %1 = vector.load %arg3[%c0_1, %c0_2] : memref<1024x1xi32, #tpu.memory_space<vmem>>, vector<1024x1xi32>
    %2 = tpu.iota {dimensions = array<i32: 1>} : vector<1024x128xi32>
    %3 = vector.broadcast %1 : vector<1024x1xi32> to vector<1024x128xi32>
    %4 = arith.cmpi eq, %2, %3 : vector<1024x128xi32>
    %cst = arith.constant 1.000000e+00 : f32
    %5 = vector.broadcast %cst : f32 to vector<1024x128xf32>
    %6 = arith.subf %5, %0 : vector<1024x128xf32>
    %7 = arith.select %4, %6, %0 : vector<1024x128xi1>, vector<1024x128xf32>
    %8 = arith.mulf %7, %7 : vector<1024x128xf32>
    %cst_3 = arith.constant dense<0xFF800000> : vector<1024xf32>
    %9 = vector.multi_reduction <maximumf>, %0, %cst_3 [1] : vector<1024x128xf32> to vector<1024xf32>
    %10 = vector.shape_cast %9 : vector<1024xf32> to vector<1024x1xf32>
    %11 = vector.broadcast %10 : vector<1024x1xf32> to vector<1024x128xf32>
    %12 = arith.subf %0, %11 : vector<1024x128xf32>
    %13 = math.exp %12 : vector<1024x128xf32>
    %cst_4 = arith.constant dense<0.000000e+00> : vector<1024xf32>
    %14 = vector.multi_reduction <add>, %13, %cst_4 [1] : vector<1024x128xf32> to vector<1024xf32>
    %15 = vector.shape_cast %14 : vector<1024xf32> to vector<1024x1xf32>
    %16 = math.log %15 : vector<1024x1xf32>
    %17 = vector.broadcast %16 : vector<1024x1xf32> to vector<1024x128xf32>
    %18 = arith.subf %12, %17 : vector<1024x128xf32>
    %cst_5 = arith.constant -1.000000e+02 : f32
    %19 = vector.broadcast %cst_5 : f32 to vector<1024x128xf32>
    %20 = arith.maximumf %18, %19 : vector<1024x128xf32>
    %21 = vector.broadcast %15 : vector<1024x1xf32> to vector<1024x128xf32>
    %22 = arith.subf %21, %13 : vector<1024x128xf32>
    %23 = math.log %22 : vector<1024x128xf32>
    %24 = vector.broadcast %16 : vector<1024x1xf32> to vector<1024x128xf32>
    %25 = arith.subf %23, %24 : vector<1024x128xf32>
    %cst_6 = arith.constant -1.000000e+02 : f32
    %26 = vector.broadcast %cst_6 : f32 to vector<1024x128xf32>
    %27 = arith.maximumf %25, %26 : vector<1024x128xf32>
    %cst_7 = arith.constant 0.000000e+00 : f32
    %28 = vector.broadcast %cst_7 : f32 to vector<1024x128xf32>
    %29 = arith.subf %28, %20 : vector<1024x128xf32>
    %cst_8 = arith.constant 0.000000e+00 : f32
    %30 = vector.broadcast %cst_8 : f32 to vector<1024x128xf32>
    %31 = arith.subf %30, %27 : vector<1024x128xf32>
    %32 = arith.select %4, %29, %31 : vector<1024x128xi1>, vector<1024x128xf32>
    %33 = vector.shape_cast %8 : vector<1024x128xf32> to vector<128x8x128xf32>
    %cst_9 = arith.constant dense<0.000000e+00> : vector<8x128xf32>
    %34 = vector.multi_reduction <add>, %33, %cst_9 [0] : vector<128x8x128xf32> to vector<8x128xf32>
    %35 = vector.shape_cast %32 : vector<1024x128xf32> to vector<128x8x128xf32>
    %cst_10 = arith.constant dense<0.000000e+00> : vector<8x128xf32>
    %36 = vector.multi_reduction <add>, %35, %cst_10 [0] : vector<128x8x128xf32> to vector<8x128xf32>
    %c0_i32 = arith.constant 0 : i32
    %37 = arith.cmpi eq, %arg1, %c0_i32 : i32
    %38 = arith.extui %37 : i1 to i32
    %c0_i32_11 = arith.constant 0 : i32
    %39 = arith.cmpi ne, %38, %c0_i32_11 : i32
    scf.if %39 {
      %cst_20 = arith.constant 0.000000e+00 : f32
      %46 = vector.broadcast %cst_20 : f32 to vector<8x128xf32>
      %c0_21 = arith.constant 0 : index
      %c0_22 = arith.constant 0 : index
      %47 = vector.load %arg4[%c0_21, %c0_22] : memref<8x128xf32, #tpu.memory_space<vmem>>, vector<8x128xf32>
      tpu.vector_store %arg4[%c0_21, %c0_22], %46 {strides = array<i32>} : memref<8x128xf32, #tpu.memory_space<vmem>>, vector<8x128xf32>,
      %cst_23 = arith.constant 0.000000e+00 : f32
      %48 = vector.broadcast %cst_23 : f32 to vector<8x128xf32>
      %c0_24 = arith.constant 0 : index
      %c0_25 = arith.constant 0 : index
      %49 = vector.load %arg5[%c0_24, %c0_25] : memref<8x128xf32, #tpu.memory_space<vmem>>, vector<8x128xf32>
      tpu.vector_store %arg5[%c0_24, %c0_25], %48 {strides = array<i32>} : memref<8x128xf32, #tpu.memory_space<vmem>>, vector<8x128xf32>,
    } else {
    }
    %c0_12 = arith.constant 0 : index
    %c0_13 = arith.constant 0 : index
    %40 = vector.load %arg4[%c0_12, %c0_13] : memref<8x128xf32, #tpu.memory_space<vmem>>, vector<8x128xf32>
    %41 = arith.addf %40, %34 : vector<8x128xf32>
    %c0_14 = arith.constant 0 : index
    %c0_15 = arith.constant 0 : index
    %42 = vector.load %arg4[%c0_14, %c0_15] : memref<8x128xf32, #tpu.memory_space<vmem>>, vector<8x128xf32>
    tpu.vector_store %arg4[%c0_14, %c0_15], %41 {strides = array<i32>} : memref<8x128xf32, #tpu.memory_space<vmem>>, vector<8x128xf32>,
    %c0_16 = arith.constant 0 : index
    %c0_17 = arith.constant 0 : index
    %43 = vector.load %arg5[%c0_16, %c0_17] : memref<8x128xf32, #tpu.memory_space<vmem>>, vector<8x128xf32>
    %44 = arith.addf %43, %36 : vector<8x128xf32>
    %c0_18 = arith.constant 0 : index
    %c0_19 = arith.constant 0 : index
    %45 = vector.load %arg5[%c0_18, %c0_19] : memref<8x128xf32, #tpu.memory_space<vmem>>, vector<8x128xf32>
    tpu.vector_store %arg5[%c0_18, %c0_19], %44 {strides = array<i32>} : memref<8x128xf32, #tpu.memory_space<vmem>>, vector<8x128xf32>,
    return
  }
  func.func @transform_0(%arg0: i32, %arg1: i32) -> (i32, i32) {
    %c1_i32 = arith.constant 1 : i32
    %0 = arith.muli %arg0, %c1_i32 : i32
    %1 = arith.addi %0, %arg1 : i32
    %c0_i32 = arith.constant 0 : i32
    %c0_i32_0 = arith.constant 0 : i32
    return %1, %c0_i32 : i32, i32
  }
  func.func @transform_1(%arg0: i32, %arg1: i32) -> (i32, i32) {
    %c1_i32 = arith.constant 1 : i32
    %0 = arith.muli %arg0, %c1_i32 : i32
    %1 = arith.addi %0, %arg1 : i32
    %c0_i32 = arith.constant 0 : i32
    %c0_i32_0 = arith.constant 0 : i32
    return %1, %c0_i32 : i32, i32
  }
  func.func @transform_2(%arg0: i32, %arg1: i32) -> (i32, i32) {
    %c0_i32 = arith.constant 0 : i32
    %c0_i32_0 = arith.constant 0 : i32
    return %arg0, %c0_i32 : i32, i32
  }
  func.func @transform_3(%arg0: i32, %arg1: i32) -> (i32, i32) {
    %c0_i32 = arith.constant 0 : i32
    %c0_i32_0 = arith.constant 0 : i32
    return %arg0, %c0_i32 : i32, i32
  }
}

</mosaic_0001>

<llo_original>
// kernel: tpu_custom_call.1
$region0: #{tpu_custom_call.1}
  #allocation0 [shape = 'u32[]', space=smem, size = 0x4, offset = 0x4, fixed_abs, tag = 'smem constant byte address 0x4 - core index']
  #allocation1 [shape = 'u32[144,128]{1,0:T(1,128)}', space=vmem, size = 0x12000, scoped, tag = 'internal scratch']
  %s0 = inlined_call_operand.vmem [shape: f32[2048,128], index: 0, kind: input, shape index: {}]
  %s1 = inlined_call_operand.vmem [shape: s32[2048,1], index: 1, kind: input, shape index: {}]
  %s2 = inlined_call_operand.hbm [shape: f32[16,128], index: 2, kind: output, shape index: {0}]
  %s3 = inlined_call_operand.hbm [shape: f32[16,128], index: 3, kind: output, shape index: {1}]
  %4 = xla_tuple %s2, %s3
  %s5 = sld [smem:[#allocation0]]
  $region53: #{tpu_custom_call.1} parent=0
    _
  %s7 = ssub.s32 1, %s5
  %s8 = scalar_select 0, %s7, %s5
  $region1: #{tpu_custom_call.1} parent=0
    #allocation2 [shape = 'u8[8192]{0}', space=vmem, size = 0x2000, scoped, tag = 'output window, operand 0']
    #allocation3 [shape = 's32[2]{0}', space=sflag, size = 0x8, scoped, tag = 'scoped memory for tpu_custom_call.1']
    #allocation4 [shape = 'u8[8192]{0}', space=vmem, size = 0x2000, scoped, tag = 'output window, operand 1']
    #allocation5 [shape = 's32[2]{0}', space=sflag, size = 0x8, scoped, tag = 'scoped memory for tpu_custom_call.1']
    %9 = vsyncpa [#allocation3], 0
    %s10 = scalar_lea.sflag [#allocation3], 1
    %11 = vsyncpa %s10, 0
    %12 = vsyncpa [#allocation5], 0
    %s13 = scalar_lea.sflag [#allocation5], 1
    %14 = vsyncpa %s13, 0
    loop: start=0, step=1, limit=4
    $region2: #{tpu_custom_call.1} parent=1 // loop_pre_header
      _
    $region3: #{tpu_custom_call.1} parent=1 // loop_header
      %s16 = sphi 0, %s20
      %p17 = scmp.ge.s32.totalorder %s16, 4
      %s23 = sphi 0, %s35
      %s24 = sphi 0, %s31
      %s25 = sphi 0, %s23
      %s26 = sphi 0, %s24
      %s27 = sphi 0, %s25
      %s28 = sphi 0, %s26
      %s40 = sphi 0, %s42
      %s43 = sphi 0, %s40
      %s44 = sphi 0, %s43
      %s60 = sphi 0, %s44
      %s68 = sphi 0, %s70
      %s71 = sphi 0, %s68
      %s72 = sphi 0, %s71
      %s88 = sphi 0, %s72
      %s94 = sphi 0, %s96
      %s97 = sphi 0, %s94
      %s98 = sphi 0, %s97
      %s114 = sphi 0, %s98
      %s120 = sphi 0, %s122
      %s123 = sphi 0, %s120
      %s124 = sphi 0, %s123
      %s140 = sphi 0, %s124
    $region4: #{tpu_custom_call.1} parent=1 // loop_header_branch
      %19 = sbr.rel (%p17) target = $region8
    $region5: #{tpu_custom_call.1} parent=1 // loop_body
      %s21 = ssub.s32 %s16, 1
      %s22 = ssub.s32 %s16, 2
      %s29 = sadd.s32 1, %s24
      %p30 = scmp.ge.s32.totalorder %s29, 1
      %s31 = scalar_select %p30, 0, %s29
      %s32 = sadd.s32 1, %s23
      %s33 = scalar_select %p30, %s32, %s23
      %p34 = scmp.ge.s32.totalorder %s33, 2
      %s35 = scalar_select %p34, 0, %s33
      %s36 = sadd.s32 %s23, %s24
      %s37 = sadd.s32 %s35, %s31
      %s38 = ssub.s32 %s36, %s37
      %p39 = scmp.eq.s32.totalorder %s38, 0
      %s41 = sadd.s32 %s40, 1
      %s42 = scalar_select %p39, %s40, %s41
      %p45 = pneg %p39
      %p46 = scmp.eq.s32.totalorder %s16, 1
      %p47 = por %p45, %p46
      %p48 = scmp.ne.s32.totalorder %s40, %s43
      %p49 = scmp.eq.s32.totalorder %s16, 0
      %p50 = por %p48, %p49
      %p51 = scmp.ne.s32.totalorder %s40, %s43
      %p52 = scmp.eq.s32.totalorder %s21, 1
      %p53 = por %p51, %p52
      %p54 = scmp.ne.s32.totalorder %s43, %s44
      %p55 = scmp.eq.s32.totalorder %s21, 0
      %p56 = por %p54, %p55
      %p57 = scmp.ne.s32.totalorder %s43, %s44
      %p58 = scmp.eq.s32.totalorder %s22, 1
      %p59 = por %p57, %p58
      %p61 = scmp.ne.s32.totalorder %s44, %s60
      %p62 = scmp.eq.s32.totalorder %s22, 0
      %p63 = por %p61, %p62
      %s64 = sadd.s32 %s23, %s24
      %s65 = sadd.s32 %s35, %s31
      %s66 = ssub.s32 %s64, %s65
      %p67 = scmp.eq.s32.totalorder %s66, 0
      %s69 = sadd.s32 %s68, 1
      %s70 = scalar_select %p67, %s68, %s69
      %p73 = pneg %p67
      %p74 = scmp.eq.s32.totalorder %s16, 1
      %p75 = por %p73, %p74
      %p76 = scmp.ne.s32.totalorder %s68, %s71
      %p77 = scmp.eq.s32.totalorder %s16, 0
      %p78 = por %p76, %p77
      %p79 = scmp.ne.s32.totalorder %s68, %s71
      %p80 = scmp.eq.s32.totalorder %s21, 1
      %p81 = por %p79, %p80
      %p82 = scmp.ne.s32.totalorder %s71, %s72
      %p83 = scmp.eq.s32.totalorder %s21, 0
      %p84 = por %p82, %p83
      %p85 = scmp.ne.s32.totalorder %s71, %s72
      %p86 = scmp.eq.s32.totalorder %s22, 1
      %p87 = por %p85, %p86
      %p89 = scmp.ne.s32.totalorder %s72, %s88
      %p90 = scmp.eq.s32.totalorder %s22, 0
      %p91 = por %p89, %p90
      %s92 = ssub.s32 %s23, %s35
      %p93 = scmp.eq.s32.totalorder %s92, 0
      %s95 = sadd.s32 %s94, 1
      %s96 = scalar_select %p93, %s94, %s95
      %p99 = pneg %p93
      %p100 = scmp.eq.s32.totalorder %s16, 1
      %p101 = por %p99, %p100
      %p102 = scmp.ne.s32.totalorder %s94, %s97
      %p103 = scmp.eq.s32.totalorder %s16, 0
      %p104 = por %p102, %p103
      %p105 = scmp.ne.s32.totalorder %s94, %s97
      %p106 = scmp.eq.s32.totalorder %s21, 1
      %p107 = por %p105, %p106
      %p108 = scmp.ne.s32.totalorder %s97, %s98
      %p109 = scmp.eq.s32.totalorder %s21, 0
      %p110 = por %p108, %p109
      %p111 = scmp.ne.s32.totalorder %s97, %s98
      %p112 = scmp.eq.s32.totalorder %s22, 1
      %p113 = por %p111, %p112
      %p115 = scmp.ne.s32.totalorder %s98, %s114
      %p116 = scmp.eq.s32.totalorder %s22, 0
      %p117 = por %p115, %p116
      %s118 = ssub.s32 %s23, %s35
      %p119 = scmp.eq.s32.totalorder %s118, 0
      %s121 = sadd.s32 %s120, 1
      %s122 = scalar_select %p119, %s120, %s121
      %p125 = pneg %p119
      %p126 = scmp.eq.s32.totalorder %s16, 1
      %p127 = por %p125, %p126
      %p128 = scmp.ne.s32.totalorder %s120, %s123
      %p129 = scmp.eq.s32.totalorder %s16, 0
      %p130 = por %p128, %p129
      %p131 = scmp.ne.s32.totalorder %s120, %s123
      %p132 = scmp.eq.s32.totalorder %s21, 1
      %p133 = por %p131, %p132
      %p134 = scmp.ne.s32.totalorder %s123, %s124
      %p135 = scmp.eq.s32.totalorder %s21, 0
      %p136 = por %p134, %p135
      %p137 = scmp.ne.s32.totalorder %s123, %s124
      %p138 = scmp.eq.s32.totalorder %s22, 1
      %p139 = por %p137, %p138
      %p141 = scmp.ne.s32.totalorder %s124, %s140
      %p142 = scmp.eq.s32.totalorder %s22, 0
      %p143 = por %p141, %p142
      %p144 = scmp.le.s32.totalorder 1, %s16
      %p145 = scmp.lt.s32.totalorder %s16, 3
      %p146 = pnand %p144, %p145
      %p147 = pneg %p146
      // Predicated region
      $region9: #{tpu_custom_call.1} parent=5 // pred_check
        _
      $region10: #{tpu_custom_call.1} parent=5 // pred_check_branch
        %149 = sbr.rel (%p146) target = $region12
      $region11: #{tpu_custom_call.1} parent=5 // pred_region
        %s150 = ssub.s32 %s16, 1
      $region12: #{tpu_custom_call.1} parent=5 // pred_fallthru
        _
      %p151 = scmp.lt.s32.totalorder %s16, 2
      // Predicated region
      $region13: #{tpu_custom_call.1} parent=5 // pred_check
        %p152 = pneg %p151
      $region14: #{tpu_custom_call.1} parent=5 // pred_check_branch
        %154 = sbr.rel (%p152) target = $region16
      $region15: #{tpu_custom_call.1} parent=5 // pred_region
        // Predicated region
        $region17: #{tpu_custom_call.1} parent=15 // pred_check
          %p155 = pneg %p50
        $region18: #{tpu_custom_call.1} parent=15 // pred_check_branch
          %157 = sbr.rel (%p155) target = $region20
        $region19: #{tpu_custom_call.1} parent=15 // pred_region
          %s158 = sadd.s32 %s23, %s24
          %s159 = smul.u32 128, %s158
          %p160 = scmp.lt.s32.totalorder %s159, 255
          %s161 = scalar_select %p160, %s159, 255
          %s162 = smul.addr %s161, 8
          %s163 = scalar_lea.vmem %s0, %s162
          %s164 = sadd.s32 %s23, %s24
          %s165 = smul.u32 128, %s164
        $region20: #{tpu_custom_call.1} parent=15 // pred_fallthru
          _
        // Predicated region
        $region21: #{tpu_custom_call.1} parent=15 // pred_check
          %p166 = pneg %p78
        $region22: #{tpu_custom_call.1} parent=15 // pred_check_branch
          %168 = sbr.rel (%p166) target = $region24
        $region23: #{tpu_custom_call.1} parent=15 // pred_region
          %s169 = sadd.s32 %s23, %s24
          %s170 = smul.u32 128, %s169
          %p171 = scmp.lt.s32.totalorder %s170, 255
          %s172 = scalar_select %p171, %s170, 255
          %s173 = smul.addr %s172, 8
          %s174 = scalar_lea.vmem %s1, %s173
          %s175 = sadd.s32 %s23, %s24
          %s176 = smul.u32 128, %s175
        $region24: #{tpu_custom_call.1} parent=15 // pred_fallthru
          _
      $region16: #{tpu_custom_call.1} parent=5 // pred_fallthru
        _
      %p177 = scmp.le.s32.totalorder 1, %s16
      %p178 = scmp.lt.s32.totalorder %s16, 3
      %p179 = pnand %p177, %p178
      %p180 = pneg %p179
      // Predicated region
      $region25: #{tpu_custom_call.1} parent=5 // pred_check
        _
      $region26: #{tpu_custom_call.1} parent=5 // pred_check_branch
        %182 = sbr.rel (%p179) target = $region28
      $region27: #{tpu_custom_call.1} parent=5 // pred_region
        %s183 = ssub.s32 %s16, 1
        %s184 = sadd.s32 %s25, %s26
        %s185 = smul.u32 128, %s184
        %p186 = scmp.lt.s32.totalorder %s185, 255
        %s187 = scalar_select %p186, %s185, 255
        %s188 = smul.addr %s187, 8
        %s189 = scalar_lea.vmem %s0, %s188
        %p190 = pneg %p56
        %p191 = pneg %p53
        %s192 = sadd.s32 %s25, %s26
        %s193 = smul.u32 128, %s192
        %p194 = scmp.lt.s32.totalorder %s193, 255
        %s195 = scalar_select %p194, %s193, 255
        %s196 = smul.addr %s195, 8
        %s197 = scalar_lea.vmem %s1, %s196
        %p198 = pneg %p84
        %p199 = pneg %p81
        %p200 = pneg %p110
        %p201 = pneg %p107
        %s202 = sand.u32 %s97, 1
        %s203 = scalar_lea.sflag [#allocation3], %s202
        %s204 = sand.u32 %s97, 1
        %s205 = smul.addr %s204, 8
        %s206 = scalar_lea.vmem [#allocation2], %s205
        %p207 = pneg %p136
        %p208 = pneg %p133
        %s209 = sand.u32 %s123, 1
        %s210 = scalar_lea.sflag [#allocation5], %s209
        %s211 = sand.u32 %s123, 1
        %s212 = smul.addr %s211, 8
        %s213 = scalar_lea.vmem [#allocation4], %s212
        %s214 = sadd.s32 %s25, %s26
        %s215 = smul.u32 128, %s214
        %p216 = scmp.lt.s32.totalorder %s215, 255
        %s217 = scalar_select %p216, %s215, 255
        %s218 = smul.addr %s217, 8
        %s219 = scalar_lea.vmem %s0, %s218
        %s220 = sadd.s32 %s25, %s26
        %s221 = smul.u32 128, %s220
        %s222 = sadd.s32 %s25, %s26
        %s223 = smul.u32 128, %s222
        %p224 = scmp.lt.s32.totalorder %s223, 255
        %s225 = scalar_select %p224, %s223, 255
        %s226 = smul.addr %s225, 8
        %s227 = scalar_lea.vmem %s1, %s226
        %s228 = sadd.s32 %s25, %s26
        %s229 = smul.u32 128, %s228
        %v230 = vld [vmem:[%s219] sm:$0xff]
        %v231 = vld [vmem:[%s219 + $0x8] sm:$0xff]
        %v232 = vld [vmem:[%s219 + $0x10] sm:$0xff]
        %v233 = vld [vmem:[%s219 + $0x18] sm:$0xff]
        %v234 = vld [vmem:[%s219 + $0x20] sm:$0xff]
        %v235 = vld [vmem:[%s219 + $0x28] sm:$0xff]
        %v236 = vld [vmem:[%s219 + $0x30] sm:$0xff]
        %v237 = vld [vmem:[%s219 + $0x38] sm:$0xff]
        %v238 = vld [vmem:[%s219 + $0x40] sm:$0xff]
        %v239 = vld [vmem:[%s219 + $0x48] sm:$0xff]
        %v240 = vld [vmem:[%s219 + $0x50] sm:$0xff]
        %v241 = vld [vmem:[%s219 + $0x58] sm:$0xff]
        %v242 = vld [vmem:[%s219 + $0x60] sm:$0xff]
        %v243 = vld [vmem:[%s219 + $0x68] sm:$0xff]
        %v244 = vld [vmem:[%s219 + $0x70] sm:$0xff]
        %v245 = vld [vmem:[%s219 + $0x78] sm:$0xff]
        %v246 = vld [vmem:[%s219 + $0x80] sm:$0xff]
        %v247 = vld [vmem:[%s219 + $0x88] sm:$0xff]
        %v248 = vld [vmem:[%s219 + $0x90] sm:$0xff]
        %v249 = vld [vmem:[%s219 + $0x98] sm:$0xff]
        %v250 = vld [vmem:[%s219 + $0xa0] sm:$0xff]
        %v251 = vld [vmem:[%s219 + $0xa8] sm:$0xff]
        %v252 = vld [vmem:[%s219 + $0xb0] sm:$0xff]
        %v253 = vld [vmem:[%s219 + $0xb8] sm:$0xff]
        %v254 = vld [vmem:[%s219 + $0xc0] sm:$0xff]
        %v255 = vld [vmem:[%s219 + $0xc8] sm:$0xff]
        %v256 = vld [vmem:[%s219 + $0xd0] sm:$0xff]
        %v257 = vld [vmem:[%s219 + $0xd8] sm:$0xff]
        %v258 = vld [vmem:[%s219 + $0xe0] sm:$0xff]
        %v259 = vld [vmem:[%s219 + $0xe8] sm:$0xff]
        %v260 = vld [vmem:[%s219 + $0xf0] sm:$0xff]
        %v261 = vld [vmem:[%s219 + $0xf8] sm:$0xff]
        %v262 = vld [vmem:[%s219 + $0x100] sm:$0xff]
        %v263 = vld [vmem:[%s219 + $0x108] sm:$0xff]
        %v264 = vld [vmem:[%s219 + $0x110] sm:$0xff]
        %v265 = vld [vmem:[%s219 + $0x118] sm:$0xff]
        %v266 = vld [vmem:[%s219 + $0x120] sm:$0xff]
        %v267 = vld [vmem:[%s219 + $0x128] sm:$0xff]
        %v268 = vld [vmem:[%s219 + $0x130] sm:$0xff]
        %v269 = vld [vmem:[%s219 + $0x138] sm:$0xff]
        %v270 = vld [vmem:[%s219 + $0x140] sm:$0xff]
        %v271 = vld [vmem:[%s219 + $0x148] sm:$0xff]
        %v272 = vld [vmem:[%s219 + $0x150] sm:$0xff]
        %v273 = vld [vmem:[%s219 + $0x158] sm:$0xff]
        %v274 = vld [vmem:[%s219 + $0x160] sm:$0xff]
        %v275 = vld [vmem:[%s219 + $0x168] sm:$0xff]
        %v276 = vld [vmem:[%s219 + $0x170] sm:$0xff]
        %v277 = vld [vmem:[%s219 + $0x178] sm:$0xff]
        %v278 = vld [vmem:[%s219 + $0x180] sm:$0xff]
        %v279 = vld [vmem:[%s219 + $0x188] sm:$0xff]
        %v280 = vld [vmem:[%s219 + $0x190] sm:$0xff]
        %v281 = vld [vmem:[%s219 + $0x198] sm:$0xff]
        %v282 = vld [vmem:[%s219 + $0x1a0] sm:$0xff]
        %v283 = vld [vmem:[%s219 + $0x1a8] sm:$0xff]
        %v284 = vld [vmem:[%s219 + $0x1b0] sm:$0xff]
        %v285 = vld [vmem:[%s219 + $0x1b8] sm:$0xff]
        %v286 = vld [vmem:[%s219 + $0x1c0] sm:$0xff]
        %v287 = vld [vmem:[%s219 + $0x1c8] sm:$0xff]
        %v288 = vld [vmem:[%s219 + $0x1d0] sm:$0xff]
        %v289 = vld [vmem:[%s219 + $0x1d8] sm:$0xff]
        %v290 = vld [vmem:[%s219 + $0x1e0] sm:$0xff]
        %v291 = vld [vmem:[%s219 + $0x1e8] sm:$0xff]
        %v292 = vld [vmem:[%s219 + $0x1f0] sm:$0xff]
        %v293 = vld [vmem:[%s219 + $0x1f8] sm:$0xff]
        %v294 = vld [vmem:[%s219 + $0x200] sm:$0xff]
        %v295 = vld [vmem:[%s219 + $0x208] sm:$0xff]
        %v296 = vld [vmem:[%s219 + $0x210] sm:$0xff]
        %v297 = vld [vmem:[%s219 + $0x218] sm:$0xff]
        %v298 = vld [vmem:[%s219 + $0x220] sm:$0xff]
        %v299 = vld [vmem:[%s219 + $0x228] sm:$0xff]
        %v300 = vld [vmem:[%s219 + $0x230] sm:$0xff]
        %v301 = vld [vmem:[%s219 + $0x238] sm:$0xff]
        %v302 = vld [vmem:[%s219 + $0x240] sm:$0xff]
        %v303 = vld [vmem:[%s219 + $0x248] sm:$0xff]
        %v304 = vld [vmem:[%s219 + $0x250] sm:$0xff]
        %v305 = vld [vmem:[%s219 + $0x258] sm:$0xff]
        %v306 = vld [vmem:[%s219 + $0x260] sm:$0xff]
        %v307 = vld [vmem:[%s219 + $0x268] sm:$0xff]
        %v308 = vld [vmem:[%s219 + $0x270] sm:$0xff]
        %v309 = vld [vmem:[%s219 + $0x278] sm:$0xff]
        %v310 = vld [vmem:[%s219 + $0x280] sm:$0xff]
        %v311 = vld [vmem:[%s219 + $0x288] sm:$0xff]
        %v312 = vld [vmem:[%s219 + $0x290] sm:$0xff]
        %v313 = vld [vmem:[%s219 + $0x298] sm:$0xff]
        %v314 = vld [vmem:[%s219 + $0x2a0] sm:$0xff]
        %v315 = vld [vmem:[%s219 + $0x2a8] sm:$0xff]
        %v316 = vld [vmem:[%s219 + $0x2b0] sm:$0xff]
        %v317 = vld [vmem:[%s219 + $0x2b8] sm:$0xff]
        %v318 = vld [vmem:[%s219 + $0x2c0] sm:$0xff]
        %v319 = vld [vmem:[%s219 + $0x2c8] sm:$0xff]
        %v320 = vld [vmem:[%s219 + $0x2d0] sm:$0xff]
        %v321 = vld [vmem:[%s219 + $0x2d8] sm:$0xff]
        %v322 = vld [vmem:[%s219 + $0x2e0] sm:$0xff]
        %v323 = vld [vmem:[%s219 + $0x2e8] sm:$0xff]
        %v324 = vld [vmem:[%s219 + $0x2f0] sm:$0xff]
        %v325 = vld [vmem:[%s219 + $0x2f8] sm:$0xff]
        %v326 = vld [vmem:[%s219 + $0x300] sm:$0xff]
        %v327 = vld [vmem:[%s219 + $0x308] sm:$0xff]
        %v328 = vld [vmem:[%s219 + $0x310] sm:$0xff]
        %v329 = vld [vmem:[%s219 + $0x318] sm:$0xff]
        %v330 = vld [vmem:[%s219 + $0x320] sm:$0xff]
        %v331 = vld [vmem:[%s219 + $0x328] sm:$0xff]
        %v332 = vld [vmem:[%s219 + $0x330] sm:$0xff]
        %v333 = vld [vmem:[%s219 + $0x338] sm:$0xff]
        %v334 = vld [vmem:[%s219 + $0x340] sm:$0xff]
        %v335 = vld [vmem:[%s219 + $0x348] sm:$0xff]
        %v336 = vld [vmem:[%s219 + $0x350] sm:$0xff]
        %v337 = vld [vmem:[%s219 + $0x358] sm:$0xff]
        %v338 = vld [vmem:[%s219 + $0x360] sm:$0xff]
        %v339 = vld [vmem:[%s219 + $0x368] sm:$0xff]
        %v340 = vld [vmem:[%s219 + $0x370] sm:$0xff]
        %v341 = vld [vmem:[%s219 + $0x378] sm:$0xff]
        %v342 = vld [vmem:[%s219 + $0x380] sm:$0xff]
        %v343 = vld [vmem:[%s219 + $0x388] sm:$0xff]
        %v344 = vld [vmem:[%s219 + $0x390] sm:$0xff]
        %v345 = vld [vmem:[%s219 + $0x398] sm:$0xff]
        %v346 = vld [vmem:[%s219 + $0x3a0] sm:$0xff]
        %v347 = vld [vmem:[%s219 + $0x3a8] sm:$0xff]
        %v348 = vld [vmem:[%s219 + $0x3b0] sm:$0xff]
        %v349 = vld [vmem:[%s219 + $0x3b8] sm:$0xff]
        %v350 = vld [vmem:[%s219 + $0x3c0] sm:$0xff]
        %v351 = vld [vmem:[%s219 + $0x3c8] sm:$0xff]
        %v352 = vld [vmem:[%s219 + $0x3d0] sm:$0xff]
        %v353 = vld [vmem:[%s219 + $0x3d8] sm:$0xff]
        %v354 = vld [vmem:[%s219 + $0x3e0] sm:$0xff]
        %v355 = vld [vmem:[%s219 + $0x3e8] sm:$0xff]
        %v356 = vld [vmem:[%s219 + $0x3f0] sm:$0xff]
        %v357 = vld [vmem:[%s219 + $0x3f8] sm:$0xff]
        %v358 = vld [vmem:[%s227] sm:$0xff]
        %v359 = vld [vmem:[%s227 + $0x8] sm:$0xff]
        %v360 = vld [vmem:[%s227 + $0x10] sm:$0xff]
        %v361 = vld [vmem:[%s227 + $0x18] sm:$0xff]
        %v362 = vld [vmem:[%s227 + $0x20] sm:$0xff]
        %v363 = vld [vmem:[%s227 + $0x28] sm:$0xff]
        %v364 = vld [vmem:[%s227 + $0x30] sm:$0xff]
        %v365 = vld [vmem:[%s227 + $0x38] sm:$0xff]
        %v366 = vld [vmem:[%s227 + $0x40] sm:$0xff]
        %v367 = vld [vmem:[%s227 + $0x48] sm:$0xff]
        %v368 = vld [vmem:[%s227 + $0x50] sm:$0xff]
        %v369 = vld [vmem:[%s227 + $0x58] sm:$0xff]
        %v370 = vld [vmem:[%s227 + $0x60] sm:$0xff]
        %v371 = vld [vmem:[%s227 + $0x68] sm:$0xff]
        %v372 = vld [vmem:[%s227 + $0x70] sm:$0xff]
        %v373 = vld [vmem:[%s227 + $0x78] sm:$0xff]
        %v374 = vld [vmem:[%s227 + $0x80] sm:$0xff]
        %v375 = vld [vmem:[%s227 + $0x88] sm:$0xff]
        %v376 = vld [vmem:[%s227 + $0x90] sm:$0xff]
        %v377 = vld [vmem:[%s227 + $0x98] sm:$0xff]
        %v378 = vld [vmem:[%s227 + $0xa0] sm:$0xff]
        %v379 = vld [vmem:[%s227 + $0xa8] sm:$0xff]
        %v380 = vld [vmem:[%s227 + $0xb0] sm:$0xff]
        %v381 = vld [vmem:[%s227 + $0xb8] sm:$0xff]
        %v382 = vld [vmem:[%s227 + $0xc0] sm:$0xff]
        %v383 = vld [vmem:[%s227 + $0xc8] sm:$0xff]
        %v384 = vld [vmem:[%s227 + $0xd0] sm:$0xff]
        %v385 = vld [vmem:[%s227 + $0xd8] sm:$0xff]
        %v386 = vld [vmem:[%s227 + $0xe0] sm:$0xff]
        %v387 = vld [vmem:[%s227 + $0xe8] sm:$0xff]
        %v388 = vld [vmem:[%s227 + $0xf0] sm:$0xff]
        %v389 = vld [vmem:[%s227 + $0xf8] sm:$0xff]
        %v390 = vld [vmem:[%s227 + $0x100] sm:$0xff]
        %v391 = vld [vmem:[%s227 + $0x108] sm:$0xff]
        %v392 = vld [vmem:[%s227 + $0x110] sm:$0xff]
        %v393 = vld [vmem:[%s227 + $0x118] sm:$0xff]
        %v394 = vld [vmem:[%s227 + $0x120] sm:$0xff]
        %v395 = vld [vmem:[%s227 + $0x128] sm:$0xff]
        %v396 = vld [vmem:[%s227 + $0x130] sm:$0xff]
        %v397 = vld [vmem:[%s227 + $0x138] sm:$0xff]
        %v398 = vld [vmem:[%s227 + $0x140] sm:$0xff]
        %v399 = vld [vmem:[%s227 + $0x148] sm:$0xff]
        %v400 = vld [vmem:[%s227 + $0x150] sm:$0xff]
        %v401 = vld [vmem:[%s227 + $0x158] sm:$0xff]
        %v402 = vld [vmem:[%s227 + $0x160] sm:$0xff]
        %v403 = vld [vmem:[%s227 + $0x168] sm:$0xff]
        %v404 = vld [vmem:[%s227 + $0x170] sm:$0xff]
        %v405 = vld [vmem:[%s227 + $0x178] sm:$0xff]
        %v406 = vld [vmem:[%s227 + $0x180] sm:$0xff]
        %v407 = vld [vmem:[%s227 + $0x188] sm:$0xff]
        %v408 = vld [vmem:[%s227 + $0x190] sm:$0xff]
        %v409 = vld [vmem:[%s227 + $0x198] sm:$0xff]
        %v410 = vld [vmem:[%s227 + $0x1a0] sm:$0xff]
        %v411 = vld [vmem:[%s227 + $0x1a8] sm:$0xff]
        %v412 = vld [vmem:[%s227 + $0x1b0] sm:$0xff]
        %v413 = vld [vmem:[%s227 + $0x1b8] sm:$0xff]
        %v414 = vld [vmem:[%s227 + $0x1c0] sm:$0xff]
        %v415 = vld [vmem:[%s227 + $0x1c8] sm:$0xff]
        %v416 = vld [vmem:[%s227 + $0x1d0] sm:$0xff]
        %v417 = vld [vmem:[%s227 + $0x1d8] sm:$0xff]
        %v418 = vld [vmem:[%s227 + $0x1e0] sm:$0xff]
        %v419 = vld [vmem:[%s227 + $0x1e8] sm:$0xff]
        %v420 = vld [vmem:[%s227 + $0x1f0] sm:$0xff]
        %v421 = vld [vmem:[%s227 + $0x1f8] sm:$0xff]
        %v422 = vld [vmem:[%s227 + $0x200] sm:$0xff]
        %v423 = vld [vmem:[%s227 + $0x208] sm:$0xff]
        %v424 = vld [vmem:[%s227 + $0x210] sm:$0xff]
        %v425 = vld [vmem:[%s227 + $0x218] sm:$0xff]
        %v426 = vld [vmem:[%s227 + $0x220] sm:$0xff]
        %v427 = vld [vmem:[%s227 + $0x228] sm:$0xff]
        %v428 = vld [vmem:[%s227 + $0x230] sm:$0xff]
        %v429 = vld [vmem:[%s227 + $0x238] sm:$0xff]
        %v430 = vld [vmem:[%s227 + $0x240] sm:$0xff]
        %v431 = vld [vmem:[%s227 + $0x248] sm:$0xff]
        %v432 = vld [vmem:[%s227 + $0x250] sm:$0xff]
        %v433 = vld [vmem:[%s227 + $0x258] sm:$0xff]
        %v434 = vld [vmem:[%s227 + $0x260] sm:$0xff]
        %v435 = vld [vmem:[%s227 + $0x268] sm:$0xff]
        %v436 = vld [vmem:[%s227 + $0x270] sm:$0xff]
        %v437 = vld [vmem:[%s227 + $0x278] sm:$0xff]
        %v438 = vld [vmem:[%s227 + $0x280] sm:$0xff]
        %v439 = vld [vmem:[%s227 + $0x288] sm:$0xff]
        %v440 = vld [vmem:[%s227 + $0x290] sm:$0xff]
        %v441 = vld [vmem:[%s227 + $0x298] sm:$0xff]
        %v442 = vld [vmem:[%s227 + $0x2a0] sm:$0xff]
        %v443 = vld [vmem:[%s227 + $0x2a8] sm:$0xff]
        %v444 = vld [vmem:[%s227 + $0x2b0] sm:$0xff]
        %v445 = vld [vmem:[%s227 + $0x2b8] sm:$0xff]
        %v446 = vld [vmem:[%s227 + $0x2c0] sm:$0xff]
        %v447 = vld [vmem:[%s227 + $0x2c8] sm:$0xff]
        %v448 = vld [vmem:[%s227 + $0x2d0] sm:$0xff]
        %v449 = vld [vmem:[%s227 + $0x2d8] sm:$0xff]
        %v450 = vld [vmem:[%s227 + $0x2e0] sm:$0xff]
        %v451 = vld [vmem:[%s227 + $0x2e8] sm:$0xff]
        %v452 = vld [vmem:[%s227 + $0x2f0] sm:$0xff]
        %v453 = vld [vmem:[%s227 + $0x2f8] sm:$0xff]
        %v454 = vld [vmem:[%s227 + $0x300] sm:$0xff]
        %v455 = vld [vmem:[%s227 + $0x308] sm:$0xff]
        %v456 = vld [vmem:[%s227 + $0x310] sm:$0xff]
        %v457 = vld [vmem:[%s227 + $0x318] sm:$0xff]
        %v458 = vld [vmem:[%s227 + $0x320] sm:$0xff]
        %v459 = vld [vmem:[%s227 + $0x328] sm:$0xff]
        %v460 = vld [vmem:[%s227 + $0x330] sm:$0xff]
        %v461 = vld [vmem:[%s227 + $0x338] sm:$0xff]
        %v462 = vld [vmem:[%s227 + $0x340] sm:$0xff]
        %v463 = vld [vmem:[%s227 + $0x348] sm:$0xff]
        %v464 = vld [vmem:[%s227 + $0x350] sm:$0xff]
        %v465 = vld [vmem:[%s227 + $0x358] sm:$0xff]
        %v466 = vld [vmem:[%s227 + $0x360] sm:$0xff]
        %v467 = vld [vmem:[%s227 + $0x368] sm:$0xff]
        %v468 = vld [vmem:[%s227 + $0x370] sm:$0xff]
        %v469 = vld [vmem:[%s227 + $0x378] sm:$0xff]
        %v470 = vld [vmem:[%s227 + $0x380] sm:$0xff]
        %v471 = vld [vmem:[%s227 + $0x388] sm:$0xff]
        %v472 = vld [vmem:[%s227 + $0x390] sm:$0xff]
        %v473 = vld [vmem:[%s227 + $0x398] sm:$0xff]
        %v474 = vld [vmem:[%s227 + $0x3a0] sm:$0xff]
        %v475 = vld [vmem:[%s227 + $0x3a8] sm:$0xff]
        %v476 = vld [vmem:[%s227 + $0x3b0] sm:$0xff]
        %v477 = vld [vmem:[%s227 + $0x3b8] sm:$0xff]
        %v478 = vld [vmem:[%s227 + $0x3c0] sm:$0xff]
        %v479 = vld [vmem:[%s227 + $0x3c8] sm:$0xff]
        %v480 = vld [vmem:[%s227 + $0x3d0] sm:$0xff]
        %v481 = vld [vmem:[%s227 + $0x3d8] sm:$0xff]
        %v482 = vld [vmem:[%s227 + $0x3e0] sm:$0xff]
        %v483 = vld [vmem:[%s227 + $0x3e8] sm:$0xff]
        %v484 = vld [vmem:[%s227 + $0x3f0] sm:$0xff]
        %v485 = vld [vmem:[%s227 + $0x3f8] sm:$0xff]
        %v486 = vlaneseq
        %v487 = vand.u32 %v486, 127
        %488 = vset.pattern.permute.xlu0 0
        %489 = vperm.xlu0 %488, %v358
        %v490 = vpop.permute.xlu0 %489
        %491 = vset.pattern.permute.xlu0 0
        %492 = vperm.xlu0 %491, %v359
        %v493 = vpop.permute.xlu0 %492
        %494 = vset.pattern.permute.xlu0 0
        %495 = vperm.xlu0 %494, %v360
        %v496 = vpop.permute.xlu0 %495
        %497 = vset.pattern.permute.xlu0 0
        %498 = vperm.xlu0 %497, %v361
        %v499 = vpop.permute.xlu0 %498
        %500 = vset.pattern.permute.xlu0 0
        %501 = vperm.xlu0 %500, %v362
        %v502 = vpop.permute.xlu0 %501
        %503 = vset.pattern.permute.xlu0 0
        %504 = vperm.xlu0 %503, %v363
        %v505 = vpop.permute.xlu0 %504
        %506 = vset.pattern.permute.xlu0 0
        %507 = vperm.xlu0 %506, %v364
        %v508 = vpop.permute.xlu0 %507
        %509 = vset.pattern.permute.xlu0 0
        %510 = vperm.xlu0 %509, %v365
        %v511 = vpop.permute.xlu0 %510
        %512 = vset.pattern.permute.xlu0 0
        %513 = vperm.xlu0 %512, %v366
        %v514 = vpop.permute.xlu0 %513
        %515 = vset.pattern.permute.xlu0 0
        %516 = vperm.xlu0 %515, %v367
        %v517 = vpop.permute.xlu0 %516
        %518 = vset.pattern.permute.xlu0 0
        %519 = vperm.xlu0 %518, %v368
        %v520 = vpop.permute.xlu0 %519
        %521 = vset.pattern.permute.xlu0 0
        %522 = vperm.xlu0 %521, %v369
        %v523 = vpop.permute.xlu0 %522
        %524 = vset.pattern.permute.xlu0 0
        %525 = vperm.xlu0 %524, %v370
        %v526 = vpop.permute.xlu0 %525
        %527 = vset.pattern.permute.xlu0 0
        %528 = vperm.xlu0 %527, %v371
        %v529 = vpop.permute.xlu0 %528
        %530 = vset.pattern.permute.xlu0 0
        %531 = vperm.xlu0 %530, %v372
        %v532 = vpop.permute.xlu0 %531
        %533 = vset.pattern.permute.xlu0 0
        %534 = vperm.xlu0 %533, %v373
        %v535 = vpop.permute.xlu0 %534
        %536 = vset.pattern.permute.xlu0 0
        %537 = vperm.xlu0 %536, %v374
        %v538 = vpop.permute.xlu0 %537
        %539 = vset.pattern.permute.xlu0 0
        %540 = vperm.xlu0 %539, %v375
        %v541 = vpop.permute.xlu0 %540
        %542 = vset.pattern.permute.xlu0 0
        %543 = vperm.xlu0 %542, %v376
        %v544 = vpop.permute.xlu0 %543
        %545 = vset.pattern.permute.xlu0 0
        %546 = vperm.xlu0 %545, %v377
        %v547 = vpop.permute.xlu0 %546
        %548 = vset.pattern.permute.xlu0 0
        %549 = vperm.xlu0 %548, %v378
        %v550 = vpop.permute.xlu0 %549
        %551 = vset.pattern.permute.xlu0 0
        %552 = vperm.xlu0 %551, %v379
        %v553 = vpop.permute.xlu0 %552
        %554 = vset.pattern.permute.xlu0 0
        %555 = vperm.xlu0 %554, %v380
        %v556 = vpop.permute.xlu0 %555
        %557 = vset.pattern.permute.xlu0 0
        %558 = vperm.xlu0 %557, %v381
        %v559 = vpop.permute.xlu0 %558
        %560 = vset.pattern.permute.xlu0 0
        %561 = vperm.xlu0 %560, %v382
        %v562 = vpop.permute.xlu0 %561
        %563 = vset.pattern.permute.xlu0 0
        %564 = vperm.xlu0 %563, %v383
        %v565 = vpop.permute.xlu0 %564
        %566 = vset.pattern.permute.xlu0 0
        %567 = vperm.xlu0 %566, %v384
        %v568 = vpop.permute.xlu0 %567
        %569 = vset.pattern.permute.xlu0 0
        %570 = vperm.xlu0 %569, %v385
        %v571 = vpop.permute.xlu0 %570
        %572 = vset.pattern.permute.xlu0 0
        %573 = vperm.xlu0 %572, %v386
        %v574 = vpop.permute.xlu0 %573
        %575 = vset.pattern.permute.xlu0 0
        %576 = vperm.xlu0 %575, %v387
        %v577 = vpop.permute.xlu0 %576
        %578 = vset.pattern.permute.xlu0 0
        %579 = vperm.xlu0 %578, %v388
        %v580 = vpop.permute.xlu0 %579
        %581 = vset.pattern.permute.xlu0 0
        %582 = vperm.xlu0 %581, %v389
        %v583 = vpop.permute.xlu0 %582
        %584 = vset.pattern.permute.xlu0 0
        %585 = vperm.xlu0 %584, %v390
        %v586 = vpop.permute.xlu0 %585
        %587 = vset.pattern.permute.xlu0 0
        %588 = vperm.xlu0 %587, %v391
        %v589 = vpop.permute.xlu0 %588
        %590 = vset.pattern.permute.xlu0 0
        %591 = vperm.xlu0 %590, %v392
        %v592 = vpop.permute.xlu0 %591
        %593 = vset.pattern.permute.xlu0 0
        %594 = vperm.xlu0 %593, %v393
        %v595 = vpop.permute.xlu0 %594
        %596 = vset.pattern.permute.xlu0 0
        %597 = vperm.xlu0 %596, %v394
        %v598 = vpop.permute.xlu0 %597
        %599 = vset.pattern.permute.xlu0 0
        %600 = vperm.xlu0 %599, %v395
        %v601 = vpop.permute.xlu0 %600
        %602 = vset.pattern.permute.xlu0 0
        %603 = vperm.xlu0 %602, %v396
        %v604 = vpop.permute.xlu0 %603
        %605 = vset.pattern.permute.xlu0 0
        %606 = vperm.xlu0 %605, %v397
        %v607 = vpop.permute.xlu0 %606
        %608 = vset.pattern.permute.xlu0 0
        %609 = vperm.xlu0 %608, %v398
        %v610 = vpop.permute.xlu0 %609
        %611 = vset.pattern.permute.xlu0 0
        %612 = vperm.xlu0 %611, %v399
        %v613 = vpop.permute.xlu0 %612
        %614 = vset.pattern.permute.xlu0 0
        %615 = vperm.xlu0 %614, %v400
        %v616 = vpop.permute.xlu0 %615
        %617 = vset.pattern.permute.xlu0 0
        %618 = vperm.xlu0 %617, %v401
        %v619 = vpop.permute.xlu0 %618
        %620 = vset.pattern.permute.xlu0 0
        %621 = vperm.xlu0 %620, %v402
        %v622 = vpop.permute.xlu0 %621
        %623 = vset.pattern.permute.xlu0 0
        %624 = vperm.xlu0 %623, %v403
        %v625 = vpop.permute.xlu0 %624
        %626 = vset.pattern.permute.xlu0 0
        %627 = vperm.xlu0 %626, %v404
        %v628 = vpop.permute.xlu0 %627
        %629 = vset.pattern.permute.xlu0 0
        %630 = vperm.xlu0 %629, %v405
        %v631 = vpop.permute.xlu0 %630
        %632 = vset.pattern.permute.xlu0 0
        %633 = vperm.xlu0 %632, %v406
        %v634 = vpop.permute.xlu0 %633
        %635 = vset.pattern.permute.xlu0 0
        %636 = vperm.xlu0 %635, %v407
        %v637 = vpop.permute.xlu0 %636
        %638 = vset.pattern.permute.xlu0 0
        %639 = vperm.xlu0 %638, %v408
        %v640 = vpop.permute.xlu0 %639
        %641 = vset.pattern.permute.xlu0 0
        %642 = vperm.xlu0 %641, %v409
        %v643 = vpop.permute.xlu0 %642
        %644 = vset.pattern.permute.xlu0 0
        %645 = vperm.xlu0 %644, %v410
        %v646 = vpop.permute.xlu0 %645
        %647 = vset.pattern.permute.xlu0 0
        %648 = vperm.xlu0 %647, %v411
        %v649 = vpop.permute.xlu0 %648
        %650 = vset.pattern.permute.xlu0 0
        %651 = vperm.xlu0 %650, %v412
        %v652 = vpop.permute.xlu0 %651
        %653 = vset.pattern.permute.xlu0 0
        %654 = vperm.xlu0 %653, %v413
        %v655 = vpop.permute.xlu0 %654
        %656 = vset.pattern.permute.xlu0 0
        %657 = vperm.xlu0 %656, %v414
        %v658 = vpop.permute.xlu0 %657
        %659 = vset.pattern.permute.xlu0 0
        %660 = vperm.xlu0 %659, %v415
        %v661 = vpop.permute.xlu0 %660
        %662 = vset.pattern.permute.xlu0 0
        %663 = vperm.xlu0 %662, %v416
        %v664 = vpop.permute.xlu0 %663
        %665 = vset.pattern.permute.xlu0 0
        %666 = vperm.xlu0 %665, %v417
        %v667 = vpop.permute.xlu0 %666
        %668 = vset.pattern.permute.xlu0 0
        %669 = vperm.xlu0 %668, %v418
        %v670 = vpop.permute.xlu0 %669
        %671 = vset.pattern.permute.xlu0 0
        %672 = vperm.xlu0 %671, %v419
        %v673 = vpop.permute.xlu0 %672
        %674 = vset.pattern.permute.xlu0 0
        %675 = vperm.xlu0 %674, %v420
        %v676 = vpop.permute.xlu0 %675
        %677 = vset.pattern.permute.xlu0 0
        %678 = vperm.xlu0 %677, %v421
        %v679 = vpop.permute.xlu0 %678
        %680 = vset.pattern.permute.xlu0 0
        %681 = vperm.xlu0 %680, %v422
        %v682 = vpop.permute.xlu0 %681
        %683 = vset.pattern.permute.xlu0 0
        %684 = vperm.xlu0 %683, %v423
        %v685 = vpop.permute.xlu0 %684
        %686 = vset.pattern.permute.xlu0 0
        %687 = vperm.xlu0 %686, %v424
        %v688 = vpop.permute.xlu0 %687
        %689 = vset.pattern.permute.xlu0 0
        %690 = vperm.xlu0 %689, %v425
        %v691 = vpop.permute.xlu0 %690
        %692 = vset.pattern.permute.xlu0 0
        %693 = vperm.xlu0 %692, %v426
        %v694 = vpop.permute.xlu0 %693
        %695 = vset.pattern.permute.xlu0 0
        %696 = vperm.xlu0 %695, %v427
        %v697 = vpop.permute.xlu0 %696
        %698 = vset.pattern.permute.xlu0 0
        %699 = vperm.xlu0 %698, %v428
        %v700 = vpop.permute.xlu0 %699
        %701 = vset.pattern.permute.xlu0 0
        %702 = vperm.xlu0 %701, %v429
        %v703 = vpop.permute.xlu0 %702
        %704 = vset.pattern.permute.xlu0 0
        %705 = vperm.xlu0 %704, %v430
        %v706 = vpop.permute.xlu0 %705
        %707 = vset.pattern.permute.xlu0 0
        %708 = vperm.xlu0 %707, %v431
        %v709 = vpop.permute.xlu0 %708
        %710 = vset.pattern.permute.xlu0 0
        %711 = vperm.xlu0 %710, %v432
        %v712 = vpop.permute.xlu0 %711
        %713 = vset.pattern.permute.xlu0 0
        %714 = vperm.xlu0 %713, %v433
        %v715 = vpop.permute.xlu0 %714
        %716 = vset.pattern.permute.xlu0 0
        %717 = vperm.xlu0 %716, %v434
        %v718 = vpop.permute.xlu0 %717
        %719 = vset.pattern.permute.xlu0 0
        %720 = vperm.xlu0 %719, %v435
        %v721 = vpop.permute.xlu0 %720
        %722 = vset.pattern.permute.xlu0 0
        %723 = vperm.xlu0 %722, %v436
        %v724 = vpop.permute.xlu0 %723
        %725 = vset.pattern.permute.xlu0 0
        %726 = vperm.xlu0 %725, %v437
        %v727 = vpop.permute.xlu0 %726
        %728 = vset.pattern.permute.xlu0 0
        %729 = vperm.xlu0 %728, %v438
        %v730 = vpop.permute.xlu0 %729
        %731 = vset.pattern.permute.xlu0 0
        %732 = vperm.xlu0 %731, %v439
        %v733 = vpop.permute.xlu0 %732
        %734 = vset.pattern.permute.xlu0 0
        %735 = vperm.xlu0 %734, %v440
        %v736 = vpop.permute.xlu0 %735
        %737 = vset.pattern.permute.xlu0 0
        %738 = vperm.xlu0 %737, %v441
        %v739 = vpop.permute.xlu0 %738
        %740 = vset.pattern.permute.xlu0 0
        %741 = vperm.xlu0 %740, %v442
        %v742 = vpop.permute.xlu0 %741
        %743 = vset.pattern.permute.xlu0 0
        %744 = vperm.xlu0 %743, %v443
        %v745 = vpop.permute.xlu0 %744
        %746 = vset.pattern.permute.xlu0 0
        %747 = vperm.xlu0 %746, %v444
        %v748 = vpop.permute.xlu0 %747
        %749 = vset.pattern.permute.xlu0 0
        %750 = vperm.xlu0 %749, %v445
        %v751 = vpop.permute.xlu0 %750
        %752 = vset.pattern.permute.xlu0 0
        %753 = vperm.xlu0 %752, %v446
        %v754 = vpop.permute.xlu0 %753
        %755 = vset.pattern.permute.xlu0 0
        %756 = vperm.xlu0 %755, %v447
        %v757 = vpop.permute.xlu0 %756
        %758 = vset.pattern.permute.xlu0 0
        %759 = vperm.xlu0 %758, %v448
        %v760 = vpop.permute.xlu0 %759
        %761 = vset.pattern.permute.xlu0 0
        %762 = vperm.xlu0 %761, %v449
        %v763 = vpop.permute.xlu0 %762
        %764 = vset.pattern.permute.xlu0 0
        %765 = vperm.xlu0 %764, %v450
        %v766 = vpop.permute.xlu0 %765
        %767 = vset.pattern.permute.xlu0 0
        %768 = vperm.xlu0 %767, %v451
        %v769 = vpop.permute.xlu0 %768
        %770 = vset.pattern.permute.xlu0 0
        %771 = vperm.xlu0 %770, %v452
        %v772 = vpop.permute.xlu0 %771
        %773 = vset.pattern.permute.xlu0 0
        %774 = vperm.xlu0 %773, %v453
        %v775 = vpop.permute.xlu0 %774
        %776 = vset.pattern.permute.xlu0 0
        %777 = vperm.xlu0 %776, %v454
        %v778 = vpop.permute.xlu0 %777
        %779 = vset.pattern.permute.xlu0 0
        %780 = vperm.xlu0 %779, %v455
        %v781 = vpop.permute.xlu0 %780
        %782 = vset.pattern.permute.xlu0 0
        %783 = vperm.xlu0 %782, %v456
        %v784 = vpop.permute.xlu0 %783
        %785 = vset.pattern.permute.xlu0 0
        %786 = vperm.xlu0 %785, %v457
        %v787 = vpop.permute.xlu0 %786
        %788 = vset.pattern.permute.xlu0 0
        %789 = vperm.xlu0 %788, %v458
        %v790 = vpop.permute.xlu0 %789
        %791 = vset.pattern.permute.xlu0 0
        %792 = vperm.xlu0 %791, %v459
        %v793 = vpop.permute.xlu0 %792
        %794 = vset.pattern.permute.xlu0 0
        %795 = vperm.xlu0 %794, %v460
        %v796 = vpop.permute.xlu0 %795
        %797 = vset.pattern.permute.xlu0 0
        %798 = vperm.xlu0 %797, %v461
        %v799 = vpop.permute.xlu0 %798
        %800 = vset.pattern.permute.xlu0 0
        %801 = vperm.xlu0 %800, %v462
        %v802 = vpop.permute.xlu0 %801
        %803 = vset.pattern.permute.xlu0 0
        %804 = vperm.xlu0 %803, %v463
        %v805 = vpop.permute.xlu0 %804
        %806 = vset.pattern.permute.xlu0 0
        %807 = vperm.xlu0 %806, %v464
        %v808 = vpop.permute.xlu0 %807
        %809 = vset.pattern.permute.xlu0 0
        %810 = vperm.xlu0 %809, %v465
        %v811 = vpop.permute.xlu0 %810
        %812 = vset.pattern.permute.xlu0 0
        %813 = vperm.xlu0 %812, %v466
        %v814 = vpop.permute.xlu0 %813
        %815 = vset.pattern.permute.xlu0 0
        %816 = vperm.xlu0 %815, %v467
        %v817 = vpop.permute.xlu0 %816
        %818 = vset.pattern.permute.xlu0 0
        %819 = vperm.xlu0 %818, %v468
        %v820 = vpop.permute.xlu0 %819
        %821 = vset.pattern.permute.xlu0 0
        %822 = vperm.xlu0 %821, %v469
        %v823 = vpop.permute.xlu0 %822
        %824 = vset.pattern.permute.xlu0 0
        %825 = vperm.xlu0 %824, %v470
        %v826 = vpop.permute.xlu0 %825
        %827 = vset.pattern.permute.xlu0 0
        %828 = vperm.xlu0 %827, %v471
        %v829 = vpop.permute.xlu0 %828
        %830 = vset.pattern.permute.xlu0 0
        %831 = vperm.xlu0 %830, %v472
        %v832 = vpop.permute.xlu0 %831
        %833 = vset.pattern.permute.xlu0 0
        %834 = vperm.xlu0 %833, %v473
        %v835 = vpop.permute.xlu0 %834
        %836 = vset.pattern.permute.xlu0 0
        %837 = vperm.xlu0 %836, %v474
        %v838 = vpop.permute.xlu0 %837
        %839 = vset.pattern.permute.xlu0 0
        %840 = vperm.xlu0 %839, %v475
        %v841 = vpop.permute.xlu0 %840
        %842 = vset.pattern.permute.xlu0 0
        %843 = vperm.xlu0 %842, %v476
        %v844 = vpop.permute.xlu0 %843
        %845 = vset.pattern.permute.xlu0 0
        %846 = vperm.xlu0 %845, %v477
        %v847 = vpop.permute.xlu0 %846
        %848 = vset.pattern.permute.xlu0 0
        %849 = vperm.xlu0 %848, %v478
        %v850 = vpop.permute.xlu0 %849
        %851 = vset.pattern.permute.xlu0 0
        %852 = vperm.xlu0 %851, %v479
        %v853 = vpop.permute.xlu0 %852
        %854 = vset.pattern.permute.xlu0 0
        %855 = vperm.xlu0 %854, %v480
        %v856 = vpop.permute.xlu0 %855
        %857 = vset.pattern.permute.xlu0 0
        %858 = vperm.xlu0 %857, %v481
        %v859 = vpop.permute.xlu0 %858
        %860 = vset.pattern.permute.xlu0 0
        %861 = vperm.xlu0 %860, %v482
        %v862 = vpop.permute.xlu0 %861
        %863 = vset.pattern.permute.xlu0 0
        %864 = vperm.xlu0 %863, %v483
        %v865 = vpop.permute.xlu0 %864
        %866 = vset.pattern.permute.xlu0 0
        %867 = vperm.xlu0 %866, %v484
        %v868 = vpop.permute.xlu0 %867
        %869 = vset.pattern.permute.xlu0 0
        %870 = vperm.xlu0 %869, %v485
        %v871 = vpop.permute.xlu0 %870
        %vm872 = vcmp.eq.s32.totalorder %v487, %v490
        %vm873 = vcmp.eq.s32.totalorder %v487, %v493
        %vm874 = vcmp.eq.s32.totalorder %v487, %v496
        %vm875 = vcmp.eq.s32.totalorder %v487, %v499
        %vm876 = vcmp.eq.s32.totalorder %v487, %v502
        %vm877 = vcmp.eq.s32.totalorder %v487, %v505
        %vm878 = vcmp.eq.s32.totalorder %v487, %v508
        %vm879 = vcmp.eq.s32.totalorder %v487, %v511
        %vm880 = vcmp.eq.s32.totalorder %v487, %v514
        %vm881 = vcmp.eq.s32.totalorder %v487, %v517
        %vm882 = vcmp.eq.s32.totalorder %v487, %v520
        %vm883 = vcmp.eq.s32.totalorder %v487, %v523
        %vm884 = vcmp.eq.s32.totalorder %v487, %v526
        %vm885 = vcmp.eq.s32.totalorder %v487, %v529
        %vm886 = vcmp.eq.s32.totalorder %v487, %v532
        %vm887 = vcmp.eq.s32.totalorder %v487, %v535
        %vm888 = vcmp.eq.s32.totalorder %v487, %v538
        %vm889 = vcmp.eq.s32.totalorder %v487, %v541
        %vm890 = vcmp.eq.s32.totalorder %v487, %v544
        %vm891 = vcmp.eq.s32.totalorder %v487, %v547
        %vm892 = vcmp.eq.s32.totalorder %v487, %v550
        %vm893 = vcmp.eq.s32.totalorder %v487, %v553
        %vm894 = vcmp.eq.s32.totalorder %v487, %v556
        %vm895 = vcmp.eq.s32.totalorder %v487, %v559
        %vm896 = vcmp.eq.s32.totalorder %v487, %v562
        %vm897 = vcmp.eq.s32.totalorder %v487, %v565
        %vm898 = vcmp.eq.s32.totalorder %v487, %v568
        %vm899 = vcmp.eq.s32.totalorder %v487, %v571
        %vm900 = vcmp.eq.s32.totalorder %v487, %v574
        %vm901 = vcmp.eq.s32.totalorder %v487, %v577
        %vm902 = vcmp.eq.s32.totalorder %v487, %v580
        %vm903 = vcmp.eq.s32.totalorder %v487, %v583
        %vm904 = vcmp.eq.s32.totalorder %v487, %v586
        %vm905 = vcmp.eq.s32.totalorder %v487, %v589
        %vm906 = vcmp.eq.s32.totalorder %v487, %v592
        %vm907 = vcmp.eq.s32.totalorder %v487, %v595
        %vm908 = vcmp.eq.s32.totalorder %v487, %v598
        %vm909 = vcmp.eq.s32.totalorder %v487, %v601
        %vm910 = vcmp.eq.s32.totalorder %v487, %v604
        %vm911 = vcmp.eq.s32.totalorder %v487, %v607
        %vm912 = vcmp.eq.s32.totalorder %v487, %v610
        %vm913 = vcmp.eq.s32.totalorder %v487, %v613
        %vm914 = vcmp.eq.s32.totalorder %v487, %v616
        %vm915 = vcmp.eq.s32.totalorder %v487, %v619
        %vm916 = vcmp.eq.s32.totalorder %v487, %v622
        %vm917 = vcmp.eq.s32.totalorder %v487, %v625
        %vm918 = vcmp.eq.s32.totalorder %v487, %v628
        %vm919 = vcmp.eq.s32.totalorder %v487, %v631
        %vm920 = vcmp.eq.s32.totalorder %v487, %v634
        %vm921 = vcmp.eq.s32.totalorder %v487, %v637
        %vm922 = vcmp.eq.s32.totalorder %v487, %v640
        %vm923 = vcmp.eq.s32.totalorder %v487, %v643
        %vm924 = vcmp.eq.s32.totalorder %v487, %v646
        %vm925 = vcmp.eq.s32.totalorder %v487, %v649
        %vm926 = vcmp.eq.s32.totalorder %v487, %v652
        %vm927 = vcmp.eq.s32.totalorder %v487, %v655
        %vm928 = vcmp.eq.s32.totalorder %v487, %v658
        %vm929 = vcmp.eq.s32.totalorder %v487, %v661
        %vm930 = vcmp.eq.s32.totalorder %v487, %v664
        %vm931 = vcmp.eq.s32.totalorder %v487, %v667
        %vm932 = vcmp.eq.s32.totalorder %v487, %v670
        %vm933 = vcmp.eq.s32.totalorder %v487, %v673
        %vm934 = vcmp.eq.s32.totalorder %v487, %v676
        %vm935 = vcmp.eq.s32.totalorder %v487, %v679
        %vm936 = vcmp.eq.s32.totalorder %v487, %v682
        %vm937 = vcmp.eq.s32.totalorder %v487, %v685
        %vm938 = vcmp.eq.s32.totalorder %v487, %v688
        %vm939 = vcmp.eq.s32.totalorder %v487, %v691
        %vm940 = vcmp.eq.s32.totalorder %v487, %v694
        %vm941 = vcmp.eq.s32.totalorder %v487, %v697
        %vm942 = vcmp.eq.s32.totalorder %v487, %v700
        %vm943 = vcmp.eq.s32.totalorder %v487, %v703
        %vm944 = vcmp.eq.s32.totalorder %v487, %v706
        %vm945 = vcmp.eq.s32.totalorder %v487, %v709
        %vm946 = vcmp.eq.s32.totalorder %v487, %v712
        %vm947 = vcmp.eq.s32.totalorder %v487, %v715
        %vm948 = vcmp.eq.s32.totalorder %v487, %v718
        %vm949 = vcmp.eq.s32.totalorder %v487, %v721
        %vm950 = vcmp.eq.s32.totalorder %v487, %v724
        %vm951 = vcmp.eq.s32.totalorder %v487, %v727
        %vm952 = vcmp.eq.s32.totalorder %v487, %v730
        %vm953 = vcmp.eq.s32.totalorder %v487, %v733
        %vm954 = vcmp.eq.s32.totalorder %v487, %v736
        %vm955 = vcmp.eq.s32.totalorder %v487, %v739
        %vm956 = vcmp.eq.s32.totalorder %v487, %v742
        %vm957 = vcmp.eq.s32.totalorder %v487, %v745
        %vm958 = vcmp.eq.s32.totalorder %v487, %v748
        %vm959 = vcmp.eq.s32.totalorder %v487, %v751
        %vm960 = vcmp.eq.s32.totalorder %v487, %v754
        %vm961 = vcmp.eq.s32.totalorder %v487, %v757
        %vm962 = vcmp.eq.s32.totalorder %v487, %v760
        %vm963 = vcmp.eq.s32.totalorder %v487, %v763
        %vm964 = vcmp.eq.s32.totalorder %v487, %v766
        %vm965 = vcmp.eq.s32.totalorder %v487, %v769
        %vm966 = vcmp.eq.s32.totalorder %v487, %v772
        %vm967 = vcmp.eq.s32.totalorder %v487, %v775
        %vm968 = vcmp.eq.s32.totalorder %v487, %v778
        %vm969 = vcmp.eq.s32.totalorder %v487, %v781
        %vm970 = vcmp.eq.s32.totalorder %v487, %v784
        %vm971 = vcmp.eq.s32.totalorder %v487, %v787
        %vm972 = vcmp.eq.s32.totalorder %v487, %v790
        %vm973 = vcmp.eq.s32.totalorder %v487, %v793
        %vm974 = vcmp.eq.s32.totalorder %v487, %v796
        %vm975 = vcmp.eq.s32.totalorder %v487, %v799
        %vm976 = vcmp.eq.s32.totalorder %v487, %v802
        %vm977 = vcmp.eq.s32.totalorder %v487, %v805
        %vm978 = vcmp.eq.s32.totalorder %v487, %v808
        %vm979 = vcmp.eq.s32.totalorder %v487, %v811
        %vm980 = vcmp.eq.s32.totalorder %v487, %v814
        %vm981 = vcmp.eq.s32.totalorder %v487, %v817
        %vm982 = vcmp.eq.s32.totalorder %v487, %v820
        %vm983 = vcmp.eq.s32.totalorder %v487, %v823
        %vm984 = vcmp.eq.s32.totalorder %v487, %v826
        %vm985 = vcmp.eq.s32.totalorder %v487, %v829
        %vm986 = vcmp.eq.s32.totalorder %v487, %v832
        %vm987 = vcmp.eq.s32.totalorder %v487, %v835
        %vm988 = vcmp.eq.s32.totalorder %v487, %v838
        %vm989 = vcmp.eq.s32.totalorder %v487, %v841
        %vm990 = vcmp.eq.s32.totalorder %v487, %v844
        %vm991 = vcmp.eq.s32.totalorder %v487, %v847
        %vm992 = vcmp.eq.s32.totalorder %v487, %v850
        %vm993 = vcmp.eq.s32.totalorder %v487, %v853
        %vm994 = vcmp.eq.s32.totalorder %v487, %v856
        %vm995 = vcmp.eq.s32.totalorder %v487, %v859
        %vm996 = vcmp.eq.s32.totalorder %v487, %v862
        %vm997 = vcmp.eq.s32.totalorder %v487, %v865
        %vm998 = vcmp.eq.s32.totalorder %v487, %v868
        %vm999 = vcmp.eq.s32.totalorder %v487, %v871
        %v1000 = vsub.f32 1.0, %v230
        %v1001 = vsub.f32 1.0, %v231
        %v1002 = vsub.f32 1.0, %v232
        %v1003 = vsub.f32 1.0, %v233
        %v1004 = vsub.f32 1.0, %v234
        %v1005 = vsub.f32 1.0, %v235
        %v1006 = vsub.f32 1.0, %v236
        %v1007 = vsub.f32 1.0, %v237
        %v1008 = vsub.f32 1.0, %v238
        %v1009 = vsub.f32 1.0, %v239
        %v1010 = vsub.f32 1.0, %v240
        %v1011 = vsub.f32 1.0, %v241
        %v1012 = vsub.f32 1.0, %v242
        %v1013 = vsub.f32 1.0, %v243
        %v1014 = vsub.f32 1.0, %v244
        %v1015 = vsub.f32 1.0, %v245
        %v1016 = vsub.f32 1.0, %v246
        %v1017 = vsub.f32 1.0, %v247
        %v1018 = vsub.f32 1.0, %v248
        %v1019 = vsub.f32 1.0, %v249
        %v1020 = vsub.f32 1.0, %v250
        %v1021 = vsub.f32 1.0, %v251
        %v1022 = vsub.f32 1.0, %v252
        %v1023 = vsub.f32 1.0, %v253
        %v1024 = vsub.f32 1.0, %v254
        %v1025 = vsub.f32 1.0, %v255
        %v1026 = vsub.f32 1.0, %v256
        %v1027 = vsub.f32 1.0, %v257
        %v1028 = vsub.f32 1.0, %v258
        %v1029 = vsub.f32 1.0, %v259
        %v1030 = vsub.f32 1.0, %v260
        %v1031 = vsub.f32 1.0, %v261
        %v1032 = vsub.f32 1.0, %v262
        %v1033 = vsub.f32 1.0, %v263
        %v1034 = vsub.f32 1.0, %v264
        %v1035 = vsub.f32 1.0, %v265
        %v1036 = vsub.f32 1.0, %v266
        %v1037 = vsub.f32 1.0, %v267
        %v1038 = vsub.f32 1.0, %v268
        %v1039 = vsub.f32 1.0, %v269
        %v1040 = vsub.f32 1.0, %v270
        %v1041 = vsub.f32 1.0, %v271
        %v1042 = vsub.f32 1.0, %v272
        %v1043 = vsub.f32 1.0, %v273
        %v1044 = vsub.f32 1.0, %v274
        %v1045 = vsub.f32 1.0, %v275
        %v1046 = vsub.f32 1.0, %v276
        %v1047 = vsub.f32 1.0, %v277
        %v1048 = vsub.f32 1.0, %v278
        %v1049 = vsub.f32 1.0, %v279
        %v1050 = vsub.f32 1.0, %v280
        %v1051 = vsub.f32 1.0, %v281
        %v1052 = vsub.f32 1.0, %v282
        %v1053 = vsub.f32 1.0, %v283
        %v1054 = vsub.f32 1.0, %v284
        %v1055 = vsub.f32 1.0, %v285
        %v1056 = vsub.f32 1.0, %v286
        %v1057 = vsub.f32 1.0, %v287
        %v1058 = vsub.f32 1.0, %v288
        %v1059 = vsub.f32 1.0, %v289
        %v1060 = vsub.f32 1.0, %v290
        %v1061 = vsub.f32 1.0, %v291
        %v1062 = vsub.f32 1.0, %v292
        %v1063 = vsub.f32 1.0, %v293
        %v1064 = vsub.f32 1.0, %v294
        %v1065 = vsub.f32 1.0, %v295
        %v1066 = vsub.f32 1.0, %v296
        %v1067 = vsub.f32 1.0, %v297
        %v1068 = vsub.f32 1.0, %v298
        %v1069 = vsub.f32 1.0, %v299
        %v1070 = vsub.f32 1.0, %v300
        %v1071 = vsub.f32 1.0, %v301
        %v1072 = vsub.f32 1.0, %v302
        %v1073 = vsub.f32 1.0, %v303
        %v1074 = vsub.f32 1.0, %v304
        %v1075 = vsub.f32 1.0, %v305
        %v1076 = vsub.f32 1.0, %v306
        %v1077 = vsub.f32 1.0, %v307
        %v1078 = vsub.f32 1.0, %v308
        %v1079 = vsub.f32 1.0, %v309
        %v1080 = vsub.f32 1.0, %v310
        %v1081 = vsub.f32 1.0, %v311
        %v1082 = vsub.f32 1.0, %v312
        %v1083 = vsub.f32 1.0, %v313
        %v1084 = vsub.f32 1.0, %v314
        %v1085 = vsub.f32 1.0, %v315
        %v1086 = vsub.f32 1.0, %v316
        %v1087 = vsub.f32 1.0, %v317
        %v1088 = vsub.f32 1.0, %v318
        %v1089 = vsub.f32 1.0, %v319
        %v1090 = vsub.f32 1.0, %v320
        %v1091 = vsub.f32 1.0, %v321
        %v1092 = vsub.f32 1.0, %v322
        %v1093 = vsub.f32 1.0, %v323
        %v1094 = vsub.f32 1.0, %v324
        %v1095 = vsub.f32 1.0, %v325
        %v1096 = vsub.f32 1.0, %v326
        %v1097 = vsub.f32 1.0, %v327
        %v1098 = vsub.f32 1.0, %v328
        %v1099 = vsub.f32 1.0, %v329
        %v1100 = vsub.f32 1.0, %v330
        %v1101 = vsub.f32 1.0, %v331
        %v1102 = vsub.f32 1.0, %v332
        %v1103 = vsub.f32 1.0, %v333
        %v1104 = vsub.f32 1.0, %v334
        %v1105 = vsub.f32 1.0, %v335
        %v1106 = vsub.f32 1.0, %v336
        %v1107 = vsub.f32 1.0, %v337
        %v1108 = vsub.f32 1.0, %v338
        %v1109 = vsub.f32 1.0, %v339
        %v1110 = vsub.f32 1.0, %v340
        %v1111 = vsub.f32 1.0, %v341
        %v1112 = vsub.f32 1.0, %v342
        %v1113 = vsub.f32 1.0, %v343
        %v1114 = vsub.f32 1.0, %v344
        %v1115 = vsub.f32 1.0, %v345
        %v1116 = vsub.f32 1.0, %v346
        %v1117 = vsub.f32 1.0, %v347
        %v1118 = vsub.f32 1.0, %v348
        %v1119 = vsub.f32 1.0, %v349
        %v1120 = vsub.f32 1.0, %v350
        %v1121 = vsub.f32 1.0, %v351
        %v1122 = vsub.f32 1.0, %v352
        %v1123 = vsub.f32 1.0, %v353
        %v1124 = vsub.f32 1.0, %v354
        %v1125 = vsub.f32 1.0, %v355
        %v1126 = vsub.f32 1.0, %v356
        %v1127 = vsub.f32 1.0, %v357
        %v1128 = vsel %vm872, %v1000, %v230
        %v1129 = vsel %vm873, %v1001, %v231
        %v1130 = vsel %vm874, %v1002, %v232
        %v1131 = vsel %vm875, %v1003, %v233
        %v1132 = vsel %vm876, %v1004, %v234
        %v1133 = vsel %vm877, %v1005, %v235
        %v1134 = vsel %vm878, %v1006, %v236
        %v1135 = vsel %vm879, %v1007, %v237
        %v1136 = vsel %vm880, %v1008, %v238
        %v1137 = vsel %vm881, %v1009, %v239
        %v1138 = vsel %vm882, %v1010, %v240
        %v1139 = vsel %vm883, %v1011, %v241
        %v1140 = vsel %vm884, %v1012, %v242
        %v1141 = vsel %vm885, %v1013, %v243
        %v1142 = vsel %vm886, %v1014, %v244
        %v1143 = vsel %vm887, %v1015, %v245
        %v1144 = vsel %vm888, %v1016, %v246
        %v1145 = vsel %vm889, %v1017, %v247
        %v1146 = vsel %vm890, %v1018, %v248
        %v1147 = vsel %vm891, %v1019, %v249
        %v1148 = vsel %vm892, %v1020, %v250
        %v1149 = vsel %vm893, %v1021, %v251
        %v1150 = vsel %vm894, %v1022, %v252
        %v1151 = vsel %vm895, %v1023, %v253
        %v1152 = vsel %vm896, %v1024, %v254
        %v1153 = vsel %vm897, %v1025, %v255
        %v1154 = vsel %vm898, %v1026, %v256
        %v1155 = vsel %vm899, %v1027, %v257
        %v1156 = vsel %vm900, %v1028, %v258
        %v1157 = vsel %vm901, %v1029, %v259
        %v1158 = vsel %vm902, %v1030, %v260
        %v1159 = vsel %vm903, %v1031, %v261
        %v1160 = vsel %vm904, %v1032, %v262
        %v1161 = vsel %vm905, %v1033, %v263
        %v1162 = vsel %vm906, %v1034, %v264
        %v1163 = vsel %vm907, %v1035, %v265
        %v1164 = vsel %vm908, %v1036, %v266
        %v1165 = vsel %vm909, %v1037, %v267
        %v1166 = vsel %vm910, %v1038, %v268
        %v1167 = vsel %vm911, %v1039, %v269
        %v1168 = vsel %vm912, %v1040, %v270
        %v1169 = vsel %vm913, %v1041, %v271
        %v1170 = vsel %vm914, %v1042, %v272
        %v1171 = vsel %vm915, %v1043, %v273
        %v1172 = vsel %vm916, %v1044, %v274
        %v1173 = vsel %vm917, %v1045, %v275
        %v1174 = vsel %vm918, %v1046, %v276
        %v1175 = vsel %vm919, %v1047, %v277
        %v1176 = vsel %vm920, %v1048, %v278
        %v1177 = vsel %vm921, %v1049, %v279
        %v1178 = vsel %vm922, %v1050, %v280
        %v1179 = vsel %vm923, %v1051, %v281
        %v1180 = vsel %vm924, %v1052, %v282
        %v1181 = vsel %vm925, %v1053, %v283
        %v1182 = vsel %vm926, %v1054, %v284
        %v1183 = vsel %vm927, %v1055, %v285
        %v1184 = vsel %vm928, %v1056, %v286
        %v1185 = vsel %vm929, %v1057, %v287
        %v1186 = vsel %vm930, %v1058, %v288
        %v1187 = vsel %vm931, %v1059, %v289
        %v1188 = vsel %vm932, %v1060, %v290
        %v1189 = vsel %vm933, %v1061, %v291
        %v1190 = vsel %vm934, %v1062, %v292
        %v1191 = vsel %vm935, %v1063, %v293
        %v1192 = vsel %vm936, %v1064, %v294
        %v1193 = vsel %vm937, %v1065, %v295
        %v1194 = vsel %vm938, %v1066, %v296
        %v1195 = vsel %vm939, %v1067, %v297
        %v1196 = vsel %vm940, %v1068, %v298
        %v1197 = vsel %vm941, %v1069, %v299
        %v1198 = vsel %vm942, %v1070, %v300
        %v1199 = vsel %vm943, %v1071, %v301
        %v1200 = vsel %vm944, %v1072, %v302
        %v1201 = vsel %vm945, %v1073, %v303
        %v1202 = vsel %vm946, %v1074, %v304
        %v1203 = vsel %vm947, %v1075, %v305
        %v1204 = vsel %vm948, %v1076, %v306
        %v1205 = vsel %vm949, %v1077, %v307
        %v1206 = vsel %vm950, %v1078, %v308
        %v1207 = vsel %vm951, %v1079, %v309
        %v1208 = vsel %vm952, %v1080, %v310
        %v1209 = vsel %vm953, %v1081, %v311
        %v1210 = vsel %vm954, %v1082, %v312
        %v1211 = vsel %vm955, %v1083, %v313
        %v1212 = vsel %vm956, %v1084, %v314
        %v1213 = vsel %vm957, %v1085, %v315
        %v1214 = vsel %vm958, %v1086, %v316
        %v1215 = vsel %vm959, %v1087, %v317
        %v1216 = vsel %vm960, %v1088, %v318
        %v1217 = vsel %vm961, %v1089, %v319
        %v1218 = vsel %vm962, %v1090, %v320
        %v1219 = vsel %vm963, %v1091, %v321
        %v1220 = vsel %vm964, %v1092, %v322
        %v1221 = vsel %vm965, %v1093, %v323
        %v1222 = vsel %vm966, %v1094, %v324
        %v1223 = vsel %vm967, %v1095, %v325
        %v1224 = vsel %vm968, %v1096, %v326
        %v1225 = vsel %vm969, %v1097, %v327
        %v1226 = vsel %vm970, %v1098, %v328
        %v1227 = vsel %vm971, %v1099, %v329
        %v1228 = vsel %vm972, %v1100, %v330
        %v1229 = vsel %vm973, %v1101, %v331
        %v1230 = vsel %vm974, %v1102, %v332
        %v1231 = vsel %vm975, %v1103, %v333
        %v1232 = vsel %vm976, %v1104, %v334
        %v1233 = vsel %vm977, %v1105, %v335
        %v1234 = vsel %vm978, %v1106, %v336
        %v1235 = vsel %vm979, %v1107, %v337
        %v1236 = vsel %vm980, %v1108, %v338
        %v1237 = vsel %vm981, %v1109, %v339
        %v1238 = vsel %vm982, %v1110, %v340
        %v1239 = vsel %vm983, %v1111, %v341
        %v1240 = vsel %vm984, %v1112, %v342
        %v1241 = vsel %vm985, %v1113, %v343
        %v1242 = vsel %vm986, %v1114, %v344
        %v1243 = vsel %vm987, %v1115, %v345
        %v1244 = vsel %vm988, %v1116, %v346
        %v1245 = vsel %vm989, %v1117, %v347
        %v1246 = vsel %vm990, %v1118, %v348
        %v1247 = vsel %vm991, %v1119, %v349
        %v1248 = vsel %vm992, %v1120, %v350
        %v1249 = vsel %vm993, %v1121, %v351
        %v1250 = vsel %vm994, %v1122, %v352
        %v1251 = vsel %vm995, %v1123, %v353
        %v1252 = vsel %vm996, %v1124, %v354
        %v1253 = vsel %vm997, %v1125, %v355
        %v1254 = vsel %vm998, %v1126, %v356
        %v1255 = vsel %vm999, %v1127, %v357
        %v1256 = vmul.f32 %v1128, %v1128
        %v1257 = vmul.f32 %v1129, %v1129
        %v1258 = vmul.f32 %v1130, %v1130
        %v1259 = vmul.f32 %v1131, %v1131
        %v1260 = vmul.f32 %v1132, %v1132
        %v1261 = vmul.f32 %v1133, %v1133
        %v1262 = vmul.f32 %v1134, %v1134
        %v1263 = vmul.f32 %v1135, %v1135
        %v1264 = vmul.f32 %v1136, %v1136
        %v1265 = vmul.f32 %v1137, %v1137
        %v1266 = vmul.f32 %v1138, %v1138
        %v1267 = vmul.f32 %v1139, %v1139
        %v1268 = vmul.f32 %v1140, %v1140
        %v1269 = vmul.f32 %v1141, %v1141
        %v1270 = vmul.f32 %v1142, %v1142
        %v1271 = vmul.f32 %v1143, %v1143
        %v1272 = vmul.f32 %v1144, %v1144
        %v1273 = vmul.f32 %v1145, %v1145
        %v1274 = vmul.f32 %v1146, %v1146
        %v1275 = vmul.f32 %v1147, %v1147
        %v1276 = vmul.f32 %v1148, %v1148
        %v1277 = vmul.f32 %v1149, %v1149
        %v1278 = vmul.f32 %v1150, %v1150
        %v1279 = vmul.f32 %v1151, %v1151
        %v1280 = vmul.f32 %v1152, %v1152
        %v1281 = vmul.f32 %v1153, %v1153
        %v1282 = vmul.f32 %v1154, %v1154
        %v1283 = vmul.f32 %v1155, %v1155
        %v1284 = vmul.f32 %v1156, %v1156
        %v1285 = vmul.f32 %v1157, %v1157
        %v1286 = vmul.f32 %v1158, %v1158
        %v1287 = vmul.f32 %v1159, %v1159
        %v1288 = vmul.f32 %v1160, %v1160
        %v1289 = vmul.f32 %v1161, %v1161
        %v1290 = vmul.f32 %v1162, %v1162
        %v1291 = vmul.f32 %v1163, %v1163
        %v1292 = vmul.f32 %v1164, %v1164
        %v1293 = vmul.f32 %v1165, %v1165
        %v1294 = vmul.f32 %v1166, %v1166
        %v1295 = vmul.f32 %v1167, %v1167
        %v1296 = vmul.f32 %v1168, %v1168
        %v1297 = vmul.f32 %v1169, %v1169
        %v1298 = vmul.f32 %v1170, %v1170
        %v1299 = vmul.f32 %v1171, %v1171
        %v1300 = vmul.f32 %v1172, %v1172
        %v1301 = vmul.f32 %v1173, %v1173
        %v1302 = vmul.f32 %v1174, %v1174
        %v1303 = vmul.f32 %v1175, %v1175
        %v1304 = vmul.f32 %v1176, %v1176
        %v1305 = vmul.f32 %v1177, %v1177
        %v1306 = vmul.f32 %v1178, %v1178
        %v1307 = vmul.f32 %v1179, %v1179
        %v1308 = vmul.f32 %v1180, %v1180
        %v1309 = vmul.f32 %v1181, %v1181
        %v1310 = vmul.f32 %v1182, %v1182
        %v1311 = vmul.f32 %v1183, %v1183
        %v1312 = vmul.f32 %v1184, %v1184
        %v1313 = vmul.f32 %v1185, %v1185
        %v1314 = vmul.f32 %v1186, %v1186
        %v1315 = vmul.f32 %v1187, %v1187
        %v1316 = vmul.f32 %v1188, %v1188
        %v1317 = vmul.f32 %v1189, %v1189
        %v1318 = vmul.f32 %v1190, %v1190
        %v1319 = vmul.f32 %v1191, %v1191
        %v1320 = vmul.f32 %v1192, %v1192
        %v1321 = vmul.f32 %v1193, %v1193
        %v1322 = vmul.f32 %v1194, %v1194
        %v1323 = vmul.f32 %v1195, %v1195
        %v1324 = vmul.f32 %v1196, %v1196
        %v1325 = vmul.f32 %v1197, %v1197
        %v1326 = vmul.f32 %v1198, %v1198
        %v1327 = vmul.f32 %v1199, %v1199
        %v1328 = vmul.f32 %v1200, %v1200
        %v1329 = vmul.f32 %v1201, %v1201
        %v1330 = vmul.f32 %v1202, %v1202
        %v1331 = vmul.f32 %v1203, %v1203
        %v1332 = vmul.f32 %v1204, %v1204
        %v1333 = vmul.f32 %v1205, %v1205
        %v1334 = vmul.f32 %v1206, %v1206
        %v1335 = vmul.f32 %v1207, %v1207
        %v1336 = vmul.f32 %v1208, %v1208
        %v1337 = vmul.f32 %v1209, %v1209
        %v1338 = vmul.f32 %v1210, %v1210
        %v1339 = vmul.f32 %v1211, %v1211
        %v1340 = vmul.f32 %v1212, %v1212
        %v1341 = vmul.f32 %v1213, %v1213
        %v1342 = vmul.f32 %v1214, %v1214
        %v1343 = vmul.f32 %v1215, %v1215
        %v1344 = vmul.f32 %v1216, %v1216
        %v1345 = vmul.f32 %v1217, %v1217
        %v1346 = vmul.f32 %v1218, %v1218
        %v1347 = vmul.f32 %v1219, %v1219
        %v1348 = vmul.f32 %v1220, %v1220
        %v1349 = vmul.f32 %v1221, %v1221
        %v1350 = vmul.f32 %v1222, %v1222
        %v1351 = vmul.f32 %v1223, %v1223
        %v1352 = vmul.f32 %v1224, %v1224
        %v1353 = vmul.f32 %v1225, %v1225
        %v1354 = vmul.f32 %v1226, %v1226
        %v1355 = vmul.f32 %v1227, %v1227
        %v1356 = vmul.f32 %v1228, %v1228
        %v1357 = vmul.f32 %v1229, %v1229
        %v1358 = vmul.f32 %v1230, %v1230
        %v1359 = vmul.f32 %v1231, %v1231
        %v1360 = vmul.f32 %v1232, %v1232
        %v1361 = vmul.f32 %v1233, %v1233
        %v1362 = vmul.f32 %v1234, %v1234
        %v1363 = vmul.f32 %v1235, %v1235
        %v1364 = vmul.f32 %v1236, %v1236
        %v1365 = vmul.f32 %v1237, %v1237
        %v1366 = vmul.f32 %v1238, %v1238
        %v1367 = vmul.f32 %v1239, %v1239
        %v1368 = vmul.f32 %v1240, %v1240
        %v1369 = vmul.f32 %v1241, %v1241
        %v1370 = vmul.f32 %v1242, %v1242
        %v1371 = vmul.f32 %v1243, %v1243
        %v1372 = vmul.f32 %v1244, %v1244
        %v1373 = vmul.f32 %v1245, %v1245
        %v1374 = vmul.f32 %v1246, %v1246
        %v1375 = vmul.f32 %v1247, %v1247
        %v1376 = vmul.f32 %v1248, %v1248
        %v1377 = vmul.f32 %v1249, %v1249
        %v1378 = vmul.f32 %v1250, %v1250
        %v1379 = vmul.f32 %v1251, %v1251
        %v1380 = vmul.f32 %v1252, %v1252
        %v1381 = vmul.f32 %v1253, %v1253
        %v1382 = vmul.f32 %v1254, %v1254
        %v1383 = vmul.f32 %v1255, %v1255
        %1384 = vmax.xlane.f32.xlu0 %v230
        %v1385 = vpop.xlane.xlu0 %1384
        %1386 = vmax.xlane.f32.xlu0 %v231
        %v1387 = vpop.xlane.xlu0 %1386
        %1388 = vmax.xlane.f32.xlu0 %v232
        %v1389 = vpop.xlane.xlu0 %1388
        %1390 = vmax.xlane.f32.xlu0 %v233
        %v1391 = vpop.xlane.xlu0 %1390
        %1392 = vmax.xlane.f32.xlu0 %v234
        %v1393 = vpop.xlane.xlu0 %1392
        %1394 = vmax.xlane.f32.xlu0 %v235
        %v1395 = vpop.xlane.xlu0 %1394
        %1396 = vmax.xlane.f32.xlu0 %v236
        %v1397 = vpop.xlane.xlu0 %1396
        %1398 = vmax.xlane.f32.xlu0 %v237
        %v1399 = vpop.xlane.xlu0 %1398
        %1400 = vmax.xlane.f32.xlu0 %v238
        %v1401 = vpop.xlane.xlu0 %1400
        %1402 = vmax.xlane.f32.xlu0 %v239
        %v1403 = vpop.xlane.xlu0 %1402
        %1404 = vmax.xlane.f32.xlu0 %v240
        %v1405 = vpop.xlane.xlu0 %1404
        %1406 = vmax.xlane.f32.xlu0 %v241
        %v1407 = vpop.xlane.xlu0 %1406
        %1408 = vmax.xlane.f32.xlu0 %v242
        %v1409 = vpop.xlane.xlu0 %1408
        %1410 = vmax.xlane.f32.xlu0 %v243
        %v1411 = vpop.xlane.xlu0 %1410
        %1412 = vmax.xlane.f32.xlu0 %v244
        %v1413 = vpop.xlane.xlu0 %1412
        %1414 = vmax.xlane.f32.xlu0 %v245
        %v1415 = vpop.xlane.xlu0 %1414
        %1416 = vmax.xlane.f32.xlu0 %v246
        %v1417 = vpop.xlane.xlu0 %1416
        %1418 = vmax.xlane.f32.xlu0 %v247
        %v1419 = vpop.xlane.xlu0 %1418
        %1420 = vmax.xlane.f32.xlu0 %v248
        %v1421 = vpop.xlane.xlu0 %1420
        %1422 = vmax.xlane.f32.xlu0 %v249
        %v1423 = vpop.xlane.xlu0 %1422
        %1424 = vmax.xlane.f32.xlu0 %v250
        %v1425 = vpop.xlane.xlu0 %1424
        %1426 = vmax.xlane.f32.xlu0 %v251
        %v1427 = vpop.xlane.xlu0 %1426
        %1428 = vmax.xlane.f32.xlu0 %v252
        %v1429 = vpop.xlane.xlu0 %1428
        %1430 = vmax.xlane.f32.xlu0 %v253
        %v1431 = vpop.xlane.xlu0 %1430
        %1432 = vmax.xlane.f32.xlu0 %v254
        %v1433 = vpop.xlane.xlu0 %1432
        %1434 = vmax.xlane.f32.xlu0 %v255
        %v1435 = vpop.xlane.xlu0 %1434
        %1436 = vmax.xlane.f32.xlu0 %v256
        %v1437 = vpop.xlane.xlu0 %1436
        %1438 = vmax.xlane.f32.xlu0 %v257
        %v1439 = vpop.xlane.xlu0 %1438
        %1440 = vmax.xlane.f32.xlu0 %v258
        %v1441 = vpop.xlane.xlu0 %1440
        %1442 = vmax.xlane.f32.xlu0 %v259
        %v1443 = vpop.xlane.xlu0 %1442
        %1444 = vmax.xlane.f32.xlu0 %v260
        %v1445 = vpop.xlane.xlu0 %1444
        %1446 = vmax.xlane.f32.xlu0 %v261
        %v1447 = vpop.xlane.xlu0 %1446
        %1448 = vmax.xlane.f32.xlu0 %v262
        %v1449 = vpop.xlane.xlu0 %1448
        %1450 = vmax.xlane.f32.xlu0 %v263
        %v1451 = vpop.xlane.xlu0 %1450
        %1452 = vmax.xlane.f32.xlu0 %v264
        %v1453 = vpop.xlane.xlu0 %1452
        %1454 = vmax.xlane.f32.xlu0 %v265
        %v1455 = vpop.xlane.xlu0 %1454
        %1456 = vmax.xlane.f32.xlu0 %v266
        %v1457 = vpop.xlane.xlu0 %1456
        %1458 = vmax.xlane.f32.xlu0 %v267
        %v1459 = vpop.xlane.xlu0 %1458
        %1460 = vmax.xlane.f32.xlu0 %v268
        %v1461 = vpop.xlane.xlu0 %1460
        %1462 = vmax.xlane.f32.xlu0 %v269
        %v1463 = vpop.xlane.xlu0 %1462
        %1464 = vmax.xlane.f32.xlu0 %v270
        %v1465 = vpop.xlane.xlu0 %1464
        %1466 = vmax.xlane.f32.xlu0 %v271
        %v1467 = vpop.xlane.xlu0 %1466
        %1468 = vmax.xlane.f32.xlu0 %v272
        %v1469 = vpop.xlane.xlu0 %1468
        %1470 = vmax.xlane.f32.xlu0 %v273
        %v1471 = vpop.xlane.xlu0 %1470
        %1472 = vmax.xlane.f32.xlu0 %v274
        %v1473 = vpop.xlane.xlu0 %1472
        %1474 = vmax.xlane.f32.xlu0 %v275
        %v1475 = vpop.xlane.xlu0 %1474
        %1476 = vmax.xlane.f32.xlu0 %v276
        %v1477 = vpop.xlane.xlu0 %1476
        %1478 = vmax.xlane.f32.xlu0 %v277
        %v1479 = vpop.xlane.xlu0 %1478
        %1480 = vmax.xlane.f32.xlu0 %v278
        %v1481 = vpop.xlane.xlu0 %1480
        %1482 = vmax.xlane.f32.xlu0 %v279
        %v1483 = vpop.xlane.xlu0 %1482
        %1484 = vmax.xlane.f32.xlu0 %v280
        %v1485 = vpop.xlane.xlu0 %1484
        %1486 = vmax.xlane.f32.xlu0 %v281
        %v1487 = vpop.xlane.xlu0 %1486
        %1488 = vmax.xlane.f32.xlu0 %v282
        %v1489 = vpop.xlane.xlu0 %1488
        %1490 = vmax.xlane.f32.xlu0 %v283
        %v1491 = vpop.xlane.xlu0 %1490
        %1492 = vmax.xlane.f32.xlu0 %v284
        %v1493 = vpop.xlane.xlu0 %1492
        %1494 = vmax.xlane.f32.xlu0 %v285
        %v1495 = vpop.xlane.xlu0 %1494
        %1496 = vmax.xlane.f32.xlu0 %v286
        %v1497 = vpop.xlane.xlu0 %1496
        %1498 = vmax.xlane.f32.xlu0 %v287
        %v1499 = vpop.xlane.xlu0 %1498
        %1500 = vmax.xlane.f32.xlu0 %v288
        %v1501 = vpop.xlane.xlu0 %1500
        %1502 = vmax.xlane.f32.xlu0 %v289
        %v1503 = vpop.xlane.xlu0 %1502
        %1504 = vmax.xlane.f32.xlu0 %v290
        %v1505 = vpop.xlane.xlu0 %1504
        %1506 = vmax.xlane.f32.xlu0 %v291
        %v1507 = vpop.xlane.xlu0 %1506
        %1508 = vmax.xlane.f32.xlu0 %v292
        %v1509 = vpop.xlane.xlu0 %1508
        %1510 = vmax.xlane.f32.xlu0 %v293
        %v1511 = vpop.xlane.xlu0 %1510
        %1512 = vmax.xlane.f32.xlu0 %v294
        %v1513 = vpop.xlane.xlu0 %1512
        %1514 = vmax.xlane.f32.xlu0 %v295
        %v1515 = vpop.xlane.xlu0 %1514
        %1516 = vmax.xlane.f32.xlu0 %v296
        %v1517 = vpop.xlane.xlu0 %1516
        %1518 = vmax.xlane.f32.xlu0 %v297
        %v1519 = vpop.xlane.xlu0 %1518
        %1520 = vmax.xlane.f32.xlu0 %v298
        %v1521 = vpop.xlane.xlu0 %1520
        %1522 = vmax.xlane.f32.xlu0 %v299
        %v1523 = vpop.xlane.xlu0 %1522
        %1524 = vmax.xlane.f32.xlu0 %v300
        %v1525 = vpop.xlane.xlu0 %1524
        %1526 = vmax.xlane.f32.xlu0 %v301
        %v1527 = vpop.xlane.xlu0 %1526
        %1528 = vmax.xlane.f32.xlu0 %v302
        %v1529 = vpop.xlane.xlu0 %1528
        %1530 = vmax.xlane.f32.xlu0 %v303
        %v1531 = vpop.xlane.xlu0 %1530
        %1532 = vmax.xlane.f32.xlu0 %v304
        %v1533 = vpop.xlane.xlu0 %1532
        %1534 = vmax.xlane.f32.xlu0 %v305
        %v1535 = vpop.xlane.xlu0 %1534
        %1536 = vmax.xlane.f32.xlu0 %v306
        %v1537 = vpop.xlane.xlu0 %1536
        %1538 = vmax.xlane.f32.xlu0 %v307
        %v1539 = vpop.xlane.xlu0 %1538
        %1540 = vmax.xlane.f32.xlu0 %v308
        %v1541 = vpop.xlane.xlu0 %1540
        %1542 = vmax.xlane.f32.xlu0 %v309
        %v1543 = vpop.xlane.xlu0 %1542
        %1544 = vmax.xlane.f32.xlu0 %v310
        %v1545 = vpop.xlane.xlu0 %1544
        %1546 = vmax.xlane.f32.xlu0 %v311
        %v1547 = vpop.xlane.xlu0 %1546
        %1548 = vmax.xlane.f32.xlu0 %v312
        %v1549 = vpop.xlane.xlu0 %1548
        %1550 = vmax.xlane.f32.xlu0 %v313
        %v1551 = vpop.xlane.xlu0 %1550
        %1552 = vmax.xlane.f32.xlu0 %v314
        %v1553 = vpop.xlane.xlu0 %1552
        %1554 = vmax.xlane.f32.xlu0 %v315
        %v1555 = vpop.xlane.xlu0 %1554
        %1556 = vmax.xlane.f32.xlu0 %v316
        %v1557 = vpop.xlane.xlu0 %1556
        %1558 = vmax.xlane.f32.xlu0 %v317
        %v1559 = vpop.xlane.xlu0 %1558
        %1560 = vmax.xlane.f32.xlu0 %v318
        %v1561 = vpop.xlane.xlu0 %1560
        %1562 = vmax.xlane.f32.xlu0 %v319
        %v1563 = vpop.xlane.xlu0 %1562
        %1564 = vmax.xlane.f32.xlu0 %v320
        %v1565 = vpop.xlane.xlu0 %1564
        %1566 = vmax.xlane.f32.xlu0 %v321
        %v1567 = vpop.xlane.xlu0 %1566
        %1568 = vmax.xlane.f32.xlu0 %v322
        %v1569 = vpop.xlane.xlu0 %1568
        %1570 = vmax.xlane.f32.xlu0 %v323
        %v1571 = vpop.xlane.xlu0 %1570
        %1572 = vmax.xlane.f32.xlu0 %v324
        %v1573 = vpop.xlane.xlu0 %1572
        %1574 = vmax.xlane.f32.xlu0 %v325
        %v1575 = vpop.xlane.xlu0 %1574
        %1576 = vmax.xlane.f32.xlu0 %v326
        %v1577 = vpop.xlane.xlu0 %1576
        %1578 = vmax.xlane.f32.xlu0 %v327
        %v1579 = vpop.xlane.xlu0 %1578
        %1580 = vmax.xlane.f32.xlu0 %v328
        %v1581 = vpop.xlane.xlu0 %1580
        %1582 = vmax.xlane.f32.xlu0 %v329
        %v1583 = vpop.xlane.xlu0 %1582
        %1584 = vmax.xlane.f32.xlu0 %v330
        %v1585 = vpop.xlane.xlu0 %1584
        %1586 = vmax.xlane.f32.xlu0 %v331
        %v1587 = vpop.xlane.xlu0 %1586
        %1588 = vmax.xlane.f32.xlu0 %v332
        %v1589 = vpop.xlane.xlu0 %1588
        %1590 = vmax.xlane.f32.xlu0 %v333
        %v1591 = vpop.xlane.xlu0 %1590
        %1592 = vmax.xlane.f32.xlu0 %v334
        %v1593 = vpop.xlane.xlu0 %1592
        %1594 = vmax.xlane.f32.xlu0 %v335
        %v1595 = vpop.xlane.xlu0 %1594
        %1596 = vmax.xlane.f32.xlu0 %v336
        %v1597 = vpop.xlane.xlu0 %1596
        %1598 = vmax.xlane.f32.xlu0 %v337
        %v1599 = vpop.xlane.xlu0 %1598
        %1600 = vmax.xlane.f32.xlu0 %v338
        %v1601 = vpop.xlane.xlu0 %1600
        %1602 = vmax.xlane.f32.xlu0 %v339
        %v1603 = vpop.xlane.xlu0 %1602
        %1604 = vmax.xlane.f32.xlu0 %v340
        %v1605 = vpop.xlane.xlu0 %1604
        %1606 = vmax.xlane.f32.xlu0 %v341
        %v1607 = vpop.xlane.xlu0 %1606
        %1608 = vmax.xlane.f32.xlu0 %v342
        %v1609 = vpop.xlane.xlu0 %1608
        %1610 = vmax.xlane.f32.xlu0 %v343
        %v1611 = vpop.xlane.xlu0 %1610
        %1612 = vmax.xlane.f32.xlu0 %v344
        %v1613 = vpop.xlane.xlu0 %1612
        %1614 = vmax.xlane.f32.xlu0 %v345
        %v1615 = vpop.xlane.xlu0 %1614
        %1616 = vmax.xlane.f32.xlu0 %v346
        %v1617 = vpop.xlane.xlu0 %1616
        %1618 = vmax.xlane.f32.xlu0 %v347
        %v1619 = vpop.xlane.xlu0 %1618
        %1620 = vmax.xlane.f32.xlu0 %v348
        %v1621 = vpop.xlane.xlu0 %1620
        %1622 = vmax.xlane.f32.xlu0 %v349
        %v1623 = vpop.xlane.xlu0 %1622
        %1624 = vmax.xlane.f32.xlu0 %v350
        %v1625 = vpop.xlane.xlu0 %1624
        %1626 = vmax.xlane.f32.xlu0 %v351
        %v1627 = vpop.xlane.xlu0 %1626
        %1628 = vmax.xlane.f32.xlu0 %v352
        %v1629 = vpop.xlane.xlu0 %1628
        %1630 = vmax.xlane.f32.xlu0 %v353
        %v1631 = vpop.xlane.xlu0 %1630
        %1632 = vmax.xlane.f32.xlu0 %v354
        %v1633 = vpop.xlane.xlu0 %1632
        %1634 = vmax.xlane.f32.xlu0 %v355
        %v1635 = vpop.xlane.xlu0 %1634
        %1636 = vmax.xlane.f32.xlu0 %v356
        %v1637 = vpop.xlane.xlu0 %1636
        %1638 = vmax.xlane.f32.xlu0 %v357
        %v1639 = vpop.xlane.xlu0 %1638
        %v1640 = vsub.f32 %v230, %v1385
        %v1641 = vsub.f32 %v231, %v1387
        %v1642 = vsub.f32 %v232, %v1389
        %v1643 = vsub.f32 %v233, %v1391
        %v1644 = vsub.f32 %v234, %v1393
        %v1645 = vsub.f32 %v235, %v1395
        %v1646 = vsub.f32 %v236, %v1397
        %v1647 = vsub.f32 %v237, %v1399
        %v1648 = vsub.f32 %v238, %v1401
        %v1649 = vsub.f32 %v239, %v1403
        %v1650 = vsub.f32 %v240, %v1405
        %v1651 = vsub.f32 %v241, %v1407
        %v1652 = vsub.f32 %v242, %v1409
        %v1653 = vsub.f32 %v243, %v1411
        %v1654 = vsub.f32 %v244, %v1413
        %v1655 = vsub.f32 %v245, %v1415
        %v1656 = vsub.f32 %v246, %v1417
        %v1657 = vsub.f32 %v247, %v1419
        %v1658 = vsub.f32 %v248, %v1421
        %v1659 = vsub.f32 %v249, %v1423
        %v1660 = vsub.f32 %v250, %v1425
        %v1661 = vsub.f32 %v251, %v1427
        %v1662 = vsub.f32 %v252, %v1429
        %v1663 = vsub.f32 %v253, %v1431
        %v1664 = vsub.f32 %v254, %v1433
        %v1665 = vsub.f32 %v255, %v1435
        %v1666 = vsub.f32 %v256, %v1437
        %v1667 = vsub.f32 %v257, %v1439
        %v1668 = vsub.f32 %v258, %v1441
        %v1669 = vsub.f32 %v259, %v1443
        %v1670 = vsub.f32 %v260, %v1445
        %v1671 = vsub.f32 %v261, %v1447
        %v1672 = vsub.f32 %v262, %v1449
        %v1673 = vsub.f32 %v263, %v1451
        %v1674 = vsub.f32 %v264, %v1453
        %v1675 = vsub.f32 %v265, %v1455
        %v1676 = vsub.f32 %v266, %v1457
        %v1677 = vsub.f32 %v267, %v1459
        %v1678 = vsub.f32 %v268, %v1461
        %v1679 = vsub.f32 %v269, %v1463
        %v1680 = vsub.f32 %v270, %v1465
        %v1681 = vsub.f32 %v271, %v1467
        %v1682 = vsub.f32 %v272, %v1469
        %v1683 = vsub.f32 %v273, %v1471
        %v1684 = vsub.f32 %v274, %v1473
        %v1685 = vsub.f32 %v275, %v1475
        %v1686 = vsub.f32 %v276, %v1477
        %v1687 = vsub.f32 %v277, %v1479
        %v1688 = vsub.f32 %v278, %v1481
        %v1689 = vsub.f32 %v279, %v1483
        %v1690 = vsub.f32 %v280, %v1485
        %v1691 = vsub.f32 %v281, %v1487
        %v1692 = vsub.f32 %v282, %v1489
        %v1693 = vsub.f32 %v283, %v1491
        %v1694 = vsub.f32 %v284, %v1493
        %v1695 = vsub.f32 %v285, %v1495
        %v1696 = vsub.f32 %v286, %v1497
        %v1697 = vsub.f32 %v287, %v1499
        %v1698 = vsub.f32 %v288, %v1501
        %v1699 = vsub.f32 %v289, %v1503
        %v1700 = vsub.f32 %v290, %v1505
        %v1701 = vsub.f32 %v291, %v1507
        %v1702 = vsub.f32 %v292, %v1509
        %v1703 = vsub.f32 %v293, %v1511
        %v1704 = vsub.f32 %v294, %v1513
        %v1705 = vsub.f32 %v295, %v1515
        %v1706 = vsub.f32 %v296, %v1517
        %v1707 = vsub.f32 %v297, %v1519
        %v1708 = vsub.f32 %v298, %v1521
        %v1709 = vsub.f32 %v299, %v1523
        %v1710 = vsub.f32 %v300, %v1525
        %v1711 = vsub.f32 %v301, %v1527
        %v1712 = vsub.f32 %v302, %v1529
        %v1713 = vsub.f32 %v303, %v1531
        %v1714 = vsub.f32 %v304, %v1533
        %v1715 = vsub.f32 %v305, %v1535
        %v1716 = vsub.f32 %v306, %v1537
        %v1717 = vsub.f32 %v307, %v1539
        %v1718 = vsub.f32 %v308, %v1541
        %v1719 = vsub.f32 %v309, %v1543
        %v1720 = vsub.f32 %v310, %v1545
        %v1721 = vsub.f32 %v311, %v1547
        %v1722 = vsub.f32 %v312, %v1549
        %v1723 = vsub.f32 %v313, %v1551
        %v1724 = vsub.f32 %v314, %v1553
        %v1725 = vsub.f32 %v315, %v1555
        %v1726 = vsub.f32 %v316, %v1557
        %v1727 = vsub.f32 %v317, %v1559
        %v1728 = vsub.f32 %v318, %v1561
        %v1729 = vsub.f32 %v319, %v1563
        %v1730 = vsub.f32 %v320, %v1565
        %v1731 = vsub.f32 %v321, %v1567
        %v1732 = vsub.f32 %v322, %v1569
        %v1733 = vsub.f32 %v323, %v1571
        %v1734 = vsub.f32 %v324, %v1573
        %v1735 = vsub.f32 %v325, %v1575
        %v1736 = vsub.f32 %v326, %v1577
        %v1737 = vsub.f32 %v327, %v1579
        %v1738 = vsub.f32 %v328, %v1581
        %v1739 = vsub.f32 %v329, %v1583
        %v1740 = vsub.f32 %v330, %v1585
        %v1741 = vsub.f32 %v331, %v1587
        %v1742 = vsub.f32 %v332, %v1589
        %v1743 = vsub.f32 %v333, %v1591
        %v1744 = vsub.f32 %v334, %v1593
        %v1745 = vsub.f32 %v335, %v1595
        %v1746 = vsub.f32 %v336, %v1597
        %v1747 = vsub.f32 %v337, %v1599
        %v1748 = vsub.f32 %v338, %v1601
        %v1749 = vsub.f32 %v339, %v1603
        %v1750 = vsub.f32 %v340, %v1605
        %v1751 = vsub.f32 %v341, %v1607
        %v1752 = vsub.f32 %v342, %v1609
        %v1753 = vsub.f32 %v343, %v1611
        %v1754 = vsub.f32 %v344, %v1613
        %v1755 = vsub.f32 %v345, %v1615
        %v1756 = vsub.f32 %v346, %v1617
        %v1757 = vsub.f32 %v347, %v1619
        %v1758 = vsub.f32 %v348, %v1621
        %v1759 = vsub.f32 %v349, %v1623
        %v1760 = vsub.f32 %v350, %v1625
        %v1761 = vsub.f32 %v351, %v1627
        %v1762 = vsub.f32 %v352, %v1629
        %v1763 = vsub.f32 %v353, %v1631
        %v1764 = vsub.f32 %v354, %v1633
        %v1765 = vsub.f32 %v355, %v1635
        %v1766 = vsub.f32 %v356, %v1637
        %v1767 = vsub.f32 %v357, %v1639
        %v1768 = vmul.f32 %v1640, 1.442695
        %v1769 = vpow.pop %v1768
        %v1770 = vmul.f32 %v1641, 1.442695
        %v1771 = vpow.pop %v1770
        %v1772 = vmul.f32 %v1642, 1.442695
        %v1773 = vpow.pop %v1772
        %v1774 = vmul.f32 %v1643, 1.442695
        %v1775 = vpow.pop %v1774
        %v1776 = vmul.f32 %v1644, 1.442695
        %v1777 = vpow.pop %v1776
        %v1778 = vmul.f32 %v1645, 1.442695
        %v1779 = vpow.pop %v1778
        %v1780 = vmul.f32 %v1646, 1.442695
        %v1781 = vpow.pop %v1780
        %v1782 = vmul.f32 %v1647, 1.442695
        %v1783 = vpow.pop %v1782
        %v1784 = vmul.f32 %v1648, 1.442695
        %v1785 = vpow.pop %v1784
        %v1786 = vmul.f32 %v1649, 1.442695
        %v1787 = vpow.pop %v1786
        %v1788 = vmul.f32 %v1650, 1.442695
        %v1789 = vpow.pop %v1788
        %v1790 = vmul.f32 %v1651, 1.442695
        %v1791 = vpow.pop %v1790
        %v1792 = vmul.f32 %v1652, 1.442695
        %v1793 = vpow.pop %v1792
        %v1794 = vmul.f32 %v1653, 1.442695
        %v1795 = vpow.pop %v1794
        %v1796 = vmul.f32 %v1654, 1.442695
        %v1797 = vpow.pop %v1796
        %v1798 = vmul.f32 %v1655, 1.442695
        %v1799 = vpow.pop %v1798
        %v1800 = vmul.f32 %v1656, 1.442695
        %v1801 = vpow.pop %v1800
        %v1802 = vmul.f32 %v1657, 1.442695
        %v1803 = vpow.pop %v1802
        %v1804 = vmul.f32 %v1658, 1.442695
        %v1805 = vpow.pop %v1804
        %v1806 = vmul.f32 %v1659, 1.442695
        %v1807 = vpow.pop %v1806
        %v1808 = vmul.f32 %v1660, 1.442695
        %v1809 = vpow.pop %v1808
        %v1810 = vmul.f32 %v1661, 1.442695
        %v1811 = vpow.pop %v1810
        %v1812 = vmul.f32 %v1662, 1.442695
        %v1813 = vpow.pop %v1812
        %v1814 = vmul.f32 %v1663, 1.442695
        %v1815 = vpow.pop %v1814
        %v1816 = vmul.f32 %v1664, 1.442695
        %v1817 = vpow.pop %v1816
        %v1818 = vmul.f32 %v1665, 1.442695
        %v1819 = vpow.pop %v1818
        %v1820 = vmul.f32 %v1666, 1.442695
        %v1821 = vpow.pop %v1820
        %v1822 = vmul.f32 %v1667, 1.442695
        %v1823 = vpow.pop %v1822
        %v1824 = vmul.f32 %v1668, 1.442695
        %v1825 = vpow.pop %v1824
        %v1826 = vmul.f32 %v1669, 1.442695
        %v1827 = vpow.pop %v1826
        %v1828 = vmul.f32 %v1670, 1.442695
        %v1829 = vpow.pop %v1828
        %v1830 = vmul.f32 %v1671, 1.442695
        %v1831 = vpow.pop %v1830
        %v1832 = vmul.f32 %v1672, 1.442695
        %v1833 = vpow.pop %v1832
        %v1834 = vmul.f32 %v1673, 1.442695
        %v1835 = vpow.pop %v1834
        %v1836 = vmul.f32 %v1674, 1.442695
        %v1837 = vpow.pop %v1836
        %v1838 = vmul.f32 %v1675, 1.442695
        %v1839 = vpow.pop %v1838
        %v1840 = vmul.f32 %v1676, 1.442695
        %v1841 = vpow.pop %v1840
        %v1842 = vmul.f32 %v1677, 1.442695
        %v1843 = vpow.pop %v1842
        %v1844 = vmul.f32 %v1678, 1.442695
        %v1845 = vpow.pop %v1844
        %v1846 = vmul.f32 %v1679, 1.442695
        %v1847 = vpow.pop %v1846
        %v1848 = vmul.f32 %v1680, 1.442695
        %v1849 = vpow.pop %v1848
        %v1850 = vmul.f32 %v1681, 1.442695
        %v1851 = vpow.pop %v1850
        %v1852 = vmul.f32 %v1682, 1.442695
        %v1853 = vpow.pop %v1852
        %v1854 = vmul.f32 %v1683, 1.442695
        %v1855 = vpow.pop %v1854
        %v1856 = vmul.f32 %v1684, 1.442695
        %v1857 = vpow.pop %v1856
        %v1858 = vmul.f32 %v1685, 1.442695
        %v1859 = vpow.pop %v1858
        %v1860 = vmul.f32 %v1686, 1.442695
        %v1861 = vpow.pop %v1860
        %v1862 = vmul.f32 %v1687, 1.442695
        %v1863 = vpow.pop %v1862
        %v1864 = vmul.f32 %v1688, 1.442695
        %v1865 = vpow.pop %v1864
        %v1866 = vmul.f32 %v1689, 1.442695
        %v1867 = vpow.pop %v1866
        %v1868 = vmul.f32 %v1690, 1.442695
        %v1869 = vpow.pop %v1868
        %v1870 = vmul.f32 %v1691, 1.442695
        %v1871 = vpow.pop %v1870
        %v1872 = vmul.f32 %v1692, 1.442695
        %v1873 = vpow.pop %v1872
        %v1874 = vmul.f32 %v1693, 1.442695
        %v1875 = vpow.pop %v1874
        %v1876 = vmul.f32 %v1694, 1.442695
        %v1877 = vpow.pop %v1876
        %v1878 = vmul.f32 %v1695, 1.442695
        %v1879 = vpow.pop %v1878
        %v1880 = vmul.f32 %v1696, 1.442695
        %v1881 = vpow.pop %v1880
        %v1882 = vmul.f32 %v1697, 1.442695
        %v1883 = vpow.pop %v1882
        %v1884 = vmul.f32 %v1698, 1.442695
        %v1885 = vpow.pop %v1884
        %v1886 = vmul.f32 %v1699, 1.442695
        %v1887 = vpow.pop %v1886
        %v1888 = vmul.f32 %v1700, 1.442695
        %v1889 = vpow.pop %v1888
        %v1890 = vmul.f32 %v1701, 1.442695
        %v1891 = vpow.pop %v1890
        %v1892 = vmul.f32 %v1702, 1.442695
        %v1893 = vpow.pop %v1892
        %v1894 = vmul.f32 %v1703, 1.442695
        %v1895 = vpow.pop %v1894
        %v1896 = vmul.f32 %v1704, 1.442695
        %v1897 = vpow.pop %v1896
        %v1898 = vmul.f32 %v1705, 1.442695
        %v1899 = vpow.pop %v1898
        %v1900 = vmul.f32 %v1706, 1.442695
        %v1901 = vpow.pop %v1900
        %v1902 = vmul.f32 %v1707, 1.442695
        %v1903 = vpow.pop %v1902
        %v1904 = vmul.f32 %v1708, 1.442695
        %v1905 = vpow.pop %v1904
        %v1906 = vmul.f32 %v1709, 1.442695
        %v1907 = vpow.pop %v1906
        %v1908 = vmul.f32 %v1710, 1.442695
        %v1909 = vpow.pop %v1908
        %v1910 = vmul.f32 %v1711, 1.442695
        %v1911 = vpow.pop %v1910
        %v1912 = vmul.f32 %v1712, 1.442695
        %v1913 = vpow.pop %v1912
        %v1914 = vmul.f32 %v1713, 1.442695
        %v1915 = vpow.pop %v1914
        %v1916 = vmul.f32 %v1714, 1.442695
        %v1917 = vpow.pop %v1916
        %v1918 = vmul.f32 %v1715, 1.442695
        %v1919 = vpow.pop %v1918
        %v1920 = vmul.f32 %v1716, 1.442695
        %v1921 = vpow.pop %v1920
        %v1922 = vmul.f32 %v1717, 1.442695
        %v1923 = vpow.pop %v1922
        %v1924 = vmul.f32 %v1718, 1.442695
        %v1925 = vpow.pop %v1924
        %v1926 = vmul.f32 %v1719, 1.442695
        %v1927 = vpow.pop %v1926
        %v1928 = vmul.f32 %v1720, 1.442695
        %v1929 = vpow.pop %v1928
        %v1930 = vmul.f32 %v1721, 1.442695
        %v1931 = vpow.pop %v1930
        %v1932 = vmul.f32 %v1722, 1.442695
        %v1933 = vpow.pop %v1932
        %v1934 = vmul.f32 %v1723, 1.442695
        %v1935 = vpow.pop %v1934
        %v1936 = vmul.f32 %v1724, 1.442695
        %v1937 = vpow.pop %v1936
        %v1938 = vmul.f32 %v1725, 1.442695
        %v1939 = vpow.pop %v1938
        %v1940 = vmul.f32 %v1726, 1.442695
        %v1941 = vpow.pop %v1940
        %v1942 = vmul.f32 %v1727, 1.442695
        %v1943 = vpow.pop %v1942
        %v1944 = vmul.f32 %v1728, 1.442695
        %v1945 = vpow.pop %v1944
        %v1946 = vmul.f32 %v1729, 1.442695
        %v1947 = vpow.pop %v1946
        %v1948 = vmul.f32 %v1730, 1.442695
        %v1949 = vpow.pop %v1948
        %v1950 = vmul.f32 %v1731, 1.442695
        %v1951 = vpow.pop %v1950
        %v1952 = vmul.f32 %v1732, 1.442695
        %v1953 = vpow.pop %v1952
        %v1954 = vmul.f32 %v1733, 1.442695
        %v1955 = vpow.pop %v1954
        %v1956 = vmul.f32 %v1734, 1.442695
        %v1957 = vpow.pop %v1956
        %v1958 = vmul.f32 %v1735, 1.442695
        %v1959 = vpow.pop %v1958
        %v1960 = vmul.f32 %v1736, 1.442695
        %v1961 = vpow.pop %v1960
        %v1962 = vmul.f32 %v1737, 1.442695
        %v1963 = vpow.pop %v1962
        %v1964 = vmul.f32 %v1738, 1.442695
        %v1965 = vpow.pop %v1964
        %v1966 = vmul.f32 %v1739, 1.442695
        %v1967 = vpow.pop %v1966
        %v1968 = vmul.f32 %v1740, 1.442695
        %v1969 = vpow.pop %v1968
        %v1970 = vmul.f32 %v1741, 1.442695
        %v1971 = vpow.pop %v1970
        %v1972 = vmul.f32 %v1742, 1.442695
        %v1973 = vpow.pop %v1972
        %v1974 = vmul.f32 %v1743, 1.442695
        %v1975 = vpow.pop %v1974
        %v1976 = vmul.f32 %v1744, 1.442695
        %v1977 = vpow.pop %v1976
        %v1978 = vmul.f32 %v1745, 1.442695
        %v1979 = vpow.pop %v1978
        %v1980 = vmul.f32 %v1746, 1.442695
        %v1981 = vpow.pop %v1980
        %v1982 = vmul.f32 %v1747, 1.442695
        %v1983 = vpow.pop %v1982
        %v1984 = vmul.f32 %v1748, 1.442695
        %v1985 = vpow.pop %v1984
        %v1986 = vmul.f32 %v1749, 1.442695
        %v1987 = vpow.pop %v1986
        %v1988 = vmul.f32 %v1750, 1.442695
        %v1989 = vpow.pop %v1988
        %v1990 = vmul.f32 %v1751, 1.442695
        %v1991 = vpow.pop %v1990
        %v1992 = vmul.f32 %v1752, 1.442695
        %v1993 = vpow.pop %v1992
        %v1994 = vmul.f32 %v1753, 1.442695
        %v1995 = vpow.pop %v1994
        %v1996 = vmul.f32 %v1754, 1.442695
        %v1997 = vpow.pop %v1996
        %v1998 = vmul.f32 %v1755, 1.442695
        %v1999 = vpow.pop %v1998
        %v2000 = vmul.f32 %v1756, 1.442695
        %v2001 = vpow.pop %v2000
        %v2002 = vmul.f32 %v1757, 1.442695
        %v2003 = vpow.pop %v2002
        %v2004 = vmul.f32 %v1758, 1.442695
        %v2005 = vpow.pop %v2004
        %v2006 = vmul.f32 %v1759, 1.442695
        %v2007 = vpow.pop %v2006
        %v2008 = vmul.f32 %v1760, 1.442695
        %v2009 = vpow.pop %v2008
        %v2010 = vmul.f32 %v1761, 1.442695
        %v2011 = vpow.pop %v2010
        %v2012 = vmul.f32 %v1762, 1.442695
        %v2013 = vpow.pop %v2012
        %v2014 = vmul.f32 %v1763, 1.442695
        %v2015 = vpow.pop %v2014
        %v2016 = vmul.f32 %v1764, 1.442695
        %v2017 = vpow.pop %v2016
        %v2018 = vmul.f32 %v1765, 1.442695
        %v2019 = vpow.pop %v2018
        %v2020 = vmul.f32 %v1766, 1.442695
        %v2021 = vpow.pop %v2020
        %v2022 = vmul.f32 %v1767, 1.442695
        %v2023 = vpow.pop %v2022
        %2024 = vadd.xlane.f32.xlu0 %v1769
        %v2025 = vpop.xlane.xlu0 %2024
        %2026 = vadd.xlane.f32.xlu0 %v1771
        %v2027 = vpop.xlane.xlu0 %2026
        %2028 = vadd.xlane.f32.xlu0 %v1773
        %v2029 = vpop.xlane.xlu0 %2028
        %2030 = vadd.xlane.f32.xlu0 %v1775
        %v2031 = vpop.xlane.xlu0 %2030
        %2032 = vadd.xlane.f32.xlu0 %v1777
        %v2033 = vpop.xlane.xlu0 %2032
        %2034 = vadd.xlane.f32.xlu0 %v1779
        %v2035 = vpop.xlane.xlu0 %2034
        %2036 = vadd.xlane.f32.xlu0 %v1781
        %v2037 = vpop.xlane.xlu0 %2036
        %2038 = vadd.xlane.f32.xlu0 %v1783
        %v2039 = vpop.xlane.xlu0 %2038
        %2040 = vadd.xlane.f32.xlu0 %v1785
        %v2041 = vpop.xlane.xlu0 %2040
        %2042 = vadd.xlane.f32.xlu0 %v1787
        %v2043 = vpop.xlane.xlu0 %2042
        %2044 = vadd.xlane.f32.xlu0 %v1789
        %v2045 = vpop.xlane.xlu0 %2044
        %2046 = vadd.xlane.f32.xlu0 %v1791
        %v2047 = vpop.xlane.xlu0 %2046
        %2048 = vadd.xlane.f32.xlu0 %v1793
        %v2049 = vpop.xlane.xlu0 %2048
        %2050 = vadd.xlane.f32.xlu0 %v1795
        %v2051 = vpop.xlane.xlu0 %2050
        %2052 = vadd.xlane.f32.xlu0 %v1797
        %v2053 = vpop.xlane.xlu0 %2052
        %2054 = vadd.xlane.f32.xlu0 %v1799
        %v2055 = vpop.xlane.xlu0 %2054
        %2056 = vadd.xlane.f32.xlu0 %v1801
        %v2057 = vpop.xlane.xlu0 %2056
        %2058 = vadd.xlane.f32.xlu0 %v1803
        %v2059 = vpop.xlane.xlu0 %2058
        %2060 = vadd.xlane.f32.xlu0 %v1805
        %v2061 = vpop.xlane.xlu0 %2060
        %2062 = vadd.xlane.f32.xlu0 %v1807
        %v2063 = vpop.xlane.xlu0 %2062
        %2064 = vadd.xlane.f32.xlu0 %v1809
        %v2065 = vpop.xlane.xlu0 %2064
        %2066 = vadd.xlane.f32.xlu0 %v1811
        %v2067 = vpop.xlane.xlu0 %2066
        %2068 = vadd.xlane.f32.xlu0 %v1813
        %v2069 = vpop.xlane.xlu0 %2068
        %2070 = vadd.xlane.f32.xlu0 %v1815
        %v2071 = vpop.xlane.xlu0 %2070
        %2072 = vadd.xlane.f32.xlu0 %v1817
        %v2073 = vpop.xlane.xlu0 %2072
        %2074 = vadd.xlane.f32.xlu0 %v1819
        %v2075 = vpop.xlane.xlu0 %2074
        %2076 = vadd.xlane.f32.xlu0 %v1821
        %v2077 = vpop.xlane.xlu0 %2076
        %2078 = vadd.xlane.f32.xlu0 %v1823
        %v2079 = vpop.xlane.xlu0 %2078
        %2080 = vadd.xlane.f32.xlu0 %v1825
        %v2081 = vpop.xlane.xlu0 %2080
        %2082 = vadd.xlane.f32.xlu0 %v1827
        %v2083 = vpop.xlane.xlu0 %2082
        %2084 = vadd.xlane.f32.xlu0 %v1829
        %v2085 = vpop.xlane.xlu0 %2084
        %2086 = vadd.xlane.f32.xlu0 %v1831
        %v2087 = vpop.xlane.xlu0 %2086
        %2088 = vadd.xlane.f32.xlu0 %v1833
        %v2089 = vpop.xlane.xlu0 %2088
        %2090 = vadd.xlane.f32.xlu0 %v1835
        %v2091 = vpop.xlane.xlu0 %2090
        %2092 = vadd.xlane.f32.xlu0 %v1837
        %v2093 = vpop.xlane.xlu0 %2092
        %2094 = vadd.xlane.f32.xlu0 %v1839
        %v2095 = vpop.xlane.xlu0 %2094
        %2096 = vadd.xlane.f32.xlu0 %v1841
        %v2097 = vpop.xlane.xlu0 %2096
        %2098 = vadd.xlane.f32.xlu0 %v1843
        %v2099 = vpop.xlane.xlu0 %2098
        %2100 = vadd.xlane.f32.xlu0 %v1845
        %v2101 = vpop.xlane.xlu0 %2100
        %2102 = vadd.xlane.f32.xlu0 %v1847
        %v2103 = vpop.xlane.xlu0 %2102
        %2104 = vadd.xlane.f32.xlu0 %v1849
        %v2105 = vpop.xlane.xlu0 %2104
        %2106 = vadd.xlane.f32.xlu0 %v1851
        %v2107 = vpop.xlane.xlu0 %2106
        %2108 = vadd.xlane.f32.xlu0 %v1853
        %v2109 = vpop.xlane.xlu0 %2108
        %2110 = vadd.xlane.f32.xlu0 %v1855
        %v2111 = vpop.xlane.xlu0 %2110
        %2112 = vadd.xlane.f32.xlu0 %v1857
        %v2113 = vpop.xlane.xlu0 %2112
        %2114 = vadd.xlane.f32.xlu0 %v1859
        %v2115 = vpop.xlane.xlu0 %2114
        %2116 = vadd.xlane.f32.xlu0 %v1861
        %v2117 = vpop.xlane.xlu0 %2116
        %2118 = vadd.xlane.f32.xlu0 %v1863
        %v2119 = vpop.xlane.xlu0 %2118
        %2120 = vadd.xlane.f32.xlu0 %v1865
        %v2121 = vpop.xlane.xlu0 %2120
        %2122 = vadd.xlane.f32.xlu0 %v1867
        %v2123 = vpop.xlane.xlu0 %2122
        %2124 = vadd.xlane.f32.xlu0 %v1869
        %v2125 = vpop.xlane.xlu0 %2124
        %2126 = vadd.xlane.f32.xlu0 %v1871
        %v2127 = vpop.xlane.xlu0 %2126
        %2128 = vadd.xlane.f32.xlu0 %v1873
        %v2129 = vpop.xlane.xlu0 %2128
        %2130 = vadd.xlane.f32.xlu0 %v1875
        %v2131 = vpop.xlane.xlu0 %2130
        %2132 = vadd.xlane.f32.xlu0 %v1877
        %v2133 = vpop.xlane.xlu0 %2132
        %2134 = vadd.xlane.f32.xlu0 %v1879
        %v2135 = vpop.xlane.xlu0 %2134
        %2136 = vadd.xlane.f32.xlu0 %v1881
        %v2137 = vpop.xlane.xlu0 %2136
        %2138 = vadd.xlane.f32.xlu0 %v1883
        %v2139 = vpop.xlane.xlu0 %2138
        %2140 = vadd.xlane.f32.xlu0 %v1885
        %v2141 = vpop.xlane.xlu0 %2140
        %2142 = vadd.xlane.f32.xlu0 %v1887
        %v2143 = vpop.xlane.xlu0 %2142
        %2144 = vadd.xlane.f32.xlu0 %v1889
        %v2145 = vpop.xlane.xlu0 %2144
        %2146 = vadd.xlane.f32.xlu0 %v1891
        %v2147 = vpop.xlane.xlu0 %2146
        %2148 = vadd.xlane.f32.xlu0 %v1893
        %v2149 = vpop.xlane.xlu0 %2148
        %2150 = vadd.xlane.f32.xlu0 %v1895
        %v2151 = vpop.xlane.xlu0 %2150
        %2152 = vadd.xlane.f32.xlu0 %v1897
        %v2153 = vpop.xlane.xlu0 %2152
        %2154 = vadd.xlane.f32.xlu0 %v1899
        %v2155 = vpop.xlane.xlu0 %2154
        %2156 = vadd.xlane.f32.xlu0 %v1901
        %v2157 = vpop.xlane.xlu0 %2156
        %2158 = vadd.xlane.f32.xlu0 %v1903
        %v2159 = vpop.xlane.xlu0 %2158
        %2160 = vadd.xlane.f32.xlu0 %v1905
        %v2161 = vpop.xlane.xlu0 %2160
        %2162 = vadd.xlane.f32.xlu0 %v1907
        %v2163 = vpop.xlane.xlu0 %2162
        %2164 = vadd.xlane.f32.xlu0 %v1909
        %v2165 = vpop.xlane.xlu0 %2164
        %2166 = vadd.xlane.f32.xlu0 %v1911
        %v2167 = vpop.xlane.xlu0 %2166
        %2168 = vadd.xlane.f32.xlu0 %v1913
        %v2169 = vpop.xlane.xlu0 %2168
        %2170 = vadd.xlane.f32.xlu0 %v1915
        %v2171 = vpop.xlane.xlu0 %2170
        %2172 = vadd.xlane.f32.xlu0 %v1917
        %v2173 = vpop.xlane.xlu0 %2172
        %2174 = vadd.xlane.f32.xlu0 %v1919
        %v2175 = vpop.xlane.xlu0 %2174
        %2176 = vadd.xlane.f32.xlu0 %v1921
        %v2177 = vpop.xlane.xlu0 %2176
        %2178 = vadd.xlane.f32.xlu0 %v1923
        %v2179 = vpop.xlane.xlu0 %2178
        %2180 = vadd.xlane.f32.xlu0 %v1925
        %v2181 = vpop.xlane.xlu0 %2180
        %2182 = vadd.xlane.f32.xlu0 %v1927
        %v2183 = vpop.xlane.xlu0 %2182
        %2184 = vadd.xlane.f32.xlu0 %v1929
        %v2185 = vpop.xlane.xlu0 %2184
        %2186 = vadd.xlane.f32.xlu0 %v1931
        %v2187 = vpop.xlane.xlu0 %2186
        %2188 = vadd.xlane.f32.xlu0 %v1933
        %v2189 = vpop.xlane.xlu0 %2188
        %2190 = vadd.xlane.f32.xlu0 %v1935
        %v2191 = vpop.xlane.xlu0 %2190
        %2192 = vadd.xlane.f32.xlu0 %v1937
        %v2193 = vpop.xlane.xlu0 %2192
        %2194 = vadd.xlane.f32.xlu0 %v1939
        %v2195 = vpop.xlane.xlu0 %2194
        %2196 = vadd.xlane.f32.xlu0 %v1941
        %v2197 = vpop.xlane.xlu0 %2196
        %2198 = vadd.xlane.f32.xlu0 %v1943
        %v2199 = vpop.xlane.xlu0 %2198
        %2200 = vadd.xlane.f32.xlu0 %v1945
        %v2201 = vpop.xlane.xlu0 %2200
        %2202 = vadd.xlane.f32.xlu0 %v1947
        %v2203 = vpop.xlane.xlu0 %2202
        %2204 = vadd.xlane.f32.xlu0 %v1949
        %v2205 = vpop.xlane.xlu0 %2204
        %2206 = vadd.xlane.f32.xlu0 %v1951
        %v2207 = vpop.xlane.xlu0 %2206
        %2208 = vadd.xlane.f32.xlu0 %v1953
        %v2209 = vpop.xlane.xlu0 %2208
        %2210 = vadd.xlane.f32.xlu0 %v1955
        %v2211 = vpop.xlane.xlu0 %2210
        %2212 = vadd.xlane.f32.xlu0 %v1957
        %v2213 = vpop.xlane.xlu0 %2212
        %2214 = vadd.xlane.f32.xlu0 %v1959
        %v2215 = vpop.xlane.xlu0 %2214
        %2216 = vadd.xlane.f32.xlu0 %v1961
        %v2217 = vpop.xlane.xlu0 %2216
        %2218 = vadd.xlane.f32.xlu0 %v1963
        %v2219 = vpop.xlane.xlu0 %2218
        %2220 = vadd.xlane.f32.xlu0 %v1965
        %v2221 = vpop.xlane.xlu0 %2220
        %2222 = vadd.xlane.f32.xlu0 %v1967
        %v2223 = vpop.xlane.xlu0 %2222
        %2224 = vadd.xlane.f32.xlu0 %v1969
        %v2225 = vpop.xlane.xlu0 %2224
        %2226 = vadd.xlane.f32.xlu0 %v1971
        %v2227 = vpop.xlane.xlu0 %2226
        %2228 = vadd.xlane.f32.xlu0 %v1973
        %v2229 = vpop.xlane.xlu0 %2228
        %2230 = vadd.xlane.f32.xlu0 %v1975
        %v2231 = vpop.xlane.xlu0 %2230
        %2232 = vadd.xlane.f32.xlu0 %v1977
        %v2233 = vpop.xlane.xlu0 %2232
        %2234 = vadd.xlane.f32.xlu0 %v1979
        %v2235 = vpop.xlane.xlu0 %2234
        %2236 = vadd.xlane.f32.xlu0 %v1981
        %v2237 = vpop.xlane.xlu0 %2236
        %2238 = vadd.xlane.f32.xlu0 %v1983
        %v2239 = vpop.xlane.xlu0 %2238
        %2240 = vadd.xlane.f32.xlu0 %v1985
        %v2241 = vpop.xlane.xlu0 %2240
        %2242 = vadd.xlane.f32.xlu0 %v1987
        %v2243 = vpop.xlane.xlu0 %2242
        %2244 = vadd.xlane.f32.xlu0 %v1989
        %v2245 = vpop.xlane.xlu0 %2244
        %2246 = vadd.xlane.f32.xlu0 %v1991
        %v2247 = vpop.xlane.xlu0 %2246
        %2248 = vadd.xlane.f32.xlu0 %v1993
        %v2249 = vpop.xlane.xlu0 %2248
        %2250 = vadd.xlane.f32.xlu0 %v1995
        %v2251 = vpop.xlane.xlu0 %2250
        %2252 = vadd.xlane.f32.xlu0 %v1997
        %v2253 = vpop.xlane.xlu0 %2252
        %2254 = vadd.xlane.f32.xlu0 %v1999
        %v2255 = vpop.xlane.xlu0 %2254
        %2256 = vadd.xlane.f32.xlu0 %v2001
        %v2257 = vpop.xlane.xlu0 %2256
        %2258 = vadd.xlane.f32.xlu0 %v2003
        %v2259 = vpop.xlane.xlu0 %2258
        %2260 = vadd.xlane.f32.xlu0 %v2005
        %v2261 = vpop.xlane.xlu0 %2260
        %2262 = vadd.xlane.f32.xlu0 %v2007
        %v2263 = vpop.xlane.xlu0 %2262
        %2264 = vadd.xlane.f32.xlu0 %v2009
        %v2265 = vpop.xlane.xlu0 %2264
        %2266 = vadd.xlane.f32.xlu0 %v2011
        %v2267 = vpop.xlane.xlu0 %2266
        %2268 = vadd.xlane.f32.xlu0 %v2013
        %v2269 = vpop.xlane.xlu0 %2268
        %2270 = vadd.xlane.f32.xlu0 %v2015
        %v2271 = vpop.xlane.xlu0 %2270
        %2272 = vadd.xlane.f32.xlu0 %v2017
        %v2273 = vpop.xlane.xlu0 %2272
        %2274 = vadd.xlane.f32.xlu0 %v2019
        %v2275 = vpop.xlane.xlu0 %2274
        %2276 = vadd.xlane.f32.xlu0 %v2021
        %v2277 = vpop.xlane.xlu0 %2276
        %2278 = vadd.xlane.f32.xlu0 %v2023
        %v2279 = vpop.xlane.xlu0 %2278
        %v2280 = vlog2.pop %v2025
        %v2281 = vmul.f32 %v2280, 0.6931472
        %v2282 = vlog2.pop %v2027
        %v2283 = vmul.f32 %v2282, 0.6931472
        %v2284 = vlog2.pop %v2029
        %v2285 = vmul.f32 %v2284, 0.6931472
        %v2286 = vlog2.pop %v2031
        %v2287 = vmul.f32 %v2286, 0.6931472
        %v2288 = vlog2.pop %v2033
        %v2289 = vmul.f32 %v2288, 0.6931472
        %v2290 = vlog2.pop %v2035
        %v2291 = vmul.f32 %v2290, 0.6931472
        %v2292 = vlog2.pop %v2037
        %v2293 = vmul.f32 %v2292, 0.6931472
        %v2294 = vlog2.pop %v2039
        %v2295 = vmul.f32 %v2294, 0.6931472
        %v2296 = vlog2.pop %v2041
        %v2297 = vmul.f32 %v2296, 0.6931472
        %v2298 = vlog2.pop %v2043
        %v2299 = vmul.f32 %v2298, 0.6931472
        %v2300 = vlog2.pop %v2045
        %v2301 = vmul.f32 %v2300, 0.6931472
        %v2302 = vlog2.pop %v2047
        %v2303 = vmul.f32 %v2302, 0.6931472
        %v2304 = vlog2.pop %v2049
        %v2305 = vmul.f32 %v2304, 0.6931472
        %v2306 = vlog2.pop %v2051
        %v2307 = vmul.f32 %v2306, 0.6931472
        %v2308 = vlog2.pop %v2053
        %v2309 = vmul.f32 %v2308, 0.6931472
        %v2310 = vlog2.pop %v2055
        %v2311 = vmul.f32 %v2310, 0.6931472
        %v2312 = vlog2.pop %v2057
        %v2313 = vmul.f32 %v2312, 0.6931472
        %v2314 = vlog2.pop %v2059
        %v2315 = vmul.f32 %v2314, 0.6931472
        %v2316 = vlog2.pop %v2061
        %v2317 = vmul.f32 %v2316, 0.6931472
        %v2318 = vlog2.pop %v2063
        %v2319 = vmul.f32 %v2318, 0.6931472
        %v2320 = vlog2.pop %v2065
        %v2321 = vmul.f32 %v2320, 0.6931472
        %v2322 = vlog2.pop %v2067
        %v2323 = vmul.f32 %v2322, 0.6931472
        %v2324 = vlog2.pop %v2069
        %v2325 = vmul.f32 %v2324, 0.6931472
        %v2326 = vlog2.pop %v2071
        %v2327 = vmul.f32 %v2326, 0.6931472
        %v2328 = vlog2.pop %v2073
        %v2329 = vmul.f32 %v2328, 0.6931472
        %v2330 = vlog2.pop %v2075
        %v2331 = vmul.f32 %v2330, 0.6931472
        %v2332 = vlog2.pop %v2077
        %v2333 = vmul.f32 %v2332, 0.6931472
        %v2334 = vlog2.pop %v2079
        %v2335 = vmul.f32 %v2334, 0.6931472
        %v2336 = vlog2.pop %v2081
        %v2337 = vmul.f32 %v2336, 0.6931472
        %v2338 = vlog2.pop %v2083
        %v2339 = vmul.f32 %v2338, 0.6931472
        %v2340 = vlog2.pop %v2085
        %v2341 = vmul.f32 %v2340, 0.6931472
        %v2342 = vlog2.pop %v2087
        %v2343 = vmul.f32 %v2342, 0.6931472
        %v2344 = vlog2.pop %v2089
        %v2345 = vmul.f32 %v2344, 0.6931472
        %v2346 = vlog2.pop %v2091
        %v2347 = vmul.f32 %v2346, 0.6931472
        %v2348 = vlog2.pop %v2093
        %v2349 = vmul.f32 %v2348, 0.6931472
        %v2350 = vlog2.pop %v2095
        %v2351 = vmul.f32 %v2350, 0.6931472
        %v2352 = vlog2.pop %v2097
        %v2353 = vmul.f32 %v2352, 0.6931472
        %v2354 = vlog2.pop %v2099
        %v2355 = vmul.f32 %v2354, 0.6931472
        %v2356 = vlog2.pop %v2101
        %v2357 = vmul.f32 %v2356, 0.6931472
        %v2358 = vlog2.pop %v2103
        %v2359 = vmul.f32 %v2358, 0.6931472
        %v2360 = vlog2.pop %v2105
        %v2361 = vmul.f32 %v2360, 0.6931472
        %v2362 = vlog2.pop %v2107
        %v2363 = vmul.f32 %v2362, 0.6931472
        %v2364 = vlog2.pop %v2109
        %v2365 = vmul.f32 %v2364, 0.6931472
        %v2366 = vlog2.pop %v2111
        %v2367 = vmul.f32 %v2366, 0.6931472
        %v2368 = vlog2.pop %v2113
        %v2369 = vmul.f32 %v2368, 0.6931472
        %v2370 = vlog2.pop %v2115
        %v2371 = vmul.f32 %v2370, 0.6931472
        %v2372 = vlog2.pop %v2117
        %v2373 = vmul.f32 %v2372, 0.6931472
        %v2374 = vlog2.pop %v2119
        %v2375 = vmul.f32 %v2374, 0.6931472
        %v2376 = vlog2.pop %v2121
        %v2377 = vmul.f32 %v2376, 0.6931472
        %v2378 = vlog2.pop %v2123
        %v2379 = vmul.f32 %v2378, 0.6931472
        %v2380 = vlog2.pop %v2125
        %v2381 = vmul.f32 %v2380, 0.6931472
        %v2382 = vlog2.pop %v2127
        %v2383 = vmul.f32 %v2382, 0.6931472
        %v2384 = vlog2.pop %v2129
        %v2385 = vmul.f32 %v2384, 0.6931472
        %v2386 = vlog2.pop %v2131
        %v2387 = vmul.f32 %v2386, 0.6931472
        %v2388 = vlog2.pop %v2133
        %v2389 = vmul.f32 %v2388, 0.6931472
        %v2390 = vlog2.pop %v2135
        %v2391 = vmul.f32 %v2390, 0.6931472
        %v2392 = vlog2.pop %v2137
        %v2393 = vmul.f32 %v2392, 0.6931472
        %v2394 = vlog2.pop %v2139
        %v2395 = vmul.f32 %v2394, 0.6931472
        %v2396 = vlog2.pop %v2141
        %v2397 = vmul.f32 %v2396, 0.6931472
        %v2398 = vlog2.pop %v2143
        %v2399 = vmul.f32 %v2398, 0.6931472
        %v2400 = vlog2.pop %v2145
        %v2401 = vmul.f32 %v2400, 0.6931472
        %v2402 = vlog2.pop %v2147
        %v2403 = vmul.f32 %v2402, 0.6931472
        %v2404 = vlog2.pop %v2149
        %v2405 = vmul.f32 %v2404, 0.6931472
        %v2406 = vlog2.pop %v2151
        %v2407 = vmul.f32 %v2406, 0.6931472
        %v2408 = vlog2.pop %v2153
        %v2409 = vmul.f32 %v2408, 0.6931472
        %v2410 = vlog2.pop %v2155
        %v2411 = vmul.f32 %v2410, 0.6931472
        %v2412 = vlog2.pop %v2157
        %v2413 = vmul.f32 %v2412, 0.6931472
        %v2414 = vlog2.pop %v2159
        %v2415 = vmul.f32 %v2414, 0.6931472
        %v2416 = vlog2.pop %v2161
        %v2417 = vmul.f32 %v2416, 0.6931472
        %v2418 = vlog2.pop %v2163
        %v2419 = vmul.f32 %v2418, 0.6931472
        %v2420 = vlog2.pop %v2165
        %v2421 = vmul.f32 %v2420, 0.6931472
        %v2422 = vlog2.pop %v2167
        %v2423 = vmul.f32 %v2422, 0.6931472
        %v2424 = vlog2.pop %v2169
        %v2425 = vmul.f32 %v2424, 0.6931472
        %v2426 = vlog2.pop %v2171
        %v2427 = vmul.f32 %v2426, 0.6931472
        %v2428 = vlog2.pop %v2173
        %v2429 = vmul.f32 %v2428, 0.6931472
        %v2430 = vlog2.pop %v2175
        %v2431 = vmul.f32 %v2430, 0.6931472
        %v2432 = vlog2.pop %v2177
        %v2433 = vmul.f32 %v2432, 0.6931472
        %v2434 = vlog2.pop %v2179
        %v2435 = vmul.f32 %v2434, 0.6931472
        %v2436 = vlog2.pop %v2181
        %v2437 = vmul.f32 %v2436, 0.6931472
        %v2438 = vlog2.pop %v2183
        %v2439 = vmul.f32 %v2438, 0.6931472
        %v2440 = vlog2.pop %v2185
        %v2441 = vmul.f32 %v2440, 0.6931472
        %v2442 = vlog2.pop %v2187
        %v2443 = vmul.f32 %v2442, 0.6931472
        %v2444 = vlog2.pop %v2189
        %v2445 = vmul.f32 %v2444, 0.6931472
        %v2446 = vlog2.pop %v2191
        %v2447 = vmul.f32 %v2446, 0.6931472
        %v2448 = vlog2.pop %v2193
        %v2449 = vmul.f32 %v2448, 0.6931472
        %v2450 = vlog2.pop %v2195
        %v2451 = vmul.f32 %v2450, 0.6931472
        %v2452 = vlog2.pop %v2197
        %v2453 = vmul.f32 %v2452, 0.6931472
        %v2454 = vlog2.pop %v2199
        %v2455 = vmul.f32 %v2454, 0.6931472
        %v2456 = vlog2.pop %v2201
        %v2457 = vmul.f32 %v2456, 0.6931472
        %v2458 = vlog2.pop %v2203
        %v2459 = vmul.f32 %v2458, 0.6931472
        %v2460 = vlog2.pop %v2205
        %v2461 = vmul.f32 %v2460, 0.6931472
        %v2462 = vlog2.pop %v2207
        %v2463 = vmul.f32 %v2462, 0.6931472
        %v2464 = vlog2.pop %v2209
        %v2465 = vmul.f32 %v2464, 0.6931472
        %v2466 = vlog2.pop %v2211
        %v2467 = vmul.f32 %v2466, 0.6931472
        %v2468 = vlog2.pop %v2213
        %v2469 = vmul.f32 %v2468, 0.6931472
        %v2470 = vlog2.pop %v2215
        %v2471 = vmul.f32 %v2470, 0.6931472
        %v2472 = vlog2.pop %v2217
        %v2473 = vmul.f32 %v2472, 0.6931472
        %v2474 = vlog2.pop %v2219
        %v2475 = vmul.f32 %v2474, 0.6931472
        %v2476 = vlog2.pop %v2221
        %v2477 = vmul.f32 %v2476, 0.6931472
        %v2478 = vlog2.pop %v2223
        %v2479 = vmul.f32 %v2478, 0.6931472
        %v2480 = vlog2.pop %v2225
        %v2481 = vmul.f32 %v2480, 0.6931472
        %v2482 = vlog2.pop %v2227
        %v2483 = vmul.f32 %v2482, 0.6931472
        %v2484 = vlog2.pop %v2229
        %v2485 = vmul.f32 %v2484, 0.6931472
        %v2486 = vlog2.pop %v2231
        %v2487 = vmul.f32 %v2486, 0.6931472
        %v2488 = vlog2.pop %v2233
        %v2489 = vmul.f32 %v2488, 0.6931472
        %v2490 = vlog2.pop %v2235
        %v2491 = vmul.f32 %v2490, 0.6931472
        %v2492 = vlog2.pop %v2237
        %v2493 = vmul.f32 %v2492, 0.6931472
        %v2494 = vlog2.pop %v2239
        %v2495 = vmul.f32 %v2494, 0.6931472
        %v2496 = vlog2.pop %v2241
        %v2497 = vmul.f32 %v2496, 0.6931472
        %v2498 = vlog2.pop %v2243
        %v2499 = vmul.f32 %v2498, 0.6931472
        %v2500 = vlog2.pop %v2245
        %v2501 = vmul.f32 %v2500, 0.6931472
        %v2502 = vlog2.pop %v2247
        %v2503 = vmul.f32 %v2502, 0.6931472
        %v2504 = vlog2.pop %v2249
        %v2505 = vmul.f32 %v2504, 0.6931472
        %v2506 = vlog2.pop %v2251
        %v2507 = vmul.f32 %v2506, 0.6931472
        %v2508 = vlog2.pop %v2253
        %v2509 = vmul.f32 %v2508, 0.6931472
        %v2510 = vlog2.pop %v2255
        %v2511 = vmul.f32 %v2510, 0.6931472
        %v2512 = vlog2.pop %v2257
        %v2513 = vmul.f32 %v2512, 0.6931472
        %v2514 = vlog2.pop %v2259
        %v2515 = vmul.f32 %v2514, 0.6931472
        %v2516 = vlog2.pop %v2261
        %v2517 = vmul.f32 %v2516, 0.6931472
        %v2518 = vlog2.pop %v2263
        %v2519 = vmul.f32 %v2518, 0.6931472
        %v2520 = vlog2.pop %v2265
        %v2521 = vmul.f32 %v2520, 0.6931472
        %v2522 = vlog2.pop %v2267
        %v2523 = vmul.f32 %v2522, 0.6931472
        %v2524 = vlog2.pop %v2269
        %v2525 = vmul.f32 %v2524, 0.6931472
        %v2526 = vlog2.pop %v2271
        %v2527 = vmul.f32 %v2526, 0.6931472
        %v2528 = vlog2.pop %v2273
        %v2529 = vmul.f32 %v2528, 0.6931472
        %v2530 = vlog2.pop %v2275
        %v2531 = vmul.f32 %v2530, 0.6931472
        %v2532 = vlog2.pop %v2277
        %v2533 = vmul.f32 %v2532, 0.6931472
        %v2534 = vlog2.pop %v2279
        %v2535 = vmul.f32 %v2534, 0.6931472
        %v2536 = vsub.f32 %v1640, %v2281
        %v2537 = vsub.f32 %v1641, %v2283
        %v2538 = vsub.f32 %v1642, %v2285
        %v2539 = vsub.f32 %v1643, %v2287
        %v2540 = vsub.f32 %v1644, %v2289
        %v2541 = vsub.f32 %v1645, %v2291
        %v2542 = vsub.f32 %v1646, %v2293
        %v2543 = vsub.f32 %v1647, %v2295
        %v2544 = vsub.f32 %v1648, %v2297
        %v2545 = vsub.f32 %v1649, %v2299
        %v2546 = vsub.f32 %v1650, %v2301
        %v2547 = vsub.f32 %v1651, %v2303
        %v2548 = vsub.f32 %v1652, %v2305
        %v2549 = vsub.f32 %v1653, %v2307
        %v2550 = vsub.f32 %v1654, %v2309
        %v2551 = vsub.f32 %v1655, %v2311
        %v2552 = vsub.f32 %v1656, %v2313
        %v2553 = vsub.f32 %v1657, %v2315
        %v2554 = vsub.f32 %v1658, %v2317
        %v2555 = vsub.f32 %v1659, %v2319
        %v2556 = vsub.f32 %v1660, %v2321
        %v2557 = vsub.f32 %v1661, %v2323
        %v2558 = vsub.f32 %v1662, %v2325
        %v2559 = vsub.f32 %v1663, %v2327
        %v2560 = vsub.f32 %v1664, %v2329
        %v2561 = vsub.f32 %v1665, %v2331
        %v2562 = vsub.f32 %v1666, %v2333
        %v2563 = vsub.f32 %v1667, %v2335
        %v2564 = vsub.f32 %v1668, %v2337
        %v2565 = vsub.f32 %v1669, %v2339
        %v2566 = vsub.f32 %v1670, %v2341
        %v2567 = vsub.f32 %v1671, %v2343
        %v2568 = vsub.f32 %v1672, %v2345
        %v2569 = vsub.f32 %v1673, %v2347
        %v2570 = vsub.f32 %v1674, %v2349
        %v2571 = vsub.f32 %v1675, %v2351
        %v2572 = vsub.f32 %v1676, %v2353
        %v2573 = vsub.f32 %v1677, %v2355
        %v2574 = vsub.f32 %v1678, %v2357
        %v2575 = vsub.f32 %v1679, %v2359
        %v2576 = vsub.f32 %v1680, %v2361
        %v2577 = vsub.f32 %v1681, %v2363
        %v2578 = vsub.f32 %v1682, %v2365
        %v2579 = vsub.f32 %v1683, %v2367
        %v2580 = vsub.f32 %v1684, %v2369
        %v2581 = vsub.f32 %v1685, %v2371
        %v2582 = vsub.f32 %v1686, %v2373
        %v2583 = vsub.f32 %v1687, %v2375
        %v2584 = vsub.f32 %v1688, %v2377
        %v2585 = vsub.f32 %v1689, %v2379
        %v2586 = vsub.f32 %v1690, %v2381
        %v2587 = vsub.f32 %v1691, %v2383
        %v2588 = vsub.f32 %v1692, %v2385
        %v2589 = vsub.f32 %v1693, %v2387
        %v2590 = vsub.f32 %v1694, %v2389
        %v2591 = vsub.f32 %v1695, %v2391
        %v2592 = vsub.f32 %v1696, %v2393
        %v2593 = vsub.f32 %v1697, %v2395
        %v2594 = vsub.f32 %v1698, %v2397
        %v2595 = vsub.f32 %v1699, %v2399
        %v2596 = vsub.f32 %v1700, %v2401
        %v2597 = vsub.f32 %v1701, %v2403
        %v2598 = vsub.f32 %v1702, %v2405
        %v2599 = vsub.f32 %v1703, %v2407
        %v2600 = vsub.f32 %v1704, %v2409
        %v2601 = vsub.f32 %v1705, %v2411
        %v2602 = vsub.f32 %v1706, %v2413
        %v2603 = vsub.f32 %v1707, %v2415
        %v2604 = vsub.f32 %v1708, %v2417
        %v2605 = vsub.f32 %v1709, %v2419
        %v2606 = vsub.f32 %v1710, %v2421
        %v2607 = vsub.f32 %v1711, %v2423
        %v2608 = vsub.f32 %v1712, %v2425
        %v2609 = vsub.f32 %v1713, %v2427
        %v2610 = vsub.f32 %v1714, %v2429
        %v2611 = vsub.f32 %v1715, %v2431
        %v2612 = vsub.f32 %v1716, %v2433
        %v2613 = vsub.f32 %v1717, %v2435
        %v2614 = vsub.f32 %v1718, %v2437
        %v2615 = vsub.f32 %v1719, %v2439
        %v2616 = vsub.f32 %v1720, %v2441
        %v2617 = vsub.f32 %v1721, %v2443
        %v2618 = vsub.f32 %v1722, %v2445
        %v2619 = vsub.f32 %v1723, %v2447
        %v2620 = vsub.f32 %v1724, %v2449
        %v2621 = vsub.f32 %v1725, %v2451
        %v2622 = vsub.f32 %v1726, %v2453
        %v2623 = vsub.f32 %v1727, %v2455
        %v2624 = vsub.f32 %v1728, %v2457
        %v2625 = vsub.f32 %v1729, %v2459
        %v2626 = vsub.f32 %v1730, %v2461
        %v2627 = vsub.f32 %v1731, %v2463
        %v2628 = vsub.f32 %v1732, %v2465
        %v2629 = vsub.f32 %v1733, %v2467
        %v2630 = vsub.f32 %v1734, %v2469
        %v2631 = vsub.f32 %v1735, %v2471
        %v2632 = vsub.f32 %v1736, %v2473
        %v2633 = vsub.f32 %v1737, %v2475
        %v2634 = vsub.f32 %v1738, %v2477
        %v2635 = vsub.f32 %v1739, %v2479
        %v2636 = vsub.f32 %v1740, %v2481
        %v2637 = vsub.f32 %v1741, %v2483
        %v2638 = vsub.f32 %v1742, %v2485
        %v2639 = vsub.f32 %v1743, %v2487
        %v2640 = vsub.f32 %v1744, %v2489
        %v2641 = vsub.f32 %v1745, %v2491
        %v2642 = vsub.f32 %v1746, %v2493
        %v2643 = vsub.f32 %v1747, %v2495
        %v2644 = vsub.f32 %v1748, %v2497
        %v2645 = vsub.f32 %v1749, %v2499
        %v2646 = vsub.f32 %v1750, %v2501
        %v2647 = vsub.f32 %v1751, %v2503
        %v2648 = vsub.f32 %v1752, %v2505
        %v2649 = vsub.f32 %v1753, %v2507
        %v2650 = vsub.f32 %v1754, %v2509
        %v2651 = vsub.f32 %v1755, %v2511
        %v2652 = vsub.f32 %v1756, %v2513
        %v2653 = vsub.f32 %v1757, %v2515
        %v2654 = vsub.f32 %v1758, %v2517
        %v2655 = vsub.f32 %v1759, %v2519
        %v2656 = vsub.f32 %v1760, %v2521
        %v2657 = vsub.f32 %v1761, %v2523
        %v2658 = vsub.f32 %v1762, %v2525
        %v2659 = vsub.f32 %v1763, %v2527
        %v2660 = vsub.f32 %v1764, %v2529
        %v2661 = vsub.f32 %v1765, %v2531
        %v2662 = vsub.f32 %v1766, %v2533
        %v2663 = vsub.f32 %v1767, %v2535
        %v2664 = vmax.f32 %v2536, -100.0
        %v2665 = vmax.f32 %v2537, -100.0
        %v2666 = vmax.f32 %v2538, -100.0
        %v2667 = vmax.f32 %v2539, -100.0
        %v2668 = vmax.f32 %v2540, -100.0
        %v2669 = vmax.f32 %v2541, -100.0
        %v2670 = vmax.f32 %v2542, -100.0
        %v2671 = vmax.f32 %v2543, -100.0
        %v2672 = vmax.f32 %v2544, -100.0
        %v2673 = vmax.f32 %v2545, -100.0
        %v2674 = vmax.f32 %v2546, -100.0
        %v2675 = vmax.f32 %v2547, -100.0
        %v2676 = vmax.f32 %v2548, -100.0
        %v2677 = vmax.f32 %v2549, -100.0
        %v2678 = vmax.f32 %v2550, -100.0
        %v2679 = vmax.f32 %v2551, -100.0
        %v2680 = vmax.f32 %v2552, -100.0
        %v2681 = vmax.f32 %v2553, -100.0
        %v2682 = vmax.f32 %v2554, -100.0
        %v2683 = vmax.f32 %v2555, -100.0
        %v2684 = vmax.f32 %v2556, -100.0
        %v2685 = vmax.f32 %v2557, -100.0
        %v2686 = vmax.f32 %v2558, -100.0
        %v2687 = vmax.f32 %v2559, -100.0
        %v2688 = vmax.f32 %v2560, -100.0
        %v2689 = vmax.f32 %v2561, -100.0
        %v2690 = vmax.f32 %v2562, -100.0
        %v2691 = vmax.f32 %v2563, -100.0
        %v2692 = vmax.f32 %v2564, -100.0
        %v2693 = vmax.f32 %v2565, -100.0
        %v2694 = vmax.f32 %v2566, -100.0
        %v2695 = vmax.f32 %v2567, -100.0
        %v2696 = vmax.f32 %v2568, -100.0
        %v2697 = vmax.f32 %v2569, -100.0
        %v2698 = vmax.f32 %v2570, -100.0
        %v2699 = vmax.f32 %v2571, -100.0
        %v2700 = vmax.f32 %v2572, -100.0
        %v2701 = vmax.f32 %v2573, -100.0
        %v2702 = vmax.f32 %v2574, -100.0
        %v2703 = vmax.f32 %v2575, -100.0
        %v2704 = vmax.f32 %v2576, -100.0
        %v2705 = vmax.f32 %v2577, -100.0
        %v2706 = vmax.f32 %v2578, -100.0
        %v2707 = vmax.f32 %v2579, -100.0
        %v2708 = vmax.f32 %v2580, -100.0
        %v2709 = vmax.f32 %v2581, -100.0
        %v2710 = vmax.f32 %v2582, -100.0
        %v2711 = vmax.f32 %v2583, -100.0
        %v2712 = vmax.f32 %v2584, -100.0
        %v2713 = vmax.f32 %v2585, -100.0
        %v2714 = vmax.f32 %v2586, -100.0
        %v2715 = vmax.f32 %v2587, -100.0
        %v2716 = vmax.f32 %v2588, -100.0
        %v2717 = vmax.f32 %v2589, -100.0
        %v2718 = vmax.f32 %v2590, -100.0
        %v2719 = vmax.f32 %v2591, -100.0
        %v2720 = vmax.f32 %v2592, -100.0
        %v2721 = vmax.f32 %v2593, -100.0
        %v2722 = vmax.f32 %v2594, -100.0
        %v2723 = vmax.f32 %v2595, -100.0
        %v2724 = vmax.f32 %v2596, -100.0
        %v2725 = vmax.f32 %v2597, -100.0
        %v2726 = vmax.f32 %v2598, -100.0
        %v2727 = vmax.f32 %v2599, -100.0
        %v2728 = vmax.f32 %v2600, -100.0
        %v2729 = vmax.f32 %v2601, -100.0
        %v2730 = vmax.f32 %v2602, -100.0
        %v2731 = vmax.f32 %v2603, -100.0
        %v2732 = vmax.f32 %v2604, -100.0
        %v2733 = vmax.f32 %v2605, -100.0
        %v2734 = vmax.f32 %v2606, -100.0
        %v2735 = vmax.f32 %v2607, -100.0
        %v2736 = vmax.f32 %v2608, -100.0
        %v2737 = vmax.f32 %v2609, -100.0
        %v2738 = vmax.f32 %v2610, -100.0
        %v2739 = vmax.f32 %v2611, -100.0
        %v2740 = vmax.f32 %v2612, -100.0
        %v2741 = vmax.f32 %v2613, -100.0
        %v2742 = vmax.f32 %v2614, -100.0
        %v2743 = vmax.f32 %v2615, -100.0
        %v2744 = vmax.f32 %v2616, -100.0
        %v2745 = vmax.f32 %v2617, -100.0
        %v2746 = vmax.f32 %v2618, -100.0
        %v2747 = vmax.f32 %v2619, -100.0
        %v2748 = vmax.f32 %v2620, -100.0
        %v2749 = vmax.f32 %v2621, -100.0
        %v2750 = vmax.f32 %v2622, -100.0
        %v2751 = vmax.f32 %v2623, -100.0
        %v2752 = vmax.f32 %v2624, -100.0
        %v2753 = vmax.f32 %v2625, -100.0
        %v2754 = vmax.f32 %v2626, -100.0
        %v2755 = vmax.f32 %v2627, -100.0
        %v2756 = vmax.f32 %v2628, -100.0
        %v2757 = vmax.f32 %v2629, -100.0
        %v2758 = vmax.f32 %v2630, -100.0
        %v2759 = vmax.f32 %v2631, -100.0
        %v2760 = vmax.f32 %v2632, -100.0
        %v2761 = vmax.f32 %v2633, -100.0
        %v2762 = vmax.f32 %v2634, -100.0
        %v2763 = vmax.f32 %v2635, -100.0
        %v2764 = vmax.f32 %v2636, -100.0
        %v2765 = vmax.f32 %v2637, -100.0
        %v2766 = vmax.f32 %v2638, -100.0
        %v2767 = vmax.f32 %v2639, -100.0
        %v2768 = vmax.f32 %v2640, -100.0
        %v2769 = vmax.f32 %v2641, -100.0
        %v2770 = vmax.f32 %v2642, -100.0
        %v2771 = vmax.f32 %v2643, -100.0
        %v2772 = vmax.f32 %v2644, -100.0
        %v2773 = vmax.f32 %v2645, -100.0
        %v2774 = vmax.f32 %v2646, -100.0
        %v2775 = vmax.f32 %v2647, -100.0
        %v2776 = vmax.f32 %v2648, -100.0
        %v2777 = vmax.f32 %v2649, -100.0
        %v2778 = vmax.f32 %v2650, -100.0
        %v2779 = vmax.f32 %v2651, -100.0
        %v2780 = vmax.f32 %v2652, -100.0
        %v2781 = vmax.f32 %v2653, -100.0
        %v2782 = vmax.f32 %v2654, -100.0
        %v2783 = vmax.f32 %v2655, -100.0
        %v2784 = vmax.f32 %v2656, -100.0
        %v2785 = vmax.f32 %v2657, -100.0
        %v2786 = vmax.f32 %v2658, -100.0
        %v2787 = vmax.f32 %v2659, -100.0
        %v2788 = vmax.f32 %v2660, -100.0
        %v2789 = vmax.f32 %v2661, -100.0
        %v2790 = vmax.f32 %v2662, -100.0
        %v2791 = vmax.f32 %v2663, -100.0
        %v2792 = vsub.f32 %v2025, %v1769
        %v2793 = vsub.f32 %v2027, %v1771
        %v2794 = vsub.f32 %v2029, %v1773
        %v2795 = vsub.f32 %v2031, %v1775
        %v2796 = vsub.f32 %v2033, %v1777
        %v2797 = vsub.f32 %v2035, %v1779
        %v2798 = vsub.f32 %v2037, %v1781
        %v2799 = vsub.f32 %v2039, %v1783
        %v2800 = vsub.f32 %v2041, %v1785
        %v2801 = vsub.f32 %v2043, %v1787
        %v2802 = vsub.f32 %v2045, %v1789
        %v2803 = vsub.f32 %v2047, %v1791
        %v2804 = vsub.f32 %v2049, %v1793
        %v2805 = vsub.f32 %v2051, %v1795
        %v2806 = vsub.f32 %v2053, %v1797
        %v2807 = vsub.f32 %v2055, %v1799
        %v2808 = vsub.f32 %v2057, %v1801
        %v2809 = vsub.f32 %v2059, %v1803
        %v2810 = vsub.f32 %v2061, %v1805
        %v2811 = vsub.f32 %v2063, %v1807
        %v2812 = vsub.f32 %v2065, %v1809
        %v2813 = vsub.f32 %v2067, %v1811
        %v2814 = vsub.f32 %v2069, %v1813
        %v2815 = vsub.f32 %v2071, %v1815
        %v2816 = vsub.f32 %v2073, %v1817
        %v2817 = vsub.f32 %v2075, %v1819
        %v2818 = vsub.f32 %v2077, %v1821
        %v2819 = vsub.f32 %v2079, %v1823
        %v2820 = vsub.f32 %v2081, %v1825
        %v2821 = vsub.f32 %v2083, %v1827
        %v2822 = vsub.f32 %v2085, %v1829
        %v2823 = vsub.f32 %v2087, %v1831
        %v2824 = vsub.f32 %v2089, %v1833
        %v2825 = vsub.f32 %v2091, %v1835
        %v2826 = vsub.f32 %v2093, %v1837
        %v2827 = vsub.f32 %v2095, %v1839
        %v2828 = vsub.f32 %v2097, %v1841
        %v2829 = vsub.f32 %v2099, %v1843
        %v2830 = vsub.f32 %v2101, %v1845
        %v2831 = vsub.f32 %v2103, %v1847
        %v2832 = vsub.f32 %v2105, %v1849
        %v2833 = vsub.f32 %v2107, %v1851
        %v2834 = vsub.f32 %v2109, %v1853
        %v2835 = vsub.f32 %v2111, %v1855
        %v2836 = vsub.f32 %v2113, %v1857
        %v2837 = vsub.f32 %v2115, %v1859
        %v2838 = vsub.f32 %v2117, %v1861
        %v2839 = vsub.f32 %v2119, %v1863
        %v2840 = vsub.f32 %v2121, %v1865
        %v2841 = vsub.f32 %v2123, %v1867
        %v2842 = vsub.f32 %v2125, %v1869
        %v2843 = vsub.f32 %v2127, %v1871
        %v2844 = vsub.f32 %v2129, %v1873
        %v2845 = vsub.f32 %v2131, %v1875
        %v2846 = vsub.f32 %v2133, %v1877
        %v2847 = vsub.f32 %v2135, %v1879
        %v2848 = vsub.f32 %v2137, %v1881
        %v2849 = vsub.f32 %v2139, %v1883
        %v2850 = vsub.f32 %v2141, %v1885
        %v2851 = vsub.f32 %v2143, %v1887
        %v2852 = vsub.f32 %v2145, %v1889
        %v2853 = vsub.f32 %v2147, %v1891
        %v2854 = vsub.f32 %v2149, %v1893
        %v2855 = vsub.f32 %v2151, %v1895
        %v2856 = vsub.f32 %v2153, %v1897
        %v2857 = vsub.f32 %v2155, %v1899
        %v2858 = vsub.f32 %v2157, %v1901
        %v2859 = vsub.f32 %v2159, %v1903
        %v2860 = vsub.f32 %v2161, %v1905
        %v2861 = vsub.f32 %v2163, %v1907
        %v2862 = vsub.f32 %v2165, %v1909
        %v2863 = vsub.f32 %v2167, %v1911
        %v2864 = vsub.f32 %v2169, %v1913
        %v2865 = vsub.f32 %v2171, %v1915
        %v2866 = vsub.f32 %v2173, %v1917
        %v2867 = vsub.f32 %v2175, %v1919
        %v2868 = vsub.f32 %v2177, %v1921
        %v2869 = vsub.f32 %v2179, %v1923
        %v2870 = vsub.f32 %v2181, %v1925
        %v2871 = vsub.f32 %v2183, %v1927
        %v2872 = vsub.f32 %v2185, %v1929
        %v2873 = vsub.f32 %v2187, %v1931
        %v2874 = vsub.f32 %v2189, %v1933
        %v2875 = vsub.f32 %v2191, %v1935
        %v2876 = vsub.f32 %v2193, %v1937
        %v2877 = vsub.f32 %v2195, %v1939
        %v2878 = vsub.f32 %v2197, %v1941
        %v2879 = vsub.f32 %v2199, %v1943
        %v2880 = vsub.f32 %v2201, %v1945
        %v2881 = vsub.f32 %v2203, %v1947
        %v2882 = vsub.f32 %v2205, %v1949
        %v2883 = vsub.f32 %v2207, %v1951
        %v2884 = vsub.f32 %v2209, %v1953
        %v2885 = vsub.f32 %v2211, %v1955
        %v2886 = vsub.f32 %v2213, %v1957
        %v2887 = vsub.f32 %v2215, %v1959
        %v2888 = vsub.f32 %v2217, %v1961
        %v2889 = vsub.f32 %v2219, %v1963
        %v2890 = vsub.f32 %v2221, %v1965
        %v2891 = vsub.f32 %v2223, %v1967
        %v2892 = vsub.f32 %v2225, %v1969
        %v2893 = vsub.f32 %v2227, %v1971
        %v2894 = vsub.f32 %v2229, %v1973
        %v2895 = vsub.f32 %v2231, %v1975
        %v2896 = vsub.f32 %v2233, %v1977
        %v2897 = vsub.f32 %v2235, %v1979
        %v2898 = vsub.f32 %v2237, %v1981
        %v2899 = vsub.f32 %v2239, %v1983
        %v2900 = vsub.f32 %v2241, %v1985
        %v2901 = vsub.f32 %v2243, %v1987
        %v2902 = vsub.f32 %v2245, %v1989
        %v2903 = vsub.f32 %v2247, %v1991
        %v2904 = vsub.f32 %v2249, %v1993
        %v2905 = vsub.f32 %v2251, %v1995
        %v2906 = vsub.f32 %v2253, %v1997
        %v2907 = vsub.f32 %v2255, %v1999
        %v2908 = vsub.f32 %v2257, %v2001
        %v2909 = vsub.f32 %v2259, %v2003
        %v2910 = vsub.f32 %v2261, %v2005
        %v2911 = vsub.f32 %v2263, %v2007
        %v2912 = vsub.f32 %v2265, %v2009
        %v2913 = vsub.f32 %v2267, %v2011
        %v2914 = vsub.f32 %v2269, %v2013
        %v2915 = vsub.f32 %v2271, %v2015
        %v2916 = vsub.f32 %v2273, %v2017
        %v2917 = vsub.f32 %v2275, %v2019
        %v2918 = vsub.f32 %v2277, %v2021
        %v2919 = vsub.f32 %v2279, %v2023
        %v2920 = vlog2.pop %v2792
        %v2921 = vmul.f32 %v2920, 0.6931472
        %v2922 = vlog2.pop %v2793
        %v2923 = vmul.f32 %v2922, 0.6931472
        %v2924 = vlog2.pop %v2794
        %v2925 = vmul.f32 %v2924, 0.6931472
        %v2926 = vlog2.pop %v2795
        %v2927 = vmul.f32 %v2926, 0.6931472
        %v2928 = vlog2.pop %v2796
        %v2929 = vmul.f32 %v2928, 0.6931472
        %v2930 = vlog2.pop %v2797
        %v2931 = vmul.f32 %v2930, 0.6931472
        %v2932 = vlog2.pop %v2798
        %v2933 = vmul.f32 %v2932, 0.6931472
        %v2934 = vlog2.pop %v2799
        %v2935 = vmul.f32 %v2934, 0.6931472
        %v2936 = vlog2.pop %v2800
        %v2937 = vmul.f32 %v2936, 0.6931472
        %v2938 = vlog2.pop %v2801
        %v2939 = vmul.f32 %v2938, 0.6931472
        %v2940 = vlog2.pop %v2802
        %v2941 = vmul.f32 %v2940, 0.6931472
        %v2942 = vlog2.pop %v2803
        %v2943 = vmul.f32 %v2942, 0.6931472
        %v2944 = vlog2.pop %v2804
        %v2945 = vmul.f32 %v2944, 0.6931472
        %v2946 = vlog2.pop %v2805
        %v2947 = vmul.f32 %v2946, 0.6931472
        %v2948 = vlog2.pop %v2806
        %v2949 = vmul.f32 %v2948, 0.6931472
        %v2950 = vlog2.pop %v2807
        %v2951 = vmul.f32 %v2950, 0.6931472
        %v2952 = vlog2.pop %v2808
        %v2953 = vmul.f32 %v2952, 0.6931472
        %v2954 = vlog2.pop %v2809
        %v2955 = vmul.f32 %v2954, 0.6931472
        %v2956 = vlog2.pop %v2810
        %v2957 = vmul.f32 %v2956, 0.6931472
        %v2958 = vlog2.pop %v2811
        %v2959 = vmul.f32 %v2958, 0.6931472
        %v2960 = vlog2.pop %v2812
        %v2961 = vmul.f32 %v2960, 0.6931472
        %v2962 = vlog2.pop %v2813
        %v2963 = vmul.f32 %v2962, 0.6931472
        %v2964 = vlog2.pop %v2814
        %v2965 = vmul.f32 %v2964, 0.6931472
        %v2966 = vlog2.pop %v2815
        %v2967 = vmul.f32 %v2966, 0.6931472
        %v2968 = vlog2.pop %v2816
        %v2969 = vmul.f32 %v2968, 0.6931472
        %v2970 = vlog2.pop %v2817
        %v2971 = vmul.f32 %v2970, 0.6931472
        %v2972 = vlog2.pop %v2818
        %v2973 = vmul.f32 %v2972, 0.6931472
        %v2974 = vlog2.pop %v2819
        %v2975 = vmul.f32 %v2974, 0.6931472
        %v2976 = vlog2.pop %v2820
        %v2977 = vmul.f32 %v2976, 0.6931472
        %v2978 = vlog2.pop %v2821
        %v2979 = vmul.f32 %v2978, 0.6931472
        %v2980 = vlog2.pop %v2822
        %v2981 = vmul.f32 %v2980, 0.6931472
        %v2982 = vlog2.pop %v2823
        %v2983 = vmul.f32 %v2982, 0.6931472
        %v2984 = vlog2.pop %v2824
        %v2985 = vmul.f32 %v2984, 0.6931472
        %v2986 = vlog2.pop %v2825
        %v2987 = vmul.f32 %v2986, 0.6931472
        %v2988 = vlog2.pop %v2826
        %v2989 = vmul.f32 %v2988, 0.6931472
        %v2990 = vlog2.pop %v2827
        %v2991 = vmul.f32 %v2990, 0.6931472
        %v2992 = vlog2.pop %v2828
        %v2993 = vmul.f32 %v2992, 0.6931472
        %v2994 = vlog2.pop %v2829
        %v2995 = vmul.f32 %v2994, 0.6931472
        %v2996 = vlog2.pop %v2830
        %v2997 = vmul.f32 %v2996, 0.6931472
        %v2998 = vlog2.pop %v2831
        %v2999 = vmul.f32 %v2998, 0.6931472
        %v3000 = vlog2.pop %v2832
        %v3001 = vmul.f32 %v3000, 0.6931472
        %v3002 = vlog2.pop %v2833
        %v3003 = vmul.f32 %v3002, 0.6931472
        %v3004 = vlog2.pop %v2834
        %v3005 = vmul.f32 %v3004, 0.6931472
        %v3006 = vlog2.pop %v2835
        %v3007 = vmul.f32 %v3006, 0.6931472
        %v3008 = vlog2.pop %v2836
        %v3009 = vmul.f32 %v3008, 0.6931472
        %v3010 = vlog2.pop %v2837
        %v3011 = vmul.f32 %v3010, 0.6931472
        %v3012 = vlog2.pop %v2838
        %v3013 = vmul.f32 %v3012, 0.6931472
        %v3014 = vlog2.pop %v2839
        %v3015 = vmul.f32 %v3014, 0.6931472
        %v3016 = vlog2.pop %v2840
        %v3017 = vmul.f32 %v3016, 0.6931472
        %v3018 = vlog2.pop %v2841
        %v3019 = vmul.f32 %v3018, 0.6931472
        %v3020 = vlog2.pop %v2842
        %v3021 = vmul.f32 %v3020, 0.6931472
        %v3022 = vlog2.pop %v2843
        %v3023 = vmul.f32 %v3022, 0.6931472
        %v3024 = vlog2.pop %v2844
        %v3025 = vmul.f32 %v3024, 0.6931472
        %v3026 = vlog2.pop %v2845
        %v3027 = vmul.f32 %v3026, 0.6931472
        %v3028 = vlog2.pop %v2846
        %v3029 = vmul.f32 %v3028, 0.6931472
        %v3030 = vlog2.pop %v2847
        %v3031 = vmul.f32 %v3030, 0.6931472
        %v3032 = vlog2.pop %v2848
        %v3033 = vmul.f32 %v3032, 0.6931472
        %v3034 = vlog2.pop %v2849
        %v3035 = vmul.f32 %v3034, 0.6931472
        %v3036 = vlog2.pop %v2850
        %v3037 = vmul.f32 %v3036, 0.6931472
        %v3038 = vlog2.pop %v2851
        %v3039 = vmul.f32 %v3038, 0.6931472
        %v3040 = vlog2.pop %v2852
        %v3041 = vmul.f32 %v3040, 0.6931472
        %v3042 = vlog2.pop %v2853
        %v3043 = vmul.f32 %v3042, 0.6931472
        %v3044 = vlog2.pop %v2854
        %v3045 = vmul.f32 %v3044, 0.6931472
        %v3046 = vlog2.pop %v2855
        %v3047 = vmul.f32 %v3046, 0.6931472
        %v3048 = vlog2.pop %v2856
        %v3049 = vmul.f32 %v3048, 0.6931472
        %v3050 = vlog2.pop %v2857
        %v3051 = vmul.f32 %v3050, 0.6931472
        %v3052 = vlog2.pop %v2858
        %v3053 = vmul.f32 %v3052, 0.6931472
        %v3054 = vlog2.pop %v2859
        %v3055 = vmul.f32 %v3054, 0.6931472
        %v3056 = vlog2.pop %v2860
        %v3057 = vmul.f32 %v3056, 0.6931472
        %v3058 = vlog2.pop %v2861
        %v3059 = vmul.f32 %v3058, 0.6931472
        %v3060 = vlog2.pop %v2862
        %v3061 = vmul.f32 %v3060, 0.6931472
        %v3062 = vlog2.pop %v2863
        %v3063 = vmul.f32 %v3062, 0.6931472
        %v3064 = vlog2.pop %v2864
        %v3065 = vmul.f32 %v3064, 0.6931472
        %v3066 = vlog2.pop %v2865
        %v3067 = vmul.f32 %v3066, 0.6931472
        %v3068 = vlog2.pop %v2866
        %v3069 = vmul.f32 %v3068, 0.6931472
        %v3070 = vlog2.pop %v2867
        %v3071 = vmul.f32 %v3070, 0.6931472
        %v3072 = vlog2.pop %v2868
        %v3073 = vmul.f32 %v3072, 0.6931472
        %v3074 = vlog2.pop %v2869
        %v3075 = vmul.f32 %v3074, 0.6931472
        %v3076 = vlog2.pop %v2870
        %v3077 = vmul.f32 %v3076, 0.6931472
        %v3078 = vlog2.pop %v2871
        %v3079 = vmul.f32 %v3078, 0.6931472
        %v3080 = vlog2.pop %v2872
        %v3081 = vmul.f32 %v3080, 0.6931472
        %v3082 = vlog2.pop %v2873
        %v3083 = vmul.f32 %v3082, 0.6931472
        %v3084 = vlog2.pop %v2874
        %v3085 = vmul.f32 %v3084, 0.6931472
        %v3086 = vlog2.pop %v2875
        %v3087 = vmul.f32 %v3086, 0.6931472
        %v3088 = vlog2.pop %v2876
        %v3089 = vmul.f32 %v3088, 0.6931472
        %v3090 = vlog2.pop %v2877
        %v3091 = vmul.f32 %v3090, 0.6931472
        %v3092 = vlog2.pop %v2878
        %v3093 = vmul.f32 %v3092, 0.6931472
        %v3094 = vlog2.pop %v2879
        %v3095 = vmul.f32 %v3094, 0.6931472
        %v3096 = vlog2.pop %v2880
        %v3097 = vmul.f32 %v3096, 0.6931472
        %v3098 = vlog2.pop %v2881
        %v3099 = vmul.f32 %v3098, 0.6931472
        %v3100 = vlog2.pop %v2882
        %v3101 = vmul.f32 %v3100, 0.6931472
        %v3102 = vlog2.pop %v2883
        %v3103 = vmul.f32 %v3102, 0.6931472
        %v3104 = vlog2.pop %v2884
        %v3105 = vmul.f32 %v3104, 0.6931472
        %v3106 = vlog2.pop %v2885
        %v3107 = vmul.f32 %v3106, 0.6931472
        %v3108 = vlog2.pop %v2886
        %v3109 = vmul.f32 %v3108, 0.6931472
        %v3110 = vlog2.pop %v2887
        %v3111 = vmul.f32 %v3110, 0.6931472
        %v3112 = vlog2.pop %v2888
        %v3113 = vmul.f32 %v3112, 0.6931472
        %v3114 = vlog2.pop %v2889
        %v3115 = vmul.f32 %v3114, 0.6931472
        %v3116 = vlog2.pop %v2890
        %v3117 = vmul.f32 %v3116, 0.6931472
        %v3118 = vlog2.pop %v2891
        %v3119 = vmul.f32 %v3118, 0.6931472
        %v3120 = vlog2.pop %v2892
        %v3121 = vmul.f32 %v3120, 0.6931472
        %v3122 = vlog2.pop %v2893
        %v3123 = vmul.f32 %v3122, 0.6931472
        %v3124 = vlog2.pop %v2894
        %v3125 = vmul.f32 %v3124, 0.6931472
        %v3126 = vlog2.pop %v2895
        %v3127 = vmul.f32 %v3126, 0.6931472
        %v3128 = vlog2.pop %v2896
        %v3129 = vmul.f32 %v3128, 0.6931472
        %v3130 = vlog2.pop %v2897
        %v3131 = vmul.f32 %v3130, 0.6931472
        %v3132 = vlog2.pop %v2898
        %v3133 = vmul.f32 %v3132, 0.6931472
        %v3134 = vlog2.pop %v2899
        %v3135 = vmul.f32 %v3134, 0.6931472
        %v3136 = vlog2.pop %v2900
        %v3137 = vmul.f32 %v3136, 0.6931472
        %v3138 = vlog2.pop %v2901
        %v3139 = vmul.f32 %v3138, 0.6931472
        %v3140 = vlog2.pop %v2902
        %v3141 = vmul.f32 %v3140, 0.6931472
        %v3142 = vlog2.pop %v2903
        %v3143 = vmul.f32 %v3142, 0.6931472
        %v3144 = vlog2.pop %v2904
        %v3145 = vmul.f32 %v3144, 0.6931472
        %v3146 = vlog2.pop %v2905
        %v3147 = vmul.f32 %v3146, 0.6931472
        %v3148 = vlog2.pop %v2906
        %v3149 = vmul.f32 %v3148, 0.6931472
        %v3150 = vlog2.pop %v2907
        %v3151 = vmul.f32 %v3150, 0.6931472
        %v3152 = vlog2.pop %v2908
        %v3153 = vmul.f32 %v3152, 0.6931472
        %v3154 = vlog2.pop %v2909
        %v3155 = vmul.f32 %v3154, 0.6931472
        %v3156 = vlog2.pop %v2910
        %v3157 = vmul.f32 %v3156, 0.6931472
        %v3158 = vlog2.pop %v2911
        %v3159 = vmul.f32 %v3158, 0.6931472
        %v3160 = vlog2.pop %v2912
        %v3161 = vmul.f32 %v3160, 0.6931472
        %v3162 = vlog2.pop %v2913
        %v3163 = vmul.f32 %v3162, 0.6931472
        %v3164 = vlog2.pop %v2914
        %v3165 = vmul.f32 %v3164, 0.6931472
        %v3166 = vlog2.pop %v2915
        %v3167 = vmul.f32 %v3166, 0.6931472
        %v3168 = vlog2.pop %v2916
        %v3169 = vmul.f32 %v3168, 0.6931472
        %v3170 = vlog2.pop %v2917
        %v3171 = vmul.f32 %v3170, 0.6931472
        %v3172 = vlog2.pop %v2918
        %v3173 = vmul.f32 %v3172, 0.6931472
        %v3174 = vlog2.pop %v2919
        %v3175 = vmul.f32 %v3174, 0.6931472
        %v3176 = vsub.f32 %v2921, %v2281
        %v3177 = vsub.f32 %v2923, %v2283
        %v3178 = vsub.f32 %v2925, %v2285
        %v3179 = vsub.f32 %v2927, %v2287
        %v3180 = vsub.f32 %v2929, %v2289
        %v3181 = vsub.f32 %v2931, %v2291
        %v3182 = vsub.f32 %v2933, %v2293
        %v3183 = vsub.f32 %v2935, %v2295
        %v3184 = vsub.f32 %v2937, %v2297
        %v3185 = vsub.f32 %v2939, %v2299
        %v3186 = vsub.f32 %v2941, %v2301
        %v3187 = vsub.f32 %v2943, %v2303
        %v3188 = vsub.f32 %v2945, %v2305
        %v3189 = vsub.f32 %v2947, %v2307
        %v3190 = vsub.f32 %v2949, %v2309
        %v3191 = vsub.f32 %v2951, %v2311
        %v3192 = vsub.f32 %v2953, %v2313
        %v3193 = vsub.f32 %v2955, %v2315
        %v3194 = vsub.f32 %v2957, %v2317
        %v3195 = vsub.f32 %v2959, %v2319
        %v3196 = vsub.f32 %v2961, %v2321
        %v3197 = vsub.f32 %v2963, %v2323
        %v3198 = vsub.f32 %v2965, %v2325
        %v3199 = vsub.f32 %v2967, %v2327
        %v3200 = vsub.f32 %v2969, %v2329
        %v3201 = vsub.f32 %v2971, %v2331
        %v3202 = vsub.f32 %v2973, %v2333
        %v3203 = vsub.f32 %v2975, %v2335
        %v3204 = vsub.f32 %v2977, %v2337
        %v3205 = vsub.f32 %v2979, %v2339
        %v3206 = vsub.f32 %v2981, %v2341
        %v3207 = vsub.f32 %v2983, %v2343
        %v3208 = vsub.f32 %v2985, %v2345
        %v3209 = vsub.f32 %v2987, %v2347
        %v3210 = vsub.f32 %v2989, %v2349
        %v3211 = vsub.f32 %v2991, %v2351
        %v3212 = vsub.f32 %v2993, %v2353
        %v3213 = vsub.f32 %v2995, %v2355
        %v3214 = vsub.f32 %v2997, %v2357
        %v3215 = vsub.f32 %v2999, %v2359
        %v3216 = vsub.f32 %v3001, %v2361
        %v3217 = vsub.f32 %v3003, %v2363
        %v3218 = vsub.f32 %v3005, %v2365
        %v3219 = vsub.f32 %v3007, %v2367
        %v3220 = vsub.f32 %v3009, %v2369
        %v3221 = vsub.f32 %v3011, %v2371
        %v3222 = vsub.f32 %v3013, %v2373
        %v3223 = vsub.f32 %v3015, %v2375
        %v3224 = vsub.f32 %v3017, %v2377
        %v3225 = vsub.f32 %v3019, %v2379
        %v3226 = vsub.f32 %v3021, %v2381
        %v3227 = vsub.f32 %v3023, %v2383
        %v3228 = vsub.f32 %v3025, %v2385
        %v3229 = vsub.f32 %v3027, %v2387
        %v3230 = vsub.f32 %v3029, %v2389
        %v3231 = vsub.f32 %v3031, %v2391
        %v3232 = vsub.f32 %v3033, %v2393
        %v3233 = vsub.f32 %v3035, %v2395
        %v3234 = vsub.f32 %v3037, %v2397
        %v3235 = vsub.f32 %v3039, %v2399
        %v3236 = vsub.f32 %v3041, %v2401
        %v3237 = vsub.f32 %v3043, %v2403
        %v3238 = vsub.f32 %v3045, %v2405
        %v3239 = vsub.f32 %v3047, %v2407
        %v3240 = vsub.f32 %v3049, %v2409
        %v3241 = vsub.f32 %v3051, %v2411
        %v3242 = vsub.f32 %v3053, %v2413
        %v3243 = vsub.f32 %v3055, %v2415
        %v3244 = vsub.f32 %v3057, %v2417
        %v3245 = vsub.f32 %v3059, %v2419
        %v3246 = vsub.f32 %v3061, %v2421
        %v3247 = vsub.f32 %v3063, %v2423
        %v3248 = vsub.f32 %v3065, %v2425
        %v3249 = vsub.f32 %v3067, %v2427
        %v3250 = vsub.f32 %v3069, %v2429
        %v3251 = vsub.f32 %v3071, %v2431
        %v3252 = vsub.f32 %v3073, %v2433
        %v3253 = vsub.f32 %v3075, %v2435
        %v3254 = vsub.f32 %v3077, %v2437
        %v3255 = vsub.f32 %v3079, %v2439
        %v3256 = vsub.f32 %v3081, %v2441
        %v3257 = vsub.f32 %v3083, %v2443
        %v3258 = vsub.f32 %v3085, %v2445
        %v3259 = vsub.f32 %v3087, %v2447
        %v3260 = vsub.f32 %v3089, %v2449
        %v3261 = vsub.f32 %v3091, %v2451
        %v3262 = vsub.f32 %v3093, %v2453
        %v3263 = vsub.f32 %v3095, %v2455
        %v3264 = vsub.f32 %v3097, %v2457
        %v3265 = vsub.f32 %v3099, %v2459
        %v3266 = vsub.f32 %v3101, %v2461
        %v3267 = vsub.f32 %v3103, %v2463
        %v3268 = vsub.f32 %v3105, %v2465
        %v3269 = vsub.f32 %v3107, %v2467
        %v3270 = vsub.f32 %v3109, %v2469
        %v3271 = vsub.f32 %v3111, %v2471
        %v3272 = vsub.f32 %v3113, %v2473
        %v3273 = vsub.f32 %v3115, %v2475
        %v3274 = vsub.f32 %v3117, %v2477
        %v3275 = vsub.f32 %v3119, %v2479
        %v3276 = vsub.f32 %v3121, %v2481
        %v3277 = vsub.f32 %v3123, %v2483
        %v3278 = vsub.f32 %v3125, %v2485
        %v3279 = vsub.f32 %v3127, %v2487
        %v3280 = vsub.f32 %v3129, %v2489
        %v3281 = vsub.f32 %v3131, %v2491
        %v3282 = vsub.f32 %v3133, %v2493
        %v3283 = vsub.f32 %v3135, %v2495
        %v3284 = vsub.f32 %v3137, %v2497
        %v3285 = vsub.f32 %v3139, %v2499
        %v3286 = vsub.f32 %v3141, %v2501
        %v3287 = vsub.f32 %v3143, %v2503
        %v3288 = vsub.f32 %v3145, %v2505
        %v3289 = vsub.f32 %v3147, %v2507
        %v3290 = vsub.f32 %v3149, %v2509
        %v3291 = vsub.f32 %v3151, %v2511
        %v3292 = vsub.f32 %v3153, %v2513
        %v3293 = vsub.f32 %v3155, %v2515
        %v3294 = vsub.f32 %v3157, %v2517
        %v3295 = vsub.f32 %v3159, %v2519
        %v3296 = vsub.f32 %v3161, %v2521
        %v3297 = vsub.f32 %v3163, %v2523
        %v3298 = vsub.f32 %v3165, %v2525
        %v3299 = vsub.f32 %v3167, %v2527
        %v3300 = vsub.f32 %v3169, %v2529
        %v3301 = vsub.f32 %v3171, %v2531
        %v3302 = vsub.f32 %v3173, %v2533
        %v3303 = vsub.f32 %v3175, %v2535
        %v3304 = vmax.f32 %v3176, -100.0
        %v3305 = vmax.f32 %v3177, -100.0
        %v3306 = vmax.f32 %v3178, -100.0
        %v3307 = vmax.f32 %v3179, -100.0
        %v3308 = vmax.f32 %v3180, -100.0
        %v3309 = vmax.f32 %v3181, -100.0
        %v3310 = vmax.f32 %v3182, -100.0
        %v3311 = vmax.f32 %v3183, -100.0
        %v3312 = vmax.f32 %v3184, -100.0
        %v3313 = vmax.f32 %v3185, -100.0
        %v3314 = vmax.f32 %v3186, -100.0
        %v3315 = vmax.f32 %v3187, -100.0
        %v3316 = vmax.f32 %v3188, -100.0
        %v3317 = vmax.f32 %v3189, -100.0
        %v3318 = vmax.f32 %v3190, -100.0
        %v3319 = vmax.f32 %v3191, -100.0
        %v3320 = vmax.f32 %v3192, -100.0
        %v3321 = vmax.f32 %v3193, -100.0
        %v3322 = vmax.f32 %v3194, -100.0
        %v3323 = vmax.f32 %v3195, -100.0
        %v3324 = vmax.f32 %v3196, -100.0
        %v3325 = vmax.f32 %v3197, -100.0
        %v3326 = vmax.f32 %v3198, -100.0
        %v3327 = vmax.f32 %v3199, -100.0
        %v3328 = vmax.f32 %v3200, -100.0
        %v3329 = vmax.f32 %v3201, -100.0
        %v3330 = vmax.f32 %v3202, -100.0
        %v3331 = vmax.f32 %v3203, -100.0
        %v3332 = vmax.f32 %v3204, -100.0
        %v3333 = vmax.f32 %v3205, -100.0
        %v3334 = vmax.f32 %v3206, -100.0
        %v3335 = vmax.f32 %v3207, -100.0
        %v3336 = vmax.f32 %v3208, -100.0
        %v3337 = vmax.f32 %v3209, -100.0
        %v3338 = vmax.f32 %v3210, -100.0
        %v3339 = vmax.f32 %v3211, -100.0
        %v3340 = vmax.f32 %v3212, -100.0
        %v3341 = vmax.f32 %v3213, -100.0
        %v3342 = vmax.f32 %v3214, -100.0
        %v3343 = vmax.f32 %v3215, -100.0
        %v3344 = vmax.f32 %v3216, -100.0
        %v3345 = vmax.f32 %v3217, -100.0
        %v3346 = vmax.f32 %v3218, -100.0
        %v3347 = vmax.f32 %v3219, -100.0
        %v3348 = vmax.f32 %v3220, -100.0
        %v3349 = vmax.f32 %v3221, -100.0
        %v3350 = vmax.f32 %v3222, -100.0
        %v3351 = vmax.f32 %v3223, -100.0
        %v3352 = vmax.f32 %v3224, -100.0
        %v3353 = vmax.f32 %v3225, -100.0
        %v3354 = vmax.f32 %v3226, -100.0
        %v3355 = vmax.f32 %v3227, -100.0
        %v3356 = vmax.f32 %v3228, -100.0
        %v3357 = vmax.f32 %v3229, -100.0
        %v3358 = vmax.f32 %v3230, -100.0
        %v3359 = vmax.f32 %v3231, -100.0
        %v3360 = vmax.f32 %v3232, -100.0
        %v3361 = vmax.f32 %v3233, -100.0
        %v3362 = vmax.f32 %v3234, -100.0
        %v3363 = vmax.f32 %v3235, -100.0
        %v3364 = vmax.f32 %v3236, -100.0
        %v3365 = vmax.f32 %v3237, -100.0
        %v3366 = vmax.f32 %v3238, -100.0
        %v3367 = vmax.f32 %v3239, -100.0
        %v3368 = vmax.f32 %v3240, -100.0
        %v3369 = vmax.f32 %v3241, -100.0
        %v3370 = vmax.f32 %v3242, -100.0
        %v3371 = vmax.f32 %v3243, -100.0
        %v3372 = vmax.f32 %v3244, -100.0
        %v3373 = vmax.f32 %v3245, -100.0
        %v3374 = vmax.f32 %v3246, -100.0
        %v3375 = vmax.f32 %v3247, -100.0
        %v3376 = vmax.f32 %v3248, -100.0
        %v3377 = vmax.f32 %v3249, -100.0
        %v3378 = vmax.f32 %v3250, -100.0
        %v3379 = vmax.f32 %v3251, -100.0
        %v3380 = vmax.f32 %v3252, -100.0
        %v3381 = vmax.f32 %v3253, -100.0
        %v3382 = vmax.f32 %v3254, -100.0
        %v3383 = vmax.f32 %v3255, -100.0
        %v3384 = vmax.f32 %v3256, -100.0
        %v3385 = vmax.f32 %v3257, -100.0
        %v3386 = vmax.f32 %v3258, -100.0
        %v3387 = vmax.f32 %v3259, -100.0
        %v3388 = vmax.f32 %v3260, -100.0
        %v3389 = vmax.f32 %v3261, -100.0
        %v3390 = vmax.f32 %v3262, -100.0
        %v3391 = vmax.f32 %v3263, -100.0
        %v3392 = vmax.f32 %v3264, -100.0
        %v3393 = vmax.f32 %v3265, -100.0
        %v3394 = vmax.f32 %v3266, -100.0
        %v3395 = vmax.f32 %v3267, -100.0
        %v3396 = vmax.f32 %v3268, -100.0
        %v3397 = vmax.f32 %v3269, -100.0
        %v3398 = vmax.f32 %v3270, -100.0
        %v3399 = vmax.f32 %v3271, -100.0
        %v3400 = vmax.f32 %v3272, -100.0
        %v3401 = vmax.f32 %v3273, -100.0
        %v3402 = vmax.f32 %v3274, -100.0
        %v3403 = vmax.f32 %v3275, -100.0
        %v3404 = vmax.f32 %v3276, -100.0
        %v3405 = vmax.f32 %v3277, -100.0
        %v3406 = vmax.f32 %v3278, -100.0
        %v3407 = vmax.f32 %v3279, -100.0
        %v3408 = vmax.f32 %v3280, -100.0
        %v3409 = vmax.f32 %v3281, -100.0
        %v3410 = vmax.f32 %v3282, -100.0
        %v3411 = vmax.f32 %v3283, -100.0
        %v3412 = vmax.f32 %v3284, -100.0
        %v3413 = vmax.f32 %v3285, -100.0
        %v3414 = vmax.f32 %v3286, -100.0
        %v3415 = vmax.f32 %v3287, -100.0
        %v3416 = vmax.f32 %v3288, -100.0
        %v3417 = vmax.f32 %v3289, -100.0
        %v3418 = vmax.f32 %v3290, -100.0
        %v3419 = vmax.f32 %v3291, -100.0
        %v3420 = vmax.f32 %v3292, -100.0
        %v3421 = vmax.f32 %v3293, -100.0
        %v3422 = vmax.f32 %v3294, -100.0
        %v3423 = vmax.f32 %v3295, -100.0
        %v3424 = vmax.f32 %v3296, -100.0
        %v3425 = vmax.f32 %v3297, -100.0
        %v3426 = vmax.f32 %v3298, -100.0
        %v3427 = vmax.f32 %v3299, -100.0
        %v3428 = vmax.f32 %v3300, -100.0
        %v3429 = vmax.f32 %v3301, -100.0
        %v3430 = vmax.f32 %v3302, -100.0
        %v3431 = vmax.f32 %v3303, -100.0
        %v3432 = vsub.f32 0.0, %v2664
        %v3433 = vsub.f32 0.0, %v2665
        %v3434 = vsub.f32 0.0, %v2666
        %v3435 = vsub.f32 0.0, %v2667
        %v3436 = vsub.f32 0.0, %v2668
        %v3437 = vsub.f32 0.0, %v2669
        %v3438 = vsub.f32 0.0, %v2670
        %v3439 = vsub.f32 0.0, %v2671
        %v3440 = vsub.f32 0.0, %v2672
        %v3441 = vsub.f32 0.0, %v2673
        %v3442 = vsub.f32 0.0, %v2674
        %v3443 = vsub.f32 0.0, %v2675
        %v3444 = vsub.f32 0.0, %v2676
        %v3445 = vsub.f32 0.0, %v2677
        %v3446 = vsub.f32 0.0, %v2678
        %v3447 = vsub.f32 0.0, %v2679
        %v3448 = vsub.f32 0.0, %v2680
        %v3449 = vsub.f32 0.0, %v2681
        %v3450 = vsub.f32 0.0, %v2682
        %v3451 = vsub.f32 0.0, %v2683
        %v3452 = vsub.f32 0.0, %v2684
        %v3453 = vsub.f32 0.0, %v2685
        %v3454 = vsub.f32 0.0, %v2686
        %v3455 = vsub.f32 0.0, %v2687
        %v3456 = vsub.f32 0.0, %v2688
        %v3457 = vsub.f32 0.0, %v2689
        %v3458 = vsub.f32 0.0, %v2690
        %v3459 = vsub.f32 0.0, %v2691
        %v3460 = vsub.f32 0.0, %v2692
        %v3461 = vsub.f32 0.0, %v2693
        %v3462 = vsub.f32 0.0, %v2694
        %v3463 = vsub.f32 0.0, %v2695
        %v3464 = vsub.f32 0.0, %v2696
        %v3465 = vsub.f32 0.0, %v2697
        %v3466 = vsub.f32 0.0, %v2698
        %v3467 = vsub.f32 0.0, %v2699
        %v3468 = vsub.f32 0.0, %v2700
        %v3469 = vsub.f32 0.0, %v2701
        %v3470 = vsub.f32 0.0, %v2702
        %v3471 = vsub.f32 0.0, %v2703
        %v3472 = vsub.f32 0.0, %v2704
        %v3473 = vsub.f32 0.0, %v2705
        %v3474 = vsub.f32 0.0, %v2706
        %v3475 = vsub.f32 0.0, %v2707
        %v3476 = vsub.f32 0.0, %v2708
        %v3477 = vsub.f32 0.0, %v2709
        %v3478 = vsub.f32 0.0, %v2710
        %v3479 = vsub.f32 0.0, %v2711
        %v3480 = vsub.f32 0.0, %v2712
        %v3481 = vsub.f32 0.0, %v2713
        %v3482 = vsub.f32 0.0, %v2714
        %v3483 = vsub.f32 0.0, %v2715
        %v3484 = vsub.f32 0.0, %v2716
        %v3485 = vsub.f32 0.0, %v2717
        %v3486 = vsub.f32 0.0, %v2718
        %v3487 = vsub.f32 0.0, %v2719
        %v3488 = vsub.f32 0.0, %v2720
        %v3489 = vsub.f32 0.0, %v2721
        %v3490 = vsub.f32 0.0, %v2722
        %v3491 = vsub.f32 0.0, %v2723
        %v3492 = vsub.f32 0.0, %v2724
        %v3493 = vsub.f32 0.0, %v2725
        %v3494 = vsub.f32 0.0, %v2726
        %v3495 = vsub.f32 0.0, %v2727
        %v3496 = vsub.f32 0.0, %v2728
        %v3497 = vsub.f32 0.0, %v2729
        %v3498 = vsub.f32 0.0, %v2730
        %v3499 = vsub.f32 0.0, %v2731
        %v3500 = vsub.f32 0.0, %v2732
        %v3501 = vsub.f32 0.0, %v2733
        %v3502 = vsub.f32 0.0, %v2734
        %v3503 = vsub.f32 0.0, %v2735
        %v3504 = vsub.f32 0.0, %v2736
        %v3505 = vsub.f32 0.0, %v2737
        %v3506 = vsub.f32 0.0, %v2738
        %v3507 = vsub.f32 0.0, %v2739
        %v3508 = vsub.f32 0.0, %v2740
        %v3509 = vsub.f32 0.0, %v2741
        %v3510 = vsub.f32 0.0, %v2742
        %v3511 = vsub.f32 0.0, %v2743
        %v3512 = vsub.f32 0.0, %v2744
        %v3513 = vsub.f32 0.0, %v2745
        %v3514 = vsub.f32 0.0, %v2746
        %v3515 = vsub.f32 0.0, %v2747
        %v3516 = vsub.f32 0.0, %v2748
        %v3517 = vsub.f32 0.0, %v2749
        %v3518 = vsub.f32 0.0, %v2750
        %v3519 = vsub.f32 0.0, %v2751
        %v3520 = vsub.f32 0.0, %v2752
        %v3521 = vsub.f32 0.0, %v2753
        %v3522 = vsub.f32 0.0, %v2754
        %v3523 = vsub.f32 0.0, %v2755
        %v3524 = vsub.f32 0.0, %v2756
        %v3525 = vsub.f32 0.0, %v2757
        %v3526 = vsub.f32 0.0, %v2758
        %v3527 = vsub.f32 0.0, %v2759
        %v3528 = vsub.f32 0.0, %v2760
        %v3529 = vsub.f32 0.0, %v2761
        %v3530 = vsub.f32 0.0, %v2762
        %v3531 = vsub.f32 0.0, %v2763
        %v3532 = vsub.f32 0.0, %v2764
        %v3533 = vsub.f32 0.0, %v2765
        %v3534 = vsub.f32 0.0, %v2766
        %v3535 = vsub.f32 0.0, %v2767
        %v3536 = vsub.f32 0.0, %v2768
        %v3537 = vsub.f32 0.0, %v2769
        %v3538 = vsub.f32 0.0, %v2770
        %v3539 = vsub.f32 0.0, %v2771
        %v3540 = vsub.f32 0.0, %v2772
        %v3541 = vsub.f32 0.0, %v2773
        %v3542 = vsub.f32 0.0, %v2774
        %v3543 = vsub.f32 0.0, %v2775
        %v3544 = vsub.f32 0.0, %v2776
        %v3545 = vsub.f32 0.0, %v2777
        %v3546 = vsub.f32 0.0, %v2778
        %v3547 = vsub.f32 0.0, %v2779
        %v3548 = vsub.f32 0.0, %v2780
        %v3549 = vsub.f32 0.0, %v2781
        %v3550 = vsub.f32 0.0, %v2782
        %v3551 = vsub.f32 0.0, %v2783
        %v3552 = vsub.f32 0.0, %v2784
        %v3553 = vsub.f32 0.0, %v2785
        %v3554 = vsub.f32 0.0, %v2786
        %v3555 = vsub.f32 0.0, %v2787
        %v3556 = vsub.f32 0.0, %v2788
        %v3557 = vsub.f32 0.0, %v2789
        %v3558 = vsub.f32 0.0, %v2790
        %v3559 = vsub.f32 0.0, %v2791
        %v3560 = vsub.f32 0.0, %v3304
        %v3561 = vsub.f32 0.0, %v3305
        %v3562 = vsub.f32 0.0, %v3306
        %v3563 = vsub.f32 0.0, %v3307
        %v3564 = vsub.f32 0.0, %v3308
        %v3565 = vsub.f32 0.0, %v3309
        %v3566 = vsub.f32 0.0, %v3310
        %v3567 = vsub.f32 0.0, %v3311
        %v3568 = vsub.f32 0.0, %v3312
        %v3569 = vsub.f32 0.0, %v3313
        %v3570 = vsub.f32 0.0, %v3314
        %v3571 = vsub.f32 0.0, %v3315
        %v3572 = vsub.f32 0.0, %v3316
        %v3573 = vsub.f32 0.0, %v3317
        %v3574 = vsub.f32 0.0, %v3318
        %v3575 = vsub.f32 0.0, %v3319
        %v3576 = vsub.f32 0.0, %v3320
        %v3577 = vsub.f32 0.0, %v3321
        %v3578 = vsub.f32 0.0, %v3322
        %v3579 = vsub.f32 0.0, %v3323
        %v3580 = vsub.f32 0.0, %v3324
        %v3581 = vsub.f32 0.0, %v3325
        %v3582 = vsub.f32 0.0, %v3326
        %v3583 = vsub.f32 0.0, %v3327
        %v3584 = vsub.f32 0.0, %v3328
        %v3585 = vsub.f32 0.0, %v3329
        %v3586 = vsub.f32 0.0, %v3330
        %v3587 = vsub.f32 0.0, %v3331
        %v3588 = vsub.f32 0.0, %v3332
        %v3589 = vsub.f32 0.0, %v3333
        %v3590 = vsub.f32 0.0, %v3334
        %v3591 = vsub.f32 0.0, %v3335
        %v3592 = vsub.f32 0.0, %v3336
        %v3593 = vsub.f32 0.0, %v3337
        %v3594 = vsub.f32 0.0, %v3338
        %v3595 = vsub.f32 0.0, %v3339
        %v3596 = vsub.f32 0.0, %v3340
        %v3597 = vsub.f32 0.0, %v3341
        %v3598 = vsub.f32 0.0, %v3342
        %v3599 = vsub.f32 0.0, %v3343
        %v3600 = vsub.f32 0.0, %v3344
        %v3601 = vsub.f32 0.0, %v3345
        %v3602 = vsub.f32 0.0, %v3346
        %v3603 = vsub.f32 0.0, %v3347
        %v3604 = vsub.f32 0.0, %v3348
        %v3605 = vsub.f32 0.0, %v3349
        %v3606 = vsub.f32 0.0, %v3350
        %v3607 = vsub.f32 0.0, %v3351
        %v3608 = vsub.f32 0.0, %v3352
        %v3609 = vsub.f32 0.0, %v3353
        %v3610 = vsub.f32 0.0, %v3354
        %v3611 = vsub.f32 0.0, %v3355
        %v3612 = vsub.f32 0.0, %v3356
        %v3613 = vsub.f32 0.0, %v3357
        %v3614 = vsub.f32 0.0, %v3358
        %v3615 = vsub.f32 0.0, %v3359
        %v3616 = vsub.f32 0.0, %v3360
        %v3617 = vsub.f32 0.0, %v3361
        %v3618 = vsub.f32 0.0, %v3362
        %v3619 = vsub.f32 0.0, %v3363
        %v3620 = vsub.f32 0.0, %v3364
        %v3621 = vsub.f32 0.0, %v3365
        %v3622 = vsub.f32 0.0, %v3366
        %v3623 = vsub.f32 0.0, %v3367
        %v3624 = vsub.f32 0.0, %v3368
        %v3625 = vsub.f32 0.0, %v3369
        %v3626 = vsub.f32 0.0, %v3370
        %v3627 = vsub.f32 0.0, %v3371
        %v3628 = vsub.f32 0.0, %v3372
        %v3629 = vsub.f32 0.0, %v3373
        %v3630 = vsub.f32 0.0, %v3374
        %v3631 = vsub.f32 0.0, %v3375
        %v3632 = vsub.f32 0.0, %v3376
        %v3633 = vsub.f32 0.0, %v3377
        %v3634 = vsub.f32 0.0, %v3378
        %v3635 = vsub.f32 0.0, %v3379
        %v3636 = vsub.f32 0.0, %v3380
        %v3637 = vsub.f32 0.0, %v3381
        %v3638 = vsub.f32 0.0, %v3382
        %v3639 = vsub.f32 0.0, %v3383
        %v3640 = vsub.f32 0.0, %v3384
        %v3641 = vsub.f32 0.0, %v3385
        %v3642 = vsub.f32 0.0, %v3386
        %v3643 = vsub.f32 0.0, %v3387
        %v3644 = vsub.f32 0.0, %v3388
        %v3645 = vsub.f32 0.0, %v3389
        %v3646 = vsub.f32 0.0, %v3390
        %v3647 = vsub.f32 0.0, %v3391
        %v3648 = vsub.f32 0.0, %v3392
        %v3649 = vsub.f32 0.0, %v3393
        %v3650 = vsub.f32 0.0, %v3394
        %v3651 = vsub.f32 0.0, %v3395
        %v3652 = vsub.f32 0.0, %v3396
        %v3653 = vsub.f32 0.0, %v3397
        %v3654 = vsub.f32 0.0, %v3398
        %v3655 = vsub.f32 0.0, %v3399
        %v3656 = vsub.f32 0.0, %v3400
        %v3657 = vsub.f32 0.0, %v3401
        %v3658 = vsub.f32 0.0, %v3402
        %v3659 = vsub.f32 0.0, %v3403
        %v3660 = vsub.f32 0.0, %v3404
        %v3661 = vsub.f32 0.0, %v3405
        %v3662 = vsub.f32 0.0, %v3406
        %v3663 = vsub.f32 0.0, %v3407
        %v3664 = vsub.f32 0.0, %v3408
        %v3665 = vsub.f32 0.0, %v3409
        %v3666 = vsub.f32 0.0, %v3410
        %v3667 = vsub.f32 0.0, %v3411
        %v3668 = vsub.f32 0.0, %v3412
        %v3669 = vsub.f32 0.0, %v3413
        %v3670 = vsub.f32 0.0, %v3414
        %v3671 = vsub.f32 0.0, %v3415
        %v3672 = vsub.f32 0.0, %v3416
        %v3673 = vsub.f32 0.0, %v3417
        %v3674 = vsub.f32 0.0, %v3418
        %v3675 = vsub.f32 0.0, %v3419
        %v3676 = vsub.f32 0.0, %v3420
        %v3677 = vsub.f32 0.0, %v3421
        %v3678 = vsub.f32 0.0, %v3422
        %v3679 = vsub.f32 0.0, %v3423
        %v3680 = vsub.f32 0.0, %v3424
        %v3681 = vsub.f32 0.0, %v3425
        %v3682 = vsub.f32 0.0, %v3426
        %v3683 = vsub.f32 0.0, %v3427
        %v3684 = vsub.f32 0.0, %v3428
        %v3685 = vsub.f32 0.0, %v3429
        %v3686 = vsub.f32 0.0, %v3430
        %v3687 = vsub.f32 0.0, %v3431
        %v3688 = vsel %vm872, %v3432, %v3560
        %v3689 = vsel %vm873, %v3433, %v3561
        %v3690 = vsel %vm874, %v3434, %v3562
        %v3691 = vsel %vm875, %v3435, %v3563
        %v3692 = vsel %vm876, %v3436, %v3564
        %v3693 = vsel %vm877, %v3437, %v3565
        %v3694 = vsel %vm878, %v3438, %v3566
        %v3695 = vsel %vm879, %v3439, %v3567
        %v3696 = vsel %vm880, %v3440, %v3568
        %v3697 = vsel %vm881, %v3441, %v3569
        %v3698 = vsel %vm882, %v3442, %v3570
        %v3699 = vsel %vm883, %v3443, %v3571
        %v3700 = vsel %vm884, %v3444, %v3572
        %v3701 = vsel %vm885, %v3445, %v3573
        %v3702 = vsel %vm886, %v3446, %v3574
        %v3703 = vsel %vm887, %v3447, %v3575
        %v3704 = vsel %vm888, %v3448, %v3576
        %v3705 = vsel %vm889, %v3449, %v3577
        %v3706 = vsel %vm890, %v3450, %v3578
        %v3707 = vsel %vm891, %v3451, %v3579
        %v3708 = vsel %vm892, %v3452, %v3580
        %v3709 = vsel %vm893, %v3453, %v3581
        %v3710 = vsel %vm894, %v3454, %v3582
        %v3711 = vsel %vm895, %v3455, %v3583
        %v3712 = vsel %vm896, %v3456, %v3584
        %v3713 = vsel %vm897, %v3457, %v3585
        %v3714 = vsel %vm898, %v3458, %v3586
        %v3715 = vsel %vm899, %v3459, %v3587
        %v3716 = vsel %vm900, %v3460, %v3588
        %v3717 = vsel %vm901, %v3461, %v3589
        %v3718 = vsel %vm902, %v3462, %v3590
        %v3719 = vsel %vm903, %v3463, %v3591
        %v3720 = vsel %vm904, %v3464, %v3592
        %v3721 = vsel %vm905, %v3465, %v3593
        %v3722 = vsel %vm906, %v3466, %v3594
        %v3723 = vsel %vm907, %v3467, %v3595
        %v3724 = vsel %vm908, %v3468, %v3596
        %v3725 = vsel %vm909, %v3469, %v3597
        %v3726 = vsel %vm910, %v3470, %v3598
        %v3727 = vsel %vm911, %v3471, %v3599
        %v3728 = vsel %vm912, %v3472, %v3600
        %v3729 = vsel %vm913, %v3473, %v3601
        %v3730 = vsel %vm914, %v3474, %v3602
        %v3731 = vsel %vm915, %v3475, %v3603
        %v3732 = vsel %vm916, %v3476, %v3604
        %v3733 = vsel %vm917, %v3477, %v3605
        %v3734 = vsel %vm918, %v3478, %v3606
        %v3735 = vsel %vm919, %v3479, %v3607
        %v3736 = vsel %vm920, %v3480, %v3608
        %v3737 = vsel %vm921, %v3481, %v3609
        %v3738 = vsel %vm922, %v3482, %v3610
        %v3739 = vsel %vm923, %v3483, %v3611
        %v3740 = vsel %vm924, %v3484, %v3612
        %v3741 = vsel %vm925, %v3485, %v3613
        %v3742 = vsel %vm926, %v3486, %v3614
        %v3743 = vsel %vm927, %v3487, %v3615
        %v3744 = vsel %vm928, %v3488, %v3616
        %v3745 = vsel %vm929, %v3489, %v3617
        %v3746 = vsel %vm930, %v3490, %v3618
        %v3747 = vsel %vm931, %v3491, %v3619
        %v3748 = vsel %vm932, %v3492, %v3620
        %v3749 = vsel %vm933, %v3493, %v3621
        %v3750 = vsel %vm934, %v3494, %v3622
        %v3751 = vsel %vm935, %v3495, %v3623
        %v3752 = vsel %vm936, %v3496, %v3624
        %v3753 = vsel %vm937, %v3497, %v3625
        %v3754 = vsel %vm938, %v3498, %v3626
        %v3755 = vsel %vm939, %v3499, %v3627
        %v3756 = vsel %vm940, %v3500, %v3628
        %v3757 = vsel %vm941, %v3501, %v3629
        %v3758 = vsel %vm942, %v3502, %v3630
        %v3759 = vsel %vm943, %v3503, %v3631
        %v3760 = vsel %vm944, %v3504, %v3632
        %v3761 = vsel %vm945, %v3505, %v3633
        %v3762 = vsel %vm946, %v3506, %v3634
        %v3763 = vsel %vm947, %v3507, %v3635
        %v3764 = vsel %vm948, %v3508, %v3636
        %v3765 = vsel %vm949, %v3509, %v3637
        %v3766 = vsel %vm950, %v3510, %v3638
        %v3767 = vsel %vm951, %v3511, %v3639
        %v3768 = vsel %vm952, %v3512, %v3640
        %v3769 = vsel %vm953, %v3513, %v3641
        %v3770 = vsel %vm954, %v3514, %v3642
        %v3771 = vsel %vm955, %v3515, %v3643
        %v3772 = vsel %vm956, %v3516, %v3644
        %v3773 = vsel %vm957, %v3517, %v3645
        %v3774 = vsel %vm958, %v3518, %v3646
        %v3775 = vsel %vm959, %v3519, %v3647
        %v3776 = vsel %vm960, %v3520, %v3648
        %v3777 = vsel %vm961, %v3521, %v3649
        %v3778 = vsel %vm962, %v3522, %v3650
        %v3779 = vsel %vm963, %v3523, %v3651
        %v3780 = vsel %vm964, %v3524, %v3652
        %v3781 = vsel %vm965, %v3525, %v3653
        %v3782 = vsel %vm966, %v3526, %v3654
        %v3783 = vsel %vm967, %v3527, %v3655
        %v3784 = vsel %vm968, %v3528, %v3656
        %v3785 = vsel %vm969, %v3529, %v3657
        %v3786 = vsel %vm970, %v3530, %v3658
        %v3787 = vsel %vm971, %v3531, %v3659
        %v3788 = vsel %vm972, %v3532, %v3660
        %v3789 = vsel %vm973, %v3533, %v3661
        %v3790 = vsel %vm974, %v3534, %v3662
        %v3791 = vsel %vm975, %v3535, %v3663
        %v3792 = vsel %vm976, %v3536, %v3664
        %v3793 = vsel %vm977, %v3537, %v3665
        %v3794 = vsel %vm978, %v3538, %v3666
        %v3795 = vsel %vm979, %v3539, %v3667
        %v3796 = vsel %vm980, %v3540, %v3668
        %v3797 = vsel %vm981, %v3541, %v3669
        %v3798 = vsel %vm982, %v3542, %v3670
        %v3799 = vsel %vm983, %v3543, %v3671
        %v3800 = vsel %vm984, %v3544, %v3672
        %v3801 = vsel %vm985, %v3545, %v3673
        %v3802 = vsel %vm986, %v3546, %v3674
        %v3803 = vsel %vm987, %v3547, %v3675
        %v3804 = vsel %vm988, %v3548, %v3676
        %v3805 = vsel %vm989, %v3549, %v3677
        %v3806 = vsel %vm990, %v3550, %v3678
        %v3807 = vsel %vm991, %v3551, %v3679
        %v3808 = vsel %vm992, %v3552, %v3680
        %v3809 = vsel %vm993, %v3553, %v3681
        %v3810 = vsel %vm994, %v3554, %v3682
        %v3811 = vsel %vm995, %v3555, %v3683
        %v3812 = vsel %vm996, %v3556, %v3684
        %v3813 = vsel %vm997, %v3557, %v3685
        %v3814 = vsel %vm998, %v3558, %v3686
        %v3815 = vsel %vm999, %v3559, %v3687
        %v3816 = vadd.f32 %v1256, %v1257
        %v3817 = vadd.f32 %v3816, %v1258
        %v3818 = vadd.f32 %v3817, %v1259
        %v3819 = vadd.f32 %v3818, %v1260
        %v3820 = vadd.f32 %v3819, %v1261
        %v3821 = vadd.f32 %v3820, %v1262
        %v3822 = vadd.f32 %v3821, %v1263
        %v3823 = vadd.f32 %v3822, %v1264
        %v3824 = vadd.f32 %v3823, %v1265
        %v3825 = vadd.f32 %v3824, %v1266
        %v3826 = vadd.f32 %v3825, %v1267
        %v3827 = vadd.f32 %v3826, %v1268
        %v3828 = vadd.f32 %v3827, %v1269
        %v3829 = vadd.f32 %v3828, %v1270
        %v3830 = vadd.f32 %v3829, %v1271
        %v3831 = vadd.f32 %v3830, %v1272
        %v3832 = vadd.f32 %v3831, %v1273
        %v3833 = vadd.f32 %v3832, %v1274
        %v3834 = vadd.f32 %v3833, %v1275
        %v3835 = vadd.f32 %v3834, %v1276
        %v3836 = vadd.f32 %v3835, %v1277
        %v3837 = vadd.f32 %v3836, %v1278
        %v3838 = vadd.f32 %v3837, %v1279
        %v3839 = vadd.f32 %v3838, %v1280
        %v3840 = vadd.f32 %v3839, %v1281
        %v3841 = vadd.f32 %v3840, %v1282
        %v3842 = vadd.f32 %v3841, %v1283
        %v3843 = vadd.f32 %v3842, %v1284
        %v3844 = vadd.f32 %v3843, %v1285
        %v3845 = vadd.f32 %v3844, %v1286
        %v3846 = vadd.f32 %v3845, %v1287
        %v3847 = vadd.f32 %v3846, %v1288
        %v3848 = vadd.f32 %v3847, %v1289
        %v3849 = vadd.f32 %v3848, %v1290
        %v3850 = vadd.f32 %v3849, %v1291
        %v3851 = vadd.f32 %v3850, %v1292
        %v3852 = vadd.f32 %v3851, %v1293
        %v3853 = vadd.f32 %v3852, %v1294
        %v3854 = vadd.f32 %v3853, %v1295
        %v3855 = vadd.f32 %v3854, %v1296
        %v3856 = vadd.f32 %v3855, %v1297
        %v3857 = vadd.f32 %v3856, %v1298
        %v3858 = vadd.f32 %v3857, %v1299
        %v3859 = vadd.f32 %v3858, %v1300
        %v3860 = vadd.f32 %v3859, %v1301
        %v3861 = vadd.f32 %v3860, %v1302
        %v3862 = vadd.f32 %v3861, %v1303
        %v3863 = vadd.f32 %v3862, %v1304
        %v3864 = vadd.f32 %v3863, %v1305
        %v3865 = vadd.f32 %v3864, %v1306
        %v3866 = vadd.f32 %v3865, %v1307
        %v3867 = vadd.f32 %v3866, %v1308
        %v3868 = vadd.f32 %v3867, %v1309
        %v3869 = vadd.f32 %v3868, %v1310
        %v3870 = vadd.f32 %v3869, %v1311
        %v3871 = vadd.f32 %v3870, %v1312
        %v3872 = vadd.f32 %v3871, %v1313
        %v3873 = vadd.f32 %v3872, %v1314
        %v3874 = vadd.f32 %v3873, %v1315
        %v3875 = vadd.f32 %v3874, %v1316
        %v3876 = vadd.f32 %v3875, %v1317
        %v3877 = vadd.f32 %v3876, %v1318
        %v3878 = vadd.f32 %v3877, %v1319
        %v3879 = vadd.f32 %v3878, %v1320
        %v3880 = vadd.f32 %v3879, %v1321
        %v3881 = vadd.f32 %v3880, %v1322
        %v3882 = vadd.f32 %v3881, %v1323
        %v3883 = vadd.f32 %v3882, %v1324
        %v3884 = vadd.f32 %v3883, %v1325
        %v3885 = vadd.f32 %v3884, %v1326
        %v3886 = vadd.f32 %v3885, %v1327
        %v3887 = vadd.f32 %v3886, %v1328
        %v3888 = vadd.f32 %v3887, %v1329
        %v3889 = vadd.f32 %v3888, %v1330
        %v3890 = vadd.f32 %v3889, %v1331
        %v3891 = vadd.f32 %v3890, %v1332
        %v3892 = vadd.f32 %v3891, %v1333
        %v3893 = vadd.f32 %v3892, %v1334
        %v3894 = vadd.f32 %v3893, %v1335
        %v3895 = vadd.f32 %v3894, %v1336
        %v3896 = vadd.f32 %v3895, %v1337
        %v3897 = vadd.f32 %v3896, %v1338
        %v3898 = vadd.f32 %v3897, %v1339
        %v3899 = vadd.f32 %v3898, %v1340
        %v3900 = vadd.f32 %v3899, %v1341
        %v3901 = vadd.f32 %v3900, %v1342
        %v3902 = vadd.f32 %v3901, %v1343
        %v3903 = vadd.f32 %v3902, %v1344
        %v3904 = vadd.f32 %v3903, %v1345
        %v3905 = vadd.f32 %v3904, %v1346
        %v3906 = vadd.f32 %v3905, %v1347
        %v3907 = vadd.f32 %v3906, %v1348
        %v3908 = vadd.f32 %v3907, %v1349
        %v3909 = vadd.f32 %v3908, %v1350
        %v3910 = vadd.f32 %v3909, %v1351
        %v3911 = vadd.f32 %v3910, %v1352
        %v3912 = vadd.f32 %v3911, %v1353
        %v3913 = vadd.f32 %v3912, %v1354
        %v3914 = vadd.f32 %v3913, %v1355
        %v3915 = vadd.f32 %v3914, %v1356
        %v3916 = vadd.f32 %v3915, %v1357
        %v3917 = vadd.f32 %v3916, %v1358
        %v3918 = vadd.f32 %v3917, %v1359
        %v3919 = vadd.f32 %v3918, %v1360
        %v3920 = vadd.f32 %v3919, %v1361
        %v3921 = vadd.f32 %v3920, %v1362
        %v3922 = vadd.f32 %v3921, %v1363
        %v3923 = vadd.f32 %v3922, %v1364
        %v3924 = vadd.f32 %v3923, %v1365
        %v3925 = vadd.f32 %v3924, %v1366
        %v3926 = vadd.f32 %v3925, %v1367
        %v3927 = vadd.f32 %v3926, %v1368
        %v3928 = vadd.f32 %v3927, %v1369
        %v3929 = vadd.f32 %v3928, %v1370
        %v3930 = vadd.f32 %v3929, %v1371
        %v3931 = vadd.f32 %v3930, %v1372
        %v3932 = vadd.f32 %v3931, %v1373
        %v3933 = vadd.f32 %v3932, %v1374
        %v3934 = vadd.f32 %v3933, %v1375
        %v3935 = vadd.f32 %v3934, %v1376
        %v3936 = vadd.f32 %v3935, %v1377
        %v3937 = vadd.f32 %v3936, %v1378
        %v3938 = vadd.f32 %v3937, %v1379
        %v3939 = vadd.f32 %v3938, %v1380
        %v3940 = vadd.f32 %v3939, %v1381
        %v3941 = vadd.f32 %v3940, %v1382
        %v3942 = vadd.f32 %v3941, %v1383
        %v3943 = vadd.f32 %v3688, %v3689
        %v3944 = vadd.f32 %v3943, %v3690
        %v3945 = vadd.f32 %v3944, %v3691
        %v3946 = vadd.f32 %v3945, %v3692
        %v3947 = vadd.f32 %v3946, %v3693
        %v3948 = vadd.f32 %v3947, %v3694
        %v3949 = vadd.f32 %v3948, %v3695
        %v3950 = vadd.f32 %v3949, %v3696
        %v3951 = vadd.f32 %v3950, %v3697
        %v3952 = vadd.f32 %v3951, %v3698
        %v3953 = vadd.f32 %v3952, %v3699
        %v3954 = vadd.f32 %v3953, %v3700
        %v3955 = vadd.f32 %v3954, %v3701
        %v3956 = vadd.f32 %v3955, %v3702
        %v3957 = vadd.f32 %v3956, %v3703
        %v3958 = vadd.f32 %v3957, %v3704
        %v3959 = vadd.f32 %v3958, %v3705
        %v3960 = vadd.f32 %v3959, %v3706
        %v3961 = vadd.f32 %v3960, %v3707
        %v3962 = vadd.f32 %v3961, %v3708
        %v3963 = vadd.f32 %v3962, %v3709
        %v3964 = vadd.f32 %v3963, %v3710
        %v3965 = vadd.f32 %v3964, %v3711
        %v3966 = vadd.f32 %v3965, %v3712
        %v3967 = vadd.f32 %v3966, %v3713
        %v3968 = vadd.f32 %v3967, %v3714
        %v3969 = vadd.f32 %v3968, %v3715
        %v3970 = vadd.f32 %v3969, %v3716
        %v3971 = vadd.f32 %v3970, %v3717
        %v3972 = vadd.f32 %v3971, %v3718
        %v3973 = vadd.f32 %v3972, %v3719
        %v3974 = vadd.f32 %v3973, %v3720
        %v3975 = vadd.f32 %v3974, %v3721
        %v3976 = vadd.f32 %v3975, %v3722
        %v3977 = vadd.f32 %v3976, %v3723
        %v3978 = vadd.f32 %v3977, %v3724
        %v3979 = vadd.f32 %v3978, %v3725
        %v3980 = vadd.f32 %v3979, %v3726
        %v3981 = vadd.f32 %v3980, %v3727
        %v3982 = vadd.f32 %v3981, %v3728
        %v3983 = vadd.f32 %v3982, %v3729
        %v3984 = vadd.f32 %v3983, %v3730
        %v3985 = vadd.f32 %v3984, %v3731
        %v3986 = vadd.f32 %v3985, %v3732
        %v3987 = vadd.f32 %v3986, %v3733
        %v3988 = vadd.f32 %v3987, %v3734
        %v3989 = vadd.f32 %v3988, %v3735
        %v3990 = vadd.f32 %v3989, %v3736
        %v3991 = vadd.f32 %v3990, %v3737
        %v3992 = vadd.f32 %v3991, %v3738
        %v3993 = vadd.f32 %v3992, %v3739
        %v3994 = vadd.f32 %v3993, %v3740
        %v3995 = vadd.f32 %v3994, %v3741
        %v3996 = vadd.f32 %v3995, %v3742
        %v3997 = vadd.f32 %v3996, %v3743
        %v3998 = vadd.f32 %v3997, %v3744
        %v3999 = vadd.f32 %v3998, %v3745
        %v4000 = vadd.f32 %v3999, %v3746
        %v4001 = vadd.f32 %v4000, %v3747
        %v4002 = vadd.f32 %v4001, %v3748
        %v4003 = vadd.f32 %v4002, %v3749
        %v4004 = vadd.f32 %v4003, %v3750
        %v4005 = vadd.f32 %v4004, %v3751
        %v4006 = vadd.f32 %v4005, %v3752
        %v4007 = vadd.f32 %v4006, %v3753
        %v4008 = vadd.f32 %v4007, %v3754
        %v4009 = vadd.f32 %v4008, %v3755
        %v4010 = vadd.f32 %v4009, %v3756
        %v4011 = vadd.f32 %v4010, %v3757
        %v4012 = vadd.f32 %v4011, %v3758
        %v4013 = vadd.f32 %v4012, %v3759
        %v4014 = vadd.f32 %v4013, %v3760
        %v4015 = vadd.f32 %v4014, %v3761
        %v4016 = vadd.f32 %v4015, %v3762
        %v4017 = vadd.f32 %v4016, %v3763
        %v4018 = vadd.f32 %v4017, %v3764
        %v4019 = vadd.f32 %v4018, %v3765
        %v4020 = vadd.f32 %v4019, %v3766
        %v4021 = vadd.f32 %v4020, %v3767
        %v4022 = vadd.f32 %v4021, %v3768
        %v4023 = vadd.f32 %v4022, %v3769
        %v4024 = vadd.f32 %v4023, %v3770
        %v4025 = vadd.f32 %v4024, %v3771
        %v4026 = vadd.f32 %v4025, %v3772
        %v4027 = vadd.f32 %v4026, %v3773
        %v4028 = vadd.f32 %v4027, %v3774
        %v4029 = vadd.f32 %v4028, %v3775
        %v4030 = vadd.f32 %v4029, %v3776
        %v4031 = vadd.f32 %v4030, %v3777
        %v4032 = vadd.f32 %v4031, %v3778
        %v4033 = vadd.f32 %v4032, %v3779
        %v4034 = vadd.f32 %v4033, %v3780
        %v4035 = vadd.f32 %v4034, %v3781
        %v4036 = vadd.f32 %v4035, %v3782
        %v4037 = vadd.f32 %v4036, %v3783
        %v4038 = vadd.f32 %v4037, %v3784
        %v4039 = vadd.f32 %v4038, %v3785
        %v4040 = vadd.f32 %v4039, %v3786
        %v4041 = vadd.f32 %v4040, %v3787
        %v4042 = vadd.f32 %v4041, %v3788
        %v4043 = vadd.f32 %v4042, %v3789
        %v4044 = vadd.f32 %v4043, %v3790
        %v4045 = vadd.f32 %v4044, %v3791
        %v4046 = vadd.f32 %v4045, %v3792
        %v4047 = vadd.f32 %v4046, %v3793
        %v4048 = vadd.f32 %v4047, %v3794
        %v4049 = vadd.f32 %v4048, %v3795
        %v4050 = vadd.f32 %v4049, %v3796
        %v4051 = vadd.f32 %v4050, %v3797
        %v4052 = vadd.f32 %v4051, %v3798
        %v4053 = vadd.f32 %v4052, %v3799
        %v4054 = vadd.f32 %v4053, %v3800
        %v4055 = vadd.f32 %v4054, %v3801
        %v4056 = vadd.f32 %v4055, %v3802
        %v4057 = vadd.f32 %v4056, %v3803
        %v4058 = vadd.f32 %v4057, %v3804
        %v4059 = vadd.f32 %v4058, %v3805
        %v4060 = vadd.f32 %v4059, %v3806
        %v4061 = vadd.f32 %v4060, %v3807
        %v4062 = vadd.f32 %v4061, %v3808
        %v4063 = vadd.f32 %v4062, %v3809
        %v4064 = vadd.f32 %v4063, %v3810
        %v4065 = vadd.f32 %v4064, %v3811
        %v4066 = vadd.f32 %v4065, %v3812
        %v4067 = vadd.f32 %v4066, %v3813
        %v4068 = vadd.f32 %v4067, %v3814
        %v4069 = vadd.f32 %v4068, %v3815
        %p4070 = scmp.eq.s32.totalorder %s26, 0
        // Predicated region
        $region29: #{tpu_custom_call.1} parent=27 // pred_check
          %p4071 = pneg %p4070
        $region30: #{tpu_custom_call.1} parent=27 // pred_check_branch
          %4073 = sbr.rel (%p4071) target = $region32
        $region31: #{tpu_custom_call.1} parent=27 // pred_region
          %4074 = vst [vmem:[%s206] sm:$0xff] 0.0
          %4075 = vst [vmem:[%s213] sm:$0xff] 0.0
        $region32: #{tpu_custom_call.1} parent=27 // pred_fallthru
          _
        %v4076 = vld [vmem:[%s206] sm:$0xff]
        %v4077 = vadd.f32 %v4076, %v3942
        %4078 = vst [vmem:[%s206] sm:$0xff] %v4077
        %v4079 = vld [vmem:[%s213] sm:$0xff]
        %v4080 = vadd.f32 %v4079, %v4069
        %4081 = vst [vmem:[%s213] sm:$0xff] %v4080
        %s4082 = sand.u32 %s97, 1
        %s4083 = scalar_lea.sflag [#allocation3], %s4082
        %s4084 = sand.u32 %s97, 1
        %s4085 = smul.addr %s4084, 8
        %s4086 = scalar_lea.vmem [#allocation2], %s4085
        %s4087 = sand.u32 %s123, 1
        %s4088 = scalar_lea.sflag [#allocation5], %s4087
        %s4089 = sand.u32 %s123, 1
        %s4090 = smul.addr %s4089, 8
        %s4091 = scalar_lea.vmem [#allocation4], %s4090
        // Predicated region
        $region33: #{tpu_custom_call.1} parent=27 // pred_check
          %p4092 = pneg %p107
        $region34: #{tpu_custom_call.1} parent=27 // pred_check_branch
          %4094 = sbr.rel (%p4092) target = $region36
        $region35: #{tpu_custom_call.1} parent=27 // pred_region
          %s4096 = ssub.s32 128, 128
          %4097 = vsyncadd %s4083, %s4096
          %s4098 = smul.addr %s25, 128
          %s4099 = scalar_lea.hbm %s2, %s4098
          %s4101 = sshll.u32 %s4086, 4
          %s4102 = int_to_ptr.vmem [resolvable:$true] %s4101
          %4104 = dma.vmem_to_hbm [thread:$0]  %s4102, 128, %s4099, %s4083
        $region36: #{tpu_custom_call.1} parent=27 // pred_fallthru
          _
        // Predicated region
        $region37: #{tpu_custom_call.1} parent=27 // pred_check
          %p4105 = pneg %p133
        $region38: #{tpu_custom_call.1} parent=27 // pred_check_branch
          %4107 = sbr.rel (%p4105) target = $region40
        $region39: #{tpu_custom_call.1} parent=27 // pred_region
          %s4109 = ssub.s32 128, 128
          %4110 = vsyncadd %s4088, %s4109
          %s4111 = smul.addr %s25, 128
          %s4112 = scalar_lea.hbm %s3, %s4111
          %s4114 = sshll.u32 %s4091, 4
          %s4115 = int_to_ptr.vmem [resolvable:$true] %s4114
          %4117 = dma.vmem_to_hbm [thread:$0]  %s4115, 128, %s4112, %s4088
        $region40: #{tpu_custom_call.1} parent=27 // pred_fallthru
          _
      $region28: #{tpu_custom_call.1} parent=5 // pred_fallthru
        _
      %p4118 = scmp.le.s32.totalorder 2, %s16
      // Predicated region
      $region41: #{tpu_custom_call.1} parent=5 // pred_check
        %p4119 = pneg %p4118
      $region42: #{tpu_custom_call.1} parent=5 // pred_check_branch
        %4121 = sbr.rel (%p4119) target = $region44
      $region43: #{tpu_custom_call.1} parent=5 // pred_region
        %s4122 = ssub.s32 %s16, 2
        // Predicated region
        $region45: #{tpu_custom_call.1} parent=43 // pred_check
          %p4123 = pneg %p113
        $region46: #{tpu_custom_call.1} parent=43 // pred_check_branch
          %4125 = sbr.rel (%p4123) target = $region48
        $region47: #{tpu_custom_call.1} parent=43 // pred_region
          %s4126 = sand.u32 %s98, 1
          %s4127 = scalar_lea.sflag [#allocation3], %s4126
          %s4128 = sand.u32 %s98, 1
          %s4129 = smul.addr %s4128, 8
          %s4130 = scalar_lea.vmem [#allocation2], %s4129
          %4131 = dma.done %s4127, 128
        $region48: #{tpu_custom_call.1} parent=43 // pred_fallthru
          _
        // Predicated region
        $region49: #{tpu_custom_call.1} parent=43 // pred_check
          %p4132 = pneg %p139
        $region50: #{tpu_custom_call.1} parent=43 // pred_check_branch
          %4134 = sbr.rel (%p4132) target = $region52
        $region51: #{tpu_custom_call.1} parent=43 // pred_region
          %s4135 = sand.u32 %s124, 1
          %s4136 = scalar_lea.sflag [#allocation5], %s4135
          %s4137 = sand.u32 %s124, 1
          %s4138 = smul.addr %s4137, 8
          %s4139 = scalar_lea.vmem [#allocation4], %s4138
          %4140 = dma.done %s4136, 128
        $region52: #{tpu_custom_call.1} parent=43 // pred_fallthru
          _
      $region44: #{tpu_custom_call.1} parent=5 // pred_fallthru
        _
    $region6: #{tpu_custom_call.1} parent=1 // loop_footer
      %s20 = sadd.s32 1, %s16
    $region7: #{tpu_custom_call.1} parent=1 // loop_footer_branch
      %15 = sbr.rel target = $region3
    $region8: #{tpu_custom_call.1} parent=1 // loop_exit
      _
    %4141 = vsyncpa [#allocation3], 1
    %s4142 = scalar_lea.sflag [#allocation3], 1
    %4143 = vsyncpa %s4142, 1
    %4144 = vsyncpa [#allocation5], 1
    %s4145 = scalar_lea.sflag [#allocation5], 1
    %4146 = vsyncpa %s4145, 1

</llo_original>
